<compile_context>
chip_gen: v5e
topology: v5e:2x2
jax: 0.10.0
libtpu: 0.0.40
codegen_flags: <defaults>
</compile_context>

<pallas_src>
import functools

import numpy as np
import jax
import jax.numpy as jnp
from jax import lax
from jax.experimental import pallas as pl
from jax.experimental.pallas import tpu as pltpu


# --------------------- continuous position-bias MLP ------------------------ #

def _cpb_kernel(t_ref, w1_ref, b1_ref, w2_ref, b2_ref, o_ref):
    h = jnp.dot(t_ref[...], w1_ref[...],
                preferred_element_type=jnp.float32) + b1_ref[...]
    h = jnp.maximum(h, 0.0)                          # ReLU
    o_ref[...] = (jnp.dot(h, w2_ref[...],
                          preferred_element_type=jnp.float32)
                  + b2_ref[...]).astype(o_ref.dtype)


def cpb_mlp_pallas(table, w1, b1, w2, b2):
    """cpb_fc2(relu(cpb_fc1(table))) -> (L, num_heads). Single block."""
    L, C3 = table.shape
    Hd = w1.shape[1]
    Ho = w2.shape[1]
    return pl.pallas_call(
        _cpb_kernel,
        out_shape=jax.ShapeDtypeStruct((L, Ho), table.dtype),
        grid=(1,),
        in_specs=[pl.BlockSpec((L, C3), lambda i: (0, 0)),
                  pl.BlockSpec((C3, Hd), lambda i: (0, 0)),
                  pl.BlockSpec((1, Hd), lambda i: (0, 0)),
                  pl.BlockSpec((Hd, Ho), lambda i: (0, 0)),
                  pl.BlockSpec((1, Ho), lambda i: (0, 0))],
        out_specs=pl.BlockSpec((L, Ho), lambda i: (0, 0)),
    )(table, w1, b1.reshape(1, -1), w2, b2.reshape(1, -1))


# ---------------------- fused attention (qkv->attn->proj) ------------------ #

def _fused_attention_kernel(x_ref, wqkv_ref, bqkv_ref, qscale_ref, qbias_ref,
                            bias_ref, wproj_ref, bproj_ref, o_ref,
                            *, num_heads, head_dim):
    """Full forward for one batch element; everything resident in VMEM."""
    eps2 = 1e-24                     # F.normalize: x / max(||x||_2, 1e-12)
    N = x_ref.shape[1]
    C = num_heads * head_dim

    x = x_ref[0]                                                     # (N, C)
    qkv = jnp.dot(x, wqkv_ref[...],
                  preferred_element_type=jnp.float32) + bqkv_ref[...]  # (N,3C)

    acc = jnp.zeros((N, C), jnp.float32)
    # Heads unrolled: all per-head matmuls are issued back-to-back from a
    # single program (batched MXU pushes), no grid-step overhead per head.
    for h in range(num_heads):
        lo = h * head_dim
        hi = lo + head_dim
        q = qkv[:, lo:hi]                                            # (N, D)
        k = qkv[:, C + lo:C + hi]
        v = qkv[:, 2 * C + lo:2 * C + hi]

        # L2 normalize (rsqrt -> EUP slot); exactly matches max(||x||, eps).
        qn = q * lax.rsqrt(
            jnp.maximum(jnp.sum(q * q, axis=-1, keepdims=True), eps2))
        kn = k * lax.rsqrt(
            jnp.maximum(jnp.sum(k * k, axis=-1, keepdims=True), eps2))

        # (qn + query_emb) * softplus(temperature) * seq_length_scale,
        # pre-folded per head: qscale = scale row, qbias = query_emb * scale.
        qs = qn * qscale_ref[h] + qbias_ref[h]                       # (N, D)

        # qs @ kn^T without materializing a transpose (contract last dims).
        s = lax.dot_general(qs, kn, (((1,), (1,)), ((), ())),
                            preferred_element_type=jnp.float32)      # (N, N)
        s = s + bias_ref[h]
        s = s - jnp.max(s, axis=-1, keepdims=True)
        p = jnp.exp(s)
        # exact reciprocal keeps us well inside the test tolerance; flip to
        # approx=True (EUP vrcp) if a looser tolerance is acceptable.
        p = p * pl.reciprocal(jnp.sum(p, axis=-1, keepdims=True), approx=False)

        oh = jnp.dot(p, v, preferred_element_type=jnp.float32)       # (N, D)
        # fused head-merge + output projection:
        #   y = sum_h out_h @ W_proj[h*D:(h+1)*D, :]   (8-row, sublane-aligned)
        acc = acc + jnp.dot(oh, wproj_ref[lo:hi, :],
                            preferred_element_type=jnp.float32)

    o_ref[0] = (acc + bproj_ref[...]).astype(o_ref.dtype)


def fused_attention_pallas(x, w_qkv, b_qkv, q_scale, q_bias, rel_bias,
                           w_proj, b_proj, num_heads):
    B, N, C = x.shape
    D = C // num_heads
    kernel = functools.partial(_fused_attention_kernel,
                               num_heads=num_heads, head_dim=D)
    return pl.pallas_call(
        kernel,
        out_shape=jax.ShapeDtypeStruct((B, N, C), x.dtype),
        grid=(B,),
        in_specs=[
            pl.BlockSpec((1, N, C), lambda b: (b, 0, 0)),            # x
            pl.BlockSpec((C, 3 * C), lambda b: (0, 0)),              # w_qkv
            pl.BlockSpec((1, 3 * C), lambda b: (0, 0)),              # b_qkv
            pl.BlockSpec((num_heads, 1, D), lambda b: (0, 0, 0)),    # scale rows
            pl.BlockSpec((num_heads, 1, D), lambda b: (0, 0, 0)),    # qemb*scale
            pl.BlockSpec((num_heads, N, N), lambda b: (0, 0, 0)),    # rel bias
            pl.BlockSpec((C, C), lambda b: (0, 0)),                  # w_proj
            pl.BlockSpec((1, C), lambda b: (0, 0)),                  # b_proj
        ],
        out_specs=pl.BlockSpec((1, N, C), lambda b: (b, 0, 0)),
        compiler_params=pltpu.CompilerParams(
            dimension_semantics=("parallel",)),                      # 2 TCs on v7x
    )(x, w_qkv, b_qkv, q_scale, q_bias, rel_bias, w_proj, b_proj)


# --------------------------- params & forward ------------------------------ #

def init_params(key, dim, num_heads, input_resolution):
    head_dim = dim // num_heads
    ks = jax.random.split(key, 8)
    p = {}
    # Linear weights stored transposed (in_features, out_features) for x @ W.
    p["w_qkv"] = jax.random.normal(ks[0], (dim, 3 * dim), jnp.float32) * 0.02
    p["b_qkv"] = jax.random.normal(ks[1], (3 * dim,), jnp.float32) * 0.02
    p["w_proj"] = jax.random.normal(ks[2], (dim, dim), jnp.float32) * 0.02
    p["b_proj"] = jnp.zeros((dim,), jnp.float32)
    p["query_embedding"] = (jax.random.normal(ks[3], (num_heads, 1, head_dim),
                                              jnp.float32) * 0.02)
    # temperature init: log(exp(1/0.24) - 1)  =>  softplus(temperature) = 1/0.24
    p["temperature"] = jnp.full((num_heads, 1, 1),
                                float(np.log(np.exp(1.0 / 0.24) - 1.0)),
                                jnp.float32)
    p["w_cpb1"] = jax.random.normal(ks[4], (3, 512), jnp.float32) * 0.02
    p["b_cpb1"] = jax.random.normal(ks[5], (512,), jnp.float32) * 0.02
    p["w_cpb2"] = jax.random.normal(ks[6], (512, num_heads), jnp.float32) * 0.02
    p["b_cpb2"] = jax.random.normal(ks[7], (num_heads,), jnp.float32) * 0.02
    p["seq_length_scale"] = jnp.float32(
        np.log(input_resolution[0] * input_resolution[1]))
    return p


def attention_forward(params, x, H, W, T, relative_pos_index,
                      relative_coords_table, num_heads):
    # H, W, T mirror the PyTorch signature; they are not used by this forward.
    del H, W, T
    B, N, C = x.shape
    head_dim = C // num_heads

    # continuous position bias MLP (Pallas) + data-dependent gather (XLA).
    cpb = cpb_mlp_pallas(relative_coords_table, params["w_cpb1"],
                         params["b_cpb1"], params["w_cpb2"], params["b_cpb2"])
    # == cpb_out.T[:, rel_idx.view(-1)].view(-1, N, N)
    rel_bias = cpb[relative_pos_index.reshape(-1)].T.reshape(num_heads, N, N)

    # per-head scale softplus(temperature) * seq_length_scale, folded into the
    # query path so the kernel needs no scalar/SMEM block.
    scale = (jax.nn.softplus(params["temperature"])
             * params["seq_length_scale"]).astype(jnp.float32)       # (H,1,1)
    q_scale = jnp.broadcast_to(scale, (num_heads, 1, head_dim))
    q_bias = params["query_embedding"] * scale                       # (H,1,D)

    return fused_attention_pallas(
        x, params["w_qkv"], params["b_qkv"].reshape(1, -1),
        q_scale, q_bias, rel_bias,
        params["w_proj"], params["b_proj"].reshape(1, -1), num_heads)


def attention_reference(params, x, relative_pos_index, relative_coords_table,
                        num_heads):
    """Pure-JAX reference mirroring the PyTorch forward."""
    B, N, C = x.shape
    head_dim = C // num_heads
    qkv = x @ params["w_qkv"] + params["b_qkv"]
    qkv = qkv.reshape(B, N, 3 * num_heads, head_dim).transpose(0, 2, 1, 3)
    q = qkv[:, :num_heads]
    k = qkv[:, num_heads:2 * num_heads]
    v = qkv[:, 2 * num_heads:]

    h = jax.nn.relu(relative_coords_table @ params["w_cpb1"] + params["b_cpb1"])
    cpb = h @ params["w_cpb2"] + params["b_cpb2"]
    rel_bias = cpb[relative_pos_index.reshape(-1)].T.reshape(num_heads, N, N)

    def l2norm(t):
        return t / jnp.maximum(jnp.linalg.norm(t, axis=-1, keepdims=True), 1e-12)

    scale = jax.nn.softplus(params["temperature"]) * params["seq_length_scale"]
    attn = ((l2norm(q) + params["query_embedding"]) * scale
            @ jnp.swapaxes(l2norm(k), -2, -1) + rel_bias)
    attn = jax.nn.softmax(attn, axis=-1)
    out = (attn @ v).transpose(0, 2, 1, 3).reshape(B, N, C)
    return out @ params["w_proj"] + params["b_proj"]


# ---------------------------------- main ----------------------------------- #

if __name__ == "__main__":
    dim, num_heads = 64, 8
    input_resolution = (4, 4)                 # H=4, W=4 -> N = 16 tokens
    B = 2
    N = input_resolution[0] * input_resolution[1]
    L = (2 * input_resolution[0] - 1) * (2 * input_resolution[1] - 1)  # 49 rows

    key = jax.random.PRNGKey(0)
    kp, kx, ki, kt = jax.random.split(key, 4)

    params = init_params(kp, dim, num_heads, input_resolution)
    x = jax.random.normal(kx, (B, N, dim), jnp.float32)
    relative_pos_index = jax.random.randint(ki, (N, N), 0, L, jnp.int32)
    relative_coords_table = jax.random.normal(kt, (L, 3), jnp.float32)

    fwd = jax.jit(attention_forward, static_argnames=("num_heads",))
    out = fwd(params, x, input_resolution[0], input_resolution[1], 1,
              relative_pos_index, relative_coords_table, num_heads=num_heads)
    out = jax.block_until_ready(out)

    ref = attention_reference(params, x, relative_pos_index,
                              relative_coords_table, num_heads)
    assert out.shape == (B, N, dim)
    np.testing.assert_allclose(np.asarray(out), np.asarray(ref),
                               rtol=2e-3, atol=2e-3)
    print("KERNEL_OK")
</pallas_src>

<mosaic_0001>
module attributes {stable_mosaic.version = 11 : i64} {
  func.func @_cpb_kernel(%arg0: i32, %arg1: memref<49x3xf32, #tpu.memory_space<vmem>>, %arg2: memref<3x512xf32, #tpu.memory_space<vmem>>, %arg3: memref<1x512xf32, #tpu.memory_space<vmem>>, %arg4: memref<512x8xf32, #tpu.memory_space<vmem>>, %arg5: memref<1x8xf32, #tpu.memory_space<vmem>>, %arg6: memref<49x8xf32, #tpu.memory_space<vmem>>) attributes {dimension_semantics = [#tpu.dimension_semantics<arbitrary>], iteration_bounds = array<i64: 1>, scalar_prefetch = 0 : i64, scratch_operands = 0 : i64, tpu.core_type = #tpu.core_type<tc>, window_params = [{pipeline_mode = #tpu.pipeline_mode<synchronous>, transform_indices = @transform_0, window_bounds = array<i64: 49, 3>}, {pipeline_mode = #tpu.pipeline_mode<synchronous>, transform_indices = @transform_1, window_bounds = array<i64: 3, 512>}, {pipeline_mode = #tpu.pipeline_mode<synchronous>, transform_indices = @transform_2, window_bounds = array<i64: 1, 512>}, {pipeline_mode = #tpu.pipeline_mode<synchronous>, transform_indices = @transform_3, window_bounds = array<i64: 512, 8>}, {pipeline_mode = #tpu.pipeline_mode<synchronous>, transform_indices = @transform_4, window_bounds = array<i64: 1, 8>}, {pipeline_mode = #tpu.pipeline_mode<synchronous>, transform_indices = @transform_5, window_bounds = array<i64: 49, 8>}]} {
    %c0 = arith.constant 0 : index
    %c0_0 = arith.constant 0 : index
    %0 = vector.load %arg1[%c0, %c0_0] : memref<49x3xf32, #tpu.memory_space<vmem>>, vector<49x3xf32>
    %c0_1 = arith.constant 0 : index
    %c0_2 = arith.constant 0 : index
    %1 = vector.load %arg2[%c0_1, %c0_2] : memref<3x512xf32, #tpu.memory_space<vmem>>, vector<3x512xf32>
    %cst = arith.constant dense<0.000000e+00> : vector<49x512xf32>
    %2 = tpu.matmul %0, %1, %cst {dimension_numbers = #tpu.dot_dimension_numbers<[1], [0], [0], [1], [0, 0, 1, 1], [], []>} : vector<49x3xf32>, vector<3x512xf32>, vector<49x512xf32> -> vector<49x512xf32>
    %c0_3 = arith.constant 0 : index
    %c0_4 = arith.constant 0 : index
    %3 = vector.load %arg3[%c0_3, %c0_4] : memref<1x512xf32, #tpu.memory_space<vmem>>, vector<1x512xf32>
    %4 = vector.broadcast %3 : vector<1x512xf32> to vector<49x512xf32>
    %5 = arith.addf %2, %4 : vector<49x512xf32>
    %cst_5 = arith.constant 0.000000e+00 : f32
    %6 = vector.broadcast %cst_5 : f32 to vector<49x512xf32>
    %7 = arith.maximumf %5, %6 : vector<49x512xf32>
    %c0_6 = arith.constant 0 : index
    %c0_7 = arith.constant 0 : index
    %8 = vector.load %arg4[%c0_6, %c0_7] : memref<512x8xf32, #tpu.memory_space<vmem>>, vector<512x8xf32>
    %cst_8 = arith.constant dense<0.000000e+00> : vector<49x8xf32>
    %9 = tpu.matmul %7, %8, %cst_8 {dimension_numbers = #tpu.dot_dimension_numbers<[1], [0], [0], [1], [0, 0, 1, 1], [], []>} : vector<49x512xf32>, vector<512x8xf32>, vector<49x8xf32> -> vector<49x8xf32>
    %c0_9 = arith.constant 0 : index
    %c0_10 = arith.constant 0 : index
    %10 = vector.load %arg5[%c0_9, %c0_10] : memref<1x8xf32, #tpu.memory_space<vmem>>, vector<1x8xf32>
    %11 = vector.broadcast %10 : vector<1x8xf32> to vector<49x8xf32>
    %12 = arith.addf %9, %11 : vector<49x8xf32>
    %c0_11 = arith.constant 0 : index
    %c0_12 = arith.constant 0 : index
    %13 = vector.load %arg6[%c0_11, %c0_12] : memref<49x8xf32, #tpu.memory_space<vmem>>, vector<49x8xf32>
    tpu.vector_store %arg6[%c0_11, %c0_12], %12 {strides = array<i32>} : memref<49x8xf32, #tpu.memory_space<vmem>>, vector<49x8xf32>,
    return
  }
  func.func @transform_0(%arg0: i32) -> (i32, i32) {
    %c0_i32 = arith.constant 0 : i32
    %c0_i32_0 = arith.constant 0 : i32
    %c0_i32_1 = arith.constant 0 : i32
    return %c0_i32, %c0_i32_0 : i32, i32
  }
  func.func @transform_1(%arg0: i32) -> (i32, i32) {
    %c0_i32 = arith.constant 0 : i32
    %c0_i32_0 = arith.constant 0 : i32
    %c0_i32_1 = arith.constant 0 : i32
    return %c0_i32, %c0_i32_0 : i32, i32
  }
  func.func @transform_2(%arg0: i32) -> (i32, i32) {
    %c0_i32 = arith.constant 0 : i32
    %c0_i32_0 = arith.constant 0 : i32
    %c0_i32_1 = arith.constant 0 : i32
    return %c0_i32, %c0_i32_0 : i32, i32
  }
  func.func @transform_3(%arg0: i32) -> (i32, i32) {
    %c0_i32 = arith.constant 0 : i32
    %c0_i32_0 = arith.constant 0 : i32
    %c0_i32_1 = arith.constant 0 : i32
    return %c0_i32, %c0_i32_0 : i32, i32
  }
  func.func @transform_4(%arg0: i32) -> (i32, i32) {
    %c0_i32 = arith.constant 0 : i32
    %c0_i32_0 = arith.constant 0 : i32
    %c0_i32_1 = arith.constant 0 : i32
    return %c0_i32, %c0_i32_0 : i32, i32
  }
  func.func @transform_5(%arg0: i32) -> (i32, i32) {
    %c0_i32 = arith.constant 0 : i32
    %c0_i32_0 = arith.constant 0 : i32
    %c0_i32_1 = arith.constant 0 : i32
    return %c0_i32, %c0_i32_0 : i32, i32
  }
}

module attributes {stable_mosaic.version = 11 : i64} {
  func.func @_fused_attention_kernel(%arg0: i32, %arg1: memref<1x16x64xf32, #tpu.memory_space<vmem>>, %arg2: memref<64x192xf32, #tpu.memory_space<vmem>>, %arg3: memref<1x192xf32, #tpu.memory_space<vmem>>, %arg4: memref<8x1x8xf32, #tpu.memory_space<vmem>>, %arg5: memref<8x1x8xf32, #tpu.memory_space<vmem>>, %arg6: memref<8x16x16xf32, #tpu.memory_space<vmem>>, %arg7: memref<64x64xf32, #tpu.memory_space<vmem>>, %arg8: memref<1x64xf32, #tpu.memory_space<vmem>>, %arg9: memref<1x16x64xf32, #tpu.memory_space<vmem>>) attributes {dimension_semantics = [#tpu.dimension_semantics<parallel>], iteration_bounds = array<i64: 2>, scalar_prefetch = 0 : i64, scratch_operands = 0 : i64, tpu.core_type = #tpu.core_type<tc>, window_params = [{transform_indices = @transform_0, window_bounds = array<i64: 1, 16, 64>}, {pipeline_mode = #tpu.pipeline_mode<synchronous>, transform_indices = @transform_1, window_bounds = array<i64: 64, 192>}, {pipeline_mode = #tpu.pipeline_mode<synchronous>, transform_indices = @transform_2, window_bounds = array<i64: 1, 192>}, {pipeline_mode = #tpu.pipeline_mode<synchronous>, transform_indices = @transform_3, window_bounds = array<i64: 8, 1, 8>}, {pipeline_mode = #tpu.pipeline_mode<synchronous>, transform_indices = @transform_4, window_bounds = array<i64: 8, 1, 8>}, {pipeline_mode = #tpu.pipeline_mode<synchronous>, transform_indices = @transform_5, window_bounds = array<i64: 8, 16, 16>}, {pipeline_mode = #tpu.pipeline_mode<synchronous>, transform_indices = @transform_6, window_bounds = array<i64: 64, 64>}, {pipeline_mode = #tpu.pipeline_mode<synchronous>, transform_indices = @transform_7, window_bounds = array<i64: 1, 64>}, {transform_indices = @transform_8, window_bounds = array<i64: 1, 16, 64>}]} {
    %c0 = arith.constant 0 : index
    %c0_0 = arith.constant 0 : index
    %c0_1 = arith.constant 0 : index
    %0 = vector.load %arg1[%c0, %c0_0, %c0_1] : memref<1x16x64xf32, #tpu.memory_space<vmem>>, vector<1x16x64xf32>
    %1 = vector.shape_cast %0 : vector<1x16x64xf32> to vector<16x64xf32>
    %c0_2 = arith.constant 0 : index
    %c0_3 = arith.constant 0 : index
    %2 = vector.load %arg2[%c0_2, %c0_3] : memref<64x192xf32, #tpu.memory_space<vmem>>, vector<64x192xf32>
    %cst = arith.constant dense<0.000000e+00> : vector<16x192xf32>
    %3 = tpu.matmul %1, %2, %cst {dimension_numbers = #tpu.dot_dimension_numbers<[1], [0], [0], [1], [0, 0, 1, 1], [], []>} : vector<16x64xf32>, vector<64x192xf32>, vector<16x192xf32> -> vector<16x192xf32>
    %c0_4 = arith.constant 0 : index
    %c0_5 = arith.constant 0 : index
    %4 = vector.load %arg3[%c0_4, %c0_5] : memref<1x192xf32, #tpu.memory_space<vmem>>, vector<1x192xf32>
    %5 = vector.broadcast %4 : vector<1x192xf32> to vector<16x192xf32>
    %6 = arith.addf %3, %5 : vector<16x192xf32>
    %cst_6 = arith.constant 0.000000e+00 : f32
    %7 = vector.broadcast %cst_6 : f32 to vector<16x64xf32>
    %8 = vector.extract_strided_slice %6 {offsets = [0, 0], sizes = [16, 8], strides = [1, 1]} : vector<16x192xf32> to vector<16x8xf32>
    %9 = vector.extract_strided_slice %6 {offsets = [0, 64], sizes = [16, 8], strides = [1, 1]} : vector<16x192xf32> to vector<16x8xf32>
    %10 = vector.extract_strided_slice %6 {offsets = [0, 128], sizes = [16, 8], strides = [1, 1]} : vector<16x192xf32> to vector<16x8xf32>
    %11 = arith.mulf %8, %8 : vector<16x8xf32>
    %cst_7 = arith.constant dense<0.000000e+00> : vector<16xf32>
    %12 = vector.multi_reduction <add>, %11, %cst_7 [1] : vector<16x8xf32> to vector<16xf32>
    %13 = vector.shape_cast %12 : vector<16xf32> to vector<16x1xf32>
    %cst_8 = arith.constant 1.000000e-24 : f32
    %14 = vector.broadcast %cst_8 : f32 to vector<16x1xf32>
    %15 = arith.maximumf %13, %14 : vector<16x1xf32>
    %16 = math.rsqrt %15 : vector<16x1xf32>
    %17 = vector.broadcast %16 : vector<16x1xf32> to vector<16x8xf32>
    %18 = arith.mulf %8, %17 : vector<16x8xf32>
    %19 = arith.mulf %9, %9 : vector<16x8xf32>
    %cst_9 = arith.constant dense<0.000000e+00> : vector<16xf32>
    %20 = vector.multi_reduction <add>, %19, %cst_9 [1] : vector<16x8xf32> to vector<16xf32>
    %21 = vector.shape_cast %20 : vector<16xf32> to vector<16x1xf32>
    %cst_10 = arith.constant 1.000000e-24 : f32
    %22 = vector.broadcast %cst_10 : f32 to vector<16x1xf32>
    %23 = arith.maximumf %21, %22 : vector<16x1xf32>
    %24 = math.rsqrt %23 : vector<16x1xf32>
    %25 = vector.broadcast %24 : vector<16x1xf32> to vector<16x8xf32>
    %26 = arith.mulf %9, %25 : vector<16x8xf32>
    %c0_11 = arith.constant 0 : index
    %c0_12 = arith.constant 0 : index
    %c0_13 = arith.constant 0 : index
    %27 = vector.load %arg4[%c0_11, %c0_12, %c0_13] : memref<8x1x8xf32, #tpu.memory_space<vmem>>, vector<1x1x8xf32>
    %28 = vector.shape_cast %27 : vector<1x1x8xf32> to vector<1x8xf32>
    %29 = vector.broadcast %28 : vector<1x8xf32> to vector<16x8xf32>
    %30 = arith.mulf %18, %29 : vector<16x8xf32>
    %c0_14 = arith.constant 0 : index
    %c0_15 = arith.constant 0 : index
    %c0_16 = arith.constant 0 : index
    %31 = vector.load %arg5[%c0_14, %c0_15, %c0_16] : memref<8x1x8xf32, #tpu.memory_space<vmem>>, vector<1x1x8xf32>
    %32 = vector.shape_cast %31 : vector<1x1x8xf32> to vector<1x8xf32>
    %33 = vector.broadcast %32 : vector<1x8xf32> to vector<16x8xf32>
    %34 = arith.addf %30, %33 : vector<16x8xf32>
    %cst_17 = arith.constant dense<0.000000e+00> : vector<16x16xf32>
    %35 = tpu.matmul %34, %26, %cst_17 {dimension_numbers = #tpu.dot_dimension_numbers<[1], [1], [0], [0], [0, 0, 1, 0], [], []>} : vector<16x8xf32>, vector<16x8xf32>, vector<16x16xf32> -> vector<16x16xf32>
    %c0_18 = arith.constant 0 : index
    %c0_19 = arith.constant 0 : index
    %c0_20 = arith.constant 0 : index
    %36 = vector.load %arg6[%c0_18, %c0_19, %c0_20] : memref<8x16x16xf32, #tpu.memory_space<vmem>>, vector<1x16x16xf32>
    %37 = vector.shape_cast %36 : vector<1x16x16xf32> to vector<16x16xf32>
    %38 = arith.addf %35, %37 : vector<16x16xf32>
    %cst_21 = arith.constant dense<0xFF800000> : vector<16xf32>
    %39 = vector.multi_reduction <maximumf>, %38, %cst_21 [1] : vector<16x16xf32> to vector<16xf32>
    %40 = vector.shape_cast %39 : vector<16xf32> to vector<16x1xf32>
    %41 = vector.broadcast %40 : vector<16x1xf32> to vector<16x16xf32>
    %42 = arith.subf %38, %41 : vector<16x16xf32>
    %43 = math.exp %42 : vector<16x16xf32>
    %cst_22 = arith.constant dense<0.000000e+00> : vector<16xf32>
    %44 = vector.multi_reduction <add>, %43, %cst_22 [1] : vector<16x16xf32> to vector<16xf32>
    %45 = vector.shape_cast %44 : vector<16xf32> to vector<16x1xf32>
    %46 = tpu.reciprocal %45 : vector<16x1xf32> -> vector<16x1xf32>
    %47 = vector.broadcast %46 : vector<16x1xf32> to vector<16x16xf32>
    %48 = arith.mulf %43, %47 : vector<16x16xf32>
    %cst_23 = arith.constant dense<0.000000e+00> : vector<16x8xf32>
    %49 = tpu.matmul %48, %10, %cst_23 {dimension_numbers = #tpu.dot_dimension_numbers<[1], [0], [0], [1], [0, 0, 1, 1], [], []>} : vector<16x16xf32>, vector<16x8xf32>, vector<16x8xf32> -> vector<16x8xf32>
    %c0_24 = arith.constant 0 : index
    %c0_25 = arith.constant 0 : index
    %50 = vector.load %arg7[%c0_24, %c0_25] : memref<64x64xf32, #tpu.memory_space<vmem>>, vector<8x64xf32>
    %cst_26 = arith.constant dense<0.000000e+00> : vector<16x64xf32>
    %51 = tpu.matmul %49, %50, %cst_26 {dimension_numbers = #tpu.dot_dimension_numbers<[1], [0], [0], [1], [0, 0, 1, 1], [], []>} : vector<16x8xf32>, vector<8x64xf32>, vector<16x64xf32> -> vector<16x64xf32>
    %52 = arith.addf %7, %51 : vector<16x64xf32>
    %53 = vector.extract_strided_slice %6 {offsets = [0, 8], sizes = [16, 8], strides = [1, 1]} : vector<16x192xf32> to vector<16x8xf32>
    %54 = vector.extract_strided_slice %6 {offsets = [0, 72], sizes = [16, 8], strides = [1, 1]} : vector<16x192xf32> to vector<16x8xf32>
    %55 = vector.extract_strided_slice %6 {offsets = [0, 136], sizes = [16, 8], strides = [1, 1]} : vector<16x192xf32> to vector<16x8xf32>
    %56 = arith.mulf %53, %53 : vector<16x8xf32>
    %cst_27 = arith.constant dense<0.000000e+00> : vector<16xf32>
    %57 = vector.multi_reduction <add>, %56, %cst_27 [1] : vector<16x8xf32> to vector<16xf32>
    %58 = vector.shape_cast %57 : vector<16xf32> to vector<16x1xf32>
    %cst_28 = arith.constant 1.000000e-24 : f32
    %59 = vector.broadcast %cst_28 : f32 to vector<16x1xf32>
    %60 = arith.maximumf %58, %59 : vector<16x1xf32>
    %61 = math.rsqrt %60 : vector<16x1xf32>
    %62 = vector.broadcast %61 : vector<16x1xf32> to vector<16x8xf32>
    %63 = arith.mulf %53, %62 : vector<16x8xf32>
    %64 = arith.mulf %54, %54 : vector<16x8xf32>
    %cst_29 = arith.constant dense<0.000000e+00> : vector<16xf32>
    %65 = vector.multi_reduction <add>, %64, %cst_29 [1] : vector<16x8xf32> to vector<16xf32>
    %66 = vector.shape_cast %65 : vector<16xf32> to vector<16x1xf32>
    %cst_30 = arith.constant 1.000000e-24 : f32
    %67 = vector.broadcast %cst_30 : f32 to vector<16x1xf32>
    %68 = arith.maximumf %66, %67 : vector<16x1xf32>
    %69 = math.rsqrt %68 : vector<16x1xf32>
    %70 = vector.broadcast %69 : vector<16x1xf32> to vector<16x8xf32>
    %71 = arith.mulf %54, %70 : vector<16x8xf32>
    %c1 = arith.constant 1 : index
    %c0_31 = arith.constant 0 : index
    %c0_32 = arith.constant 0 : index
    %72 = vector.load %arg4[%c1, %c0_31, %c0_32] : memref<8x1x8xf32, #tpu.memory_space<vmem>>, vector<1x1x8xf32>
    %73 = vector.shape_cast %72 : vector<1x1x8xf32> to vector<1x8xf32>
    %74 = vector.broadcast %73 : vector<1x8xf32> to vector<16x8xf32>
    %75 = arith.mulf %63, %74 : vector<16x8xf32>
    %c1_33 = arith.constant 1 : index
    %c0_34 = arith.constant 0 : index
    %c0_35 = arith.constant 0 : index
    %76 = vector.load %arg5[%c1_33, %c0_34, %c0_35] : memref<8x1x8xf32, #tpu.memory_space<vmem>>, vector<1x1x8xf32>
    %77 = vector.shape_cast %76 : vector<1x1x8xf32> to vector<1x8xf32>
    %78 = vector.broadcast %77 : vector<1x8xf32> to vector<16x8xf32>
    %79 = arith.addf %75, %78 : vector<16x8xf32>
    %cst_36 = arith.constant dense<0.000000e+00> : vector<16x16xf32>
    %80 = tpu.matmul %79, %71, %cst_36 {dimension_numbers = #tpu.dot_dimension_numbers<[1], [1], [0], [0], [0, 0, 1, 0], [], []>} : vector<16x8xf32>, vector<16x8xf32>, vector<16x16xf32> -> vector<16x16xf32>
    %c1_37 = arith.constant 1 : index
    %c0_38 = arith.constant 0 : index
    %c0_39 = arith.constant 0 : index
    %81 = vector.load %arg6[%c1_37, %c0_38, %c0_39] : memref<8x16x16xf32, #tpu.memory_space<vmem>>, vector<1x16x16xf32>
    %82 = vector.shape_cast %81 : vector<1x16x16xf32> to vector<16x16xf32>
    %83 = arith.addf %80, %82 : vector<16x16xf32>
    %cst_40 = arith.constant dense<0xFF800000> : vector<16xf32>
    %84 = vector.multi_reduction <maximumf>, %83, %cst_40 [1] : vector<16x16xf32> to vector<16xf32>
    %85 = vector.shape_cast %84 : vector<16xf32> to vector<16x1xf32>
    %86 = vector.broadcast %85 : vector<16x1xf32> to vector<16x16xf32>
    %87 = arith.subf %83, %86 : vector<16x16xf32>
    %88 = math.exp %87 : vector<16x16xf32>
    %cst_41 = arith.constant dense<0.000000e+00> : vector<16xf32>
    %89 = vector.multi_reduction <add>, %88, %cst_41 [1] : vector<16x16xf32> to vector<16xf32>
    %90 = vector.shape_cast %89 : vector<16xf32> to vector<16x1xf32>
    %91 = tpu.reciprocal %90 : vector<16x1xf32> -> vector<16x1xf32>
    %92 = vector.broadcast %91 : vector<16x1xf32> to vector<16x16xf32>
    %93 = arith.mulf %88, %92 : vector<16x16xf32>
    %cst_42 = arith.constant dense<0.000000e+00> : vector<16x8xf32>
    %94 = tpu.matmul %93, %55, %cst_42 {dimension_numbers = #tpu.dot_dimension_numbers<[1], [0], [0], [1], [0, 0, 1, 1], [], []>} : vector<16x16xf32>, vector<16x8xf32>, vector<16x8xf32> -> vector<16x8xf32>
    %c8 = arith.constant 8 : index
    %c0_43 = arith.constant 0 : index
    %95 = vector.load %arg7[%c8, %c0_43] : memref<64x64xf32, #tpu.memory_space<vmem>>, vector<8x64xf32>
    %cst_44 = arith.constant dense<0.000000e+00> : vector<16x64xf32>
    %96 = tpu.matmul %94, %95, %cst_44 {dimension_numbers = #tpu.dot_dimension_numbers<[1], [0], [0], [1], [0, 0, 1, 1], [], []>} : vector<16x8xf32>, vector<8x64xf32>, vector<16x64xf32> -> vector<16x64xf32>
    %97 = arith.addf %52, %96 : vector<16x64xf32>
    %98 = vector.extract_strided_slice %6 {offsets = [0, 16], sizes = [16, 8], strides = [1, 1]} : vector<16x192xf32> to vector<16x8xf32>
    %99 = vector.extract_strided_slice %6 {offsets = [0, 80], sizes = [16, 8], strides = [1, 1]} : vector<16x192xf32> to vector<16x8xf32>
    %100 = vector.extract_strided_slice %6 {offsets = [0, 144], sizes = [16, 8], strides = [1, 1]} : vector<16x192xf32> to vector<16x8xf32>
    %101 = arith.mulf %98, %98 : vector<16x8xf32>
    %cst_45 = arith.constant dense<0.000000e+00> : vector<16xf32>
    %102 = vector.multi_reduction <add>, %101, %cst_45 [1] : vector<16x8xf32> to vector<16xf32>
    %103 = vector.shape_cast %102 : vector<16xf32> to vector<16x1xf32>
    %cst_46 = arith.constant 1.000000e-24 : f32
    %104 = vector.broadcast %cst_46 : f32 to vector<16x1xf32>
    %105 = arith.maximumf %103, %104 : vector<16x1xf32>
    %106 = math.rsqrt %105 : vector<16x1xf32>
    %107 = vector.broadcast %106 : vector<16x1xf32> to vector<16x8xf32>
    %108 = arith.mulf %98, %107 : vector<16x8xf32>
    %109 = arith.mulf %99, %99 : vector<16x8xf32>
    %cst_47 = arith.constant dense<0.000000e+00> : vector<16xf32>
    %110 = vector.multi_reduction <add>, %109, %cst_47 [1] : vector<16x8xf32> to vector<16xf32>
    %111 = vector.shape_cast %110 : vector<16xf32> to vector<16x1xf32>
    %cst_48 = arith.constant 1.000000e-24 : f32
    %112 = vector.broadcast %cst_48 : f32 to vector<16x1xf32>
    %113 = arith.maximumf %111, %112 : vector<16x1xf32>
    %114 = math.rsqrt %113 : vector<16x1xf32>
    %115 = vector.broadcast %114 : vector<16x1xf32> to vector<16x8xf32>
    %116 = arith.mulf %99, %115 : vector<16x8xf32>
    %c2 = arith.constant 2 : index
    %c0_49 = arith.constant 0 : index
    %c0_50 = arith.constant 0 : index
    %117 = vector.load %arg4[%c2, %c0_49, %c0_50] : memref<8x1x8xf32, #tpu.memory_space<vmem>>, vector<1x1x8xf32>
    %118 = vector.shape_cast %117 : vector<1x1x8xf32> to vector<1x8xf32>
    %119 = vector.broadcast %118 : vector<1x8xf32> to vector<16x8xf32>
    %120 = arith.mulf %108, %119 : vector<16x8xf32>
    %c2_51 = arith.constant 2 : index
    %c0_52 = arith.constant 0 : index
    %c0_53 = arith.constant 0 : index
    %121 = vector.load %arg5[%c2_51, %c0_52, %c0_53] : memref<8x1x8xf32, #tpu.memory_space<vmem>>, vector<1x1x8xf32>
    %122 = vector.shape_cast %121 : vector<1x1x8xf32> to vector<1x8xf32>
    %123 = vector.broadcast %122 : vector<1x8xf32> to vector<16x8xf32>
    %124 = arith.addf %120, %123 : vector<16x8xf32>
    %cst_54 = arith.constant dense<0.000000e+00> : vector<16x16xf32>
    %125 = tpu.matmul %124, %116, %cst_54 {dimension_numbers = #tpu.dot_dimension_numbers<[1], [1], [0], [0], [0, 0, 1, 0], [], []>} : vector<16x8xf32>, vector<16x8xf32>, vector<16x16xf32> -> vector<16x16xf32>
    %c2_55 = arith.constant 2 : index
    %c0_56 = arith.constant 0 : index
    %c0_57 = arith.constant 0 : index
    %126 = vector.load %arg6[%c2_55, %c0_56, %c0_57] : memref<8x16x16xf32, #tpu.memory_space<vmem>>, vector<1x16x16xf32>
    %127 = vector.shape_cast %126 : vector<1x16x16xf32> to vector<16x16xf32>
    %128 = arith.addf %125, %127 : vector<16x16xf32>
    %cst_58 = arith.constant dense<0xFF800000> : vector<16xf32>
    %129 = vector.multi_reduction <maximumf>, %128, %cst_58 [1] : vector<16x16xf32> to vector<16xf32>
    %130 = vector.shape_cast %129 : vector<16xf32> to vector<16x1xf32>
    %131 = vector.broadcast %130 : vector<16x1xf32> to vector<16x16xf32>
    %132 = arith.subf %128, %131 : vector<16x16xf32>
    %133 = math.exp %132 : vector<16x16xf32>
    %cst_59 = arith.constant dense<0.000000e+00> : vector<16xf32>
    %134 = vector.multi_reduction <add>, %133, %cst_59 [1] : vector<16x16xf32> to vector<16xf32>
    %135 = vector.shape_cast %134 : vector<16xf32> to vector<16x1xf32>
    %136 = tpu.reciprocal %135 : vector<16x1xf32> -> vector<16x1xf32>
    %137 = vector.broadcast %136 : vector<16x1xf32> to vector<16x16xf32>
    %138 = arith.mulf %133, %137 : vector<16x16xf32>
    %cst_60 = arith.constant dense<0.000000e+00> : vector<16x8xf32>
    %139 = tpu.matmul %138, %100, %cst_60 {dimension_numbers = #tpu.dot_dimension_numbers<[1], [0], [0], [1], [0, 0, 1, 1], [], []>} : vector<16x16xf32>, vector<16x8xf32>, vector<16x8xf32> -> vector<16x8xf32>
    %c16 = arith.constant 16 : index
    %c0_61 = arith.constant 0 : index
    %140 = vector.load %arg7[%c16, %c0_61] : memref<64x64xf32, #tpu.memory_space<vmem>>, vector<8x64xf32>
    %cst_62 = arith.constant dense<0.000000e+00> : vector<16x64xf32>
    %141 = tpu.matmul %139, %140, %cst_62 {dimension_numbers = #tpu.dot_dimension_numbers<[1], [0], [0], [1], [0, 0, 1, 1], [], []>} : vector<16x8xf32>, vector<8x64xf32>, vector<16x64xf32> -> vector<16x64xf32>
    %142 = arith.addf %97, %141 : vector<16x64xf32>
    %143 = vector.extract_strided_slice %6 {offsets = [0, 24], sizes = [16, 8], strides = [1, 1]} : vector<16x192xf32> to vector<16x8xf32>
    %144 = vector.extract_strided_slice %6 {offsets = [0, 88], sizes = [16, 8], strides = [1, 1]} : vector<16x192xf32> to vector<16x8xf32>
    %145 = vector.extract_strided_slice %6 {offsets = [0, 152], sizes = [16, 8], strides = [1, 1]} : vector<16x192xf32> to vector<16x8xf32>
    %146 = arith.mulf %143, %143 : vector<16x8xf32>
    %cst_63 = arith.constant dense<0.000000e+00> : vector<16xf32>
    %147 = vector.multi_reduction <add>, %146, %cst_63 [1] : vector<16x8xf32> to vector<16xf32>
    %148 = vector.shape_cast %147 : vector<16xf32> to vector<16x1xf32>
    %cst_64 = arith.constant 1.000000e-24 : f32
    %149 = vector.broadcast %cst_64 : f32 to vector<16x1xf32>
    %150 = arith.maximumf %148, %149 : vector<16x1xf32>
    %151 = math.rsqrt %150 : vector<16x1xf32>
    %152 = vector.broadcast %151 : vector<16x1xf32> to vector<16x8xf32>
    %153 = arith.mulf %143, %152 : vector<16x8xf32>
    %154 = arith.mulf %144, %144 : vector<16x8xf32>
    %cst_65 = arith.constant dense<0.000000e+00> : vector<16xf32>
    %155 = vector.multi_reduction <add>, %154, %cst_65 [1] : vector<16x8xf32> to vector<16xf32>
    %156 = vector.shape_cast %155 : vector<16xf32> to vector<16x1xf32>
    %cst_66 = arith.constant 1.000000e-24 : f32
    %157 = vector.broadcast %cst_66 : f32 to vector<16x1xf32>
    %158 = arith.maximumf %156, %157 : vector<16x1xf32>
    %159 = math.rsqrt %158 : vector<16x1xf32>
    %160 = vector.broadcast %159 : vector<16x1xf32> to vector<16x8xf32>
    %161 = arith.mulf %144, %160 : vector<16x8xf32>
    %c3 = arith.constant 3 : index
    %c0_67 = arith.constant 0 : index
    %c0_68 = arith.constant 0 : index
    %162 = vector.load %arg4[%c3, %c0_67, %c0_68] : memref<8x1x8xf32, #tpu.memory_space<vmem>>, vector<1x1x8xf32>
    %163 = vector.shape_cast %162 : vector<1x1x8xf32> to vector<1x8xf32>
    %164 = vector.broadcast %163 : vector<1x8xf32> to vector<16x8xf32>
    %165 = arith.mulf %153, %164 : vector<16x8xf32>
    %c3_69 = arith.constant 3 : index
    %c0_70 = arith.constant 0 : index
    %c0_71 = arith.constant 0 : index
    %166 = vector.load %arg5[%c3_69, %c0_70, %c0_71] : memref<8x1x8xf32, #tpu.memory_space<vmem>>, vector<1x1x8xf32>
    %167 = vector.shape_cast %166 : vector<1x1x8xf32> to vector<1x8xf32>
    %168 = vector.broadcast %167 : vector<1x8xf32> to vector<16x8xf32>
    %169 = arith.addf %165, %168 : vector<16x8xf32>
    %cst_72 = arith.constant dense<0.000000e+00> : vector<16x16xf32>
    %170 = tpu.matmul %169, %161, %cst_72 {dimension_numbers = #tpu.dot_dimension_numbers<[1], [1], [0], [0], [0, 0, 1, 0], [], []>} : vector<16x8xf32>, vector<16x8xf32>, vector<16x16xf32> -> vector<16x16xf32>
    %c3_73 = arith.constant 3 : index
    %c0_74 = arith.constant 0 : index
    %c0_75 = arith.constant 0 : index
    %171 = vector.load %arg6[%c3_73, %c0_74, %c0_75] : memref<8x16x16xf32, #tpu.memory_space<vmem>>, vector<1x16x16xf32>
    %172 = vector.shape_cast %171 : vector<1x16x16xf32> to vector<16x16xf32>
    %173 = arith.addf %170, %172 : vector<16x16xf32>
    %cst_76 = arith.constant dense<0xFF800000> : vector<16xf32>
    %174 = vector.multi_reduction <maximumf>, %173, %cst_76 [1] : vector<16x16xf32> to vector<16xf32>
    %175 = vector.shape_cast %174 : vector<16xf32> to vector<16x1xf32>
    %176 = vector.broadcast %175 : vector<16x1xf32> to vector<16x16xf32>
    %177 = arith.subf %173, %176 : vector<16x16xf32>
    %178 = math.exp %177 : vector<16x16xf32>
    %cst_77 = arith.constant dense<0.000000e+00> : vector<16xf32>
    %179 = vector.multi_reduction <add>, %178, %cst_77 [1] : vector<16x16xf32> to vector<16xf32>
    %180 = vector.shape_cast %179 : vector<16xf32> to vector<16x1xf32>
    %181 = tpu.reciprocal %180 : vector<16x1xf32> -> vector<16x1xf32>
    %182 = vector.broadcast %181 : vector<16x1xf32> to vector<16x16xf32>
    %183 = arith.mulf %178, %182 : vector<16x16xf32>
    %cst_78 = arith.constant dense<0.000000e+00> : vector<16x8xf32>
    %184 = tpu.matmul %183, %145, %cst_78 {dimension_numbers = #tpu.dot_dimension_numbers<[1], [0], [0], [1], [0, 0, 1, 1], [], []>} : vector<16x16xf32>, vector<16x8xf32>, vector<16x8xf32> -> vector<16x8xf32>
    %c24 = arith.constant 24 : index
    %c0_79 = arith.constant 0 : index
    %185 = vector.load %arg7[%c24, %c0_79] : memref<64x64xf32, #tpu.memory_space<vmem>>, vector<8x64xf32>
    %cst_80 = arith.constant dense<0.000000e+00> : vector<16x64xf32>
    %186 = tpu.matmul %184, %185, %cst_80 {dimension_numbers = #tpu.dot_dimension_numbers<[1], [0], [0], [1], [0, 0, 1, 1], [], []>} : vector<16x8xf32>, vector<8x64xf32>, vector<16x64xf32> -> vector<16x64xf32>
    %187 = arith.addf %142, %186 : vector<16x64xf32>
    %188 = vector.extract_strided_slice %6 {offsets = [0, 32], sizes = [16, 8], strides = [1, 1]} : vector<16x192xf32> to vector<16x8xf32>
    %189 = vector.extract_strided_slice %6 {offsets = [0, 96], sizes = [16, 8], strides = [1, 1]} : vector<16x192xf32> to vector<16x8xf32>
    %190 = vector.extract_strided_slice %6 {offsets = [0, 160], sizes = [16, 8], strides = [1, 1]} : vector<16x192xf32> to vector<16x8xf32>
    %191 = arith.mulf %188, %188 : vector<16x8xf32>
    %cst_81 = arith.constant dense<0.000000e+00> : vector<16xf32>
    %192 = vector.multi_reduction <add>, %191, %cst_81 [1] : vector<16x8xf32> to vector<16xf32>
    %193 = vector.shape_cast %192 : vector<16xf32> to vector<16x1xf32>
    %cst_82 = arith.constant 1.000000e-24 : f32
    %194 = vector.broadcast %cst_82 : f32 to vector<16x1xf32>
    %195 = arith.maximumf %193, %194 : vector<16x1xf32>
    %196 = math.rsqrt %195 : vector<16x1xf32>
    %197 = vector.broadcast %196 : vector<16x1xf32> to vector<16x8xf32>
    %198 = arith.mulf %188, %197 : vector<16x8xf32>
    %199 = arith.mulf %189, %189 : vector<16x8xf32>
    %cst_83 = arith.constant dense<0.000000e+00> : vector<16xf32>
    %200 = vector.multi_reduction <add>, %199, %cst_83 [1] : vector<16x8xf32> to vector<16xf32>
    %201 = vector.shape_cast %200 : vector<16xf32> to vector<16x1xf32>
    %cst_84 = arith.constant 1.000000e-24 : f32
    %202 = vector.broadcast %cst_84 : f32 to vector<16x1xf32>
    %203 = arith.maximumf %201, %202 : vector<16x1xf32>
    %204 = math.rsqrt %203 : vector<16x1xf32>
    %205 = vector.broadcast %204 : vector<16x1xf32> to vector<16x8xf32>
    %206 = arith.mulf %189, %205 : vector<16x8xf32>
    %c4 = arith.constant 4 : index
    %c0_85 = arith.constant 0 : index
    %c0_86 = arith.constant 0 : index
    %207 = vector.load %arg4[%c4, %c0_85, %c0_86] : memref<8x1x8xf32, #tpu.memory_space<vmem>>, vector<1x1x8xf32>
    %208 = vector.shape_cast %207 : vector<1x1x8xf32> to vector<1x8xf32>
    %209 = vector.broadcast %208 : vector<1x8xf32> to vector<16x8xf32>
    %210 = arith.mulf %198, %209 : vector<16x8xf32>
    %c4_87 = arith.constant 4 : index
    %c0_88 = arith.constant 0 : index
    %c0_89 = arith.constant 0 : index
    %211 = vector.load %arg5[%c4_87, %c0_88, %c0_89] : memref<8x1x8xf32, #tpu.memory_space<vmem>>, vector<1x1x8xf32>
    %212 = vector.shape_cast %211 : vector<1x1x8xf32> to vector<1x8xf32>
    %213 = vector.broadcast %212 : vector<1x8xf32> to vector<16x8xf32>
    %214 = arith.addf %210, %213 : vector<16x8xf32>
    %cst_90 = arith.constant dense<0.000000e+00> : vector<16x16xf32>
    %215 = tpu.matmul %214, %206, %cst_90 {dimension_numbers = #tpu.dot_dimension_numbers<[1], [1], [0], [0], [0, 0, 1, 0], [], []>} : vector<16x8xf32>, vector<16x8xf32>, vector<16x16xf32> -> vector<16x16xf32>
    %c4_91 = arith.constant 4 : index
    %c0_92 = arith.constant 0 : index
    %c0_93 = arith.constant 0 : index
    %216 = vector.load %arg6[%c4_91, %c0_92, %c0_93] : memref<8x16x16xf32, #tpu.memory_space<vmem>>, vector<1x16x16xf32>
    %217 = vector.shape_cast %216 : vector<1x16x16xf32> to vector<16x16xf32>
    %218 = arith.addf %215, %217 : vector<16x16xf32>
    %cst_94 = arith.constant dense<0xFF800000> : vector<16xf32>
    %219 = vector.multi_reduction <maximumf>, %218, %cst_94 [1] : vector<16x16xf32> to vector<16xf32>
    %220 = vector.shape_cast %219 : vector<16xf32> to vector<16x1xf32>
    %221 = vector.broadcast %220 : vector<16x1xf32> to vector<16x16xf32>
    %222 = arith.subf %218, %221 : vector<16x16xf32>
    %223 = math.exp %222 : vector<16x16xf32>
    %cst_95 = arith.constant dense<0.000000e+00> : vector<16xf32>
    %224 = vector.multi_reduction <add>, %223, %cst_95 [1] : vector<16x16xf32> to vector<16xf32>
    %225 = vector.shape_cast %224 : vector<16xf32> to vector<16x1xf32>
    %226 = tpu.reciprocal %225 : vector<16x1xf32> -> vector<16x1xf32>
    %227 = vector.broadcast %226 : vector<16x1xf32> to vector<16x16xf32>
    %228 = arith.mulf %223, %227 : vector<16x16xf32>
    %cst_96 = arith.constant dense<0.000000e+00> : vector<16x8xf32>
    %229 = tpu.matmul %228, %190, %cst_96 {dimension_numbers = #tpu.dot_dimension_numbers<[1], [0], [0], [1], [0, 0, 1, 1], [], []>} : vector<16x16xf32>, vector<16x8xf32>, vector<16x8xf32> -> vector<16x8xf32>
    %c32 = arith.constant 32 : index
    %c0_97 = arith.constant 0 : index
    %230 = vector.load %arg7[%c32, %c0_97] : memref<64x64xf32, #tpu.memory_space<vmem>>, vector<8x64xf32>
    %cst_98 = arith.constant dense<0.000000e+00> : vector<16x64xf32>
    %231 = tpu.matmul %229, %230, %cst_98 {dimension_numbers = #tpu.dot_dimension_numbers<[1], [0], [0], [1], [0, 0, 1, 1], [], []>} : vector<16x8xf32>, vector<8x64xf32>, vector<16x64xf32> -> vector<16x64xf32>
    %232 = arith.addf %187, %231 : vector<16x64xf32>
    %233 = vector.extract_strided_slice %6 {offsets = [0, 40], sizes = [16, 8], strides = [1, 1]} : vector<16x192xf32> to vector<16x8xf32>
    %234 = vector.extract_strided_slice %6 {offsets = [0, 104], sizes = [16, 8], strides = [1, 1]} : vector<16x192xf32> to vector<16x8xf32>
    %235 = vector.extract_strided_slice %6 {offsets = [0, 168], sizes = [16, 8], strides = [1, 1]} : vector<16x192xf32> to vector<16x8xf32>
    %236 = arith.mulf %233, %233 : vector<16x8xf32>
    %cst_99 = arith.constant dense<0.000000e+00> : vector<16xf32>
    %237 = vector.multi_reduction <add>, %236, %cst_99 [1] : vector<16x8xf32> to vector<16xf32>
    %238 = vector.shape_cast %237 : vector<16xf32> to vector<16x1xf32>
    %cst_100 = arith.constant 1.000000e-24 : f32
    %239 = vector.broadcast %cst_100 : f32 to vector<16x1xf32>
    %240 = arith.maximumf %238, %239 : vector<16x1xf32>
    %241 = math.rsqrt %240 : vector<16x1xf32>
    %242 = vector.broadcast %241 : vector<16x1xf32> to vector<16x8xf32>
    %243 = arith.mulf %233, %242 : vector<16x8xf32>
    %244 = arith.mulf %234, %234 : vector<16x8xf32>
    %cst_101 = arith.constant dense<0.000000e+00> : vector<16xf32>
    %245 = vector.multi_reduction <add>, %244, %cst_101 [1] : vector<16x8xf32> to vector<16xf32>
    %246 = vector.shape_cast %245 : vector<16xf32> to vector<16x1xf32>
    %cst_102 = arith.constant 1.000000e-24 : f32
    %247 = vector.broadcast %cst_102 : f32 to vector<16x1xf32>
    %248 = arith.maximumf %246, %247 : vector<16x1xf32>
    %249 = math.rsqrt %248 : vector<16x1xf32>
    %250 = vector.broadcast %249 : vector<16x1xf32> to vector<16x8xf32>
    %251 = arith.mulf %234, %250 : vector<16x8xf32>
    %c5 = arith.constant 5 : index
    %c0_103 = arith.constant 0 : index
    %c0_104 = arith.constant 0 : index
    %252 = vector.load %arg4[%c5, %c0_103, %c0_104] : memref<8x1x8xf32, #tpu.memory_space<vmem>>, vector<1x1x8xf32>
    %253 = vector.shape_cast %252 : vector<1x1x8xf32> to vector<1x8xf32>
    %254 = vector.broadcast %253 : vector<1x8xf32> to vector<16x8xf32>
    %255 = arith.mulf %243, %254 : vector<16x8xf32>
    %c5_105 = arith.constant 5 : index
    %c0_106 = arith.constant 0 : index
    %c0_107 = arith.constant 0 : index
    %256 = vector.load %arg5[%c5_105, %c0_106, %c0_107] : memref<8x1x8xf32, #tpu.memory_space<vmem>>, vector<1x1x8xf32>
    %257 = vector.shape_cast %256 : vector<1x1x8xf32> to vector<1x8xf32>
    %258 = vector.broadcast %257 : vector<1x8xf32> to vector<16x8xf32>
    %259 = arith.addf %255, %258 : vector<16x8xf32>
    %cst_108 = arith.constant dense<0.000000e+00> : vector<16x16xf32>
    %260 = tpu.matmul %259, %251, %cst_108 {dimension_numbers = #tpu.dot_dimension_numbers<[1], [1], [0], [0], [0, 0, 1, 0], [], []>} : vector<16x8xf32>, vector<16x8xf32>, vector<16x16xf32> -> vector<16x16xf32>
    %c5_109 = arith.constant 5 : index
    %c0_110 = arith.constant 0 : index
    %c0_111 = arith.constant 0 : index
    %261 = vector.load %arg6[%c5_109, %c0_110, %c0_111] : memref<8x16x16xf32, #tpu.memory_space<vmem>>, vector<1x16x16xf32>
    %262 = vector.shape_cast %261 : vector<1x16x16xf32> to vector<16x16xf32>
    %263 = arith.addf %260, %262 : vector<16x16xf32>
    %cst_112 = arith.constant dense<0xFF800000> : vector<16xf32>
    %264 = vector.multi_reduction <maximumf>, %263, %cst_112 [1] : vector<16x16xf32> to vector<16xf32>
    %265 = vector.shape_cast %264 : vector<16xf32> to vector<16x1xf32>
    %266 = vector.broadcast %265 : vector<16x1xf32> to vector<16x16xf32>
    %267 = arith.subf %263, %266 : vector<16x16xf32>
    %268 = math.exp %267 : vector<16x16xf32>
    %cst_113 = arith.constant dense<0.000000e+00> : vector<16xf32>
    %269 = vector.multi_reduction <add>, %268, %cst_113 [1] : vector<16x16xf32> to vector<16xf32>
    %270 = vector.shape_cast %269 : vector<16xf32> to vector<16x1xf32>
    %271 = tpu.reciprocal %270 : vector<16x1xf32> -> vector<16x1xf32>
    %272 = vector.broadcast %271 : vector<16x1xf32> to vector<16x16xf32>
    %273 = arith.mulf %268, %272 : vector<16x16xf32>
    %cst_114 = arith.constant dense<0.000000e+00> : vector<16x8xf32>
    %274 = tpu.matmul %273, %235, %cst_114 {dimension_numbers = #tpu.dot_dimension_numbers<[1], [0], [0], [1], [0, 0, 1, 1], [], []>} : vector<16x16xf32>, vector<16x8xf32>, vector<16x8xf32> -> vector<16x8xf32>
    %c40 = arith.constant 40 : index
    %c0_115 = arith.constant 0 : index
    %275 = vector.load %arg7[%c40, %c0_115] : memref<64x64xf32, #tpu.memory_space<vmem>>, vector<8x64xf32>
    %cst_116 = arith.constant dense<0.000000e+00> : vector<16x64xf32>
    %276 = tpu.matmul %274, %275, %cst_116 {dimension_numbers = #tpu.dot_dimension_numbers<[1], [0], [0], [1], [0, 0, 1, 1], [], []>} : vector<16x8xf32>, vector<8x64xf32>, vector<16x64xf32> -> vector<16x64xf32>
    %277 = arith.addf %232, %276 : vector<16x64xf32>
    %278 = vector.extract_strided_slice %6 {offsets = [0, 48], sizes = [16, 8], strides = [1, 1]} : vector<16x192xf32> to vector<16x8xf32>
    %279 = vector.extract_strided_slice %6 {offsets = [0, 112], sizes = [16, 8], strides = [1, 1]} : vector<16x192xf32> to vector<16x8xf32>
    %280 = vector.extract_strided_slice %6 {offsets = [0, 176], sizes = [16, 8], strides = [1, 1]} : vector<16x192xf32> to vector<16x8xf32>
    %281 = arith.mulf %278, %278 : vector<16x8xf32>
    %cst_117 = arith.constant dense<0.000000e+00> : vector<16xf32>
    %282 = vector.multi_reduction <add>, %281, %cst_117 [1] : vector<16x8xf32> to vector<16xf32>
    %283 = vector.shape_cast %282 : vector<16xf32> to vector<16x1xf32>
    %cst_118 = arith.constant 1.000000e-24 : f32
    %284 = vector.broadcast %cst_118 : f32 to vector<16x1xf32>
    %285 = arith.maximumf %283, %284 : vector<16x1xf32>
    %286 = math.rsqrt %285 : vector<16x1xf32>
    %287 = vector.broadcast %286 : vector<16x1xf32> to vector<16x8xf32>
    %288 = arith.mulf %278, %287 : vector<16x8xf32>
    %289 = arith.mulf %279, %279 : vector<16x8xf32>
    %cst_119 = arith.constant dense<0.000000e+00> : vector<16xf32>
    %290 = vector.multi_reduction <add>, %289, %cst_119 [1] : vector<16x8xf32> to vector<16xf32>
    %291 = vector.shape_cast %290 : vector<16xf32> to vector<16x1xf32>
    %cst_120 = arith.constant 1.000000e-24 : f32
    %292 = vector.broadcast %cst_120 : f32 to vector<16x1xf32>
    %293 = arith.maximumf %291, %292 : vector<16x1xf32>
    %294 = math.rsqrt %293 : vector<16x1xf32>
    %295 = vector.broadcast %294 : vector<16x1xf32> to vector<16x8xf32>
    %296 = arith.mulf %279, %295 : vector<16x8xf32>
    %c6 = arith.constant 6 : index
    %c0_121 = arith.constant 0 : index
    %c0_122 = arith.constant 0 : index
    %297 = vector.load %arg4[%c6, %c0_121, %c0_122] : memref<8x1x8xf32, #tpu.memory_space<vmem>>, vector<1x1x8xf32>
    %298 = vector.shape_cast %297 : vector<1x1x8xf32> to vector<1x8xf32>
    %299 = vector.broadcast %298 : vector<1x8xf32> to vector<16x8xf32>
    %300 = arith.mulf %288, %299 : vector<16x8xf32>
    %c6_123 = arith.constant 6 : index
    %c0_124 = arith.constant 0 : index
    %c0_125 = arith.constant 0 : index
    %301 = vector.load %arg5[%c6_123, %c0_124, %c0_125] : memref<8x1x8xf32, #tpu.memory_space<vmem>>, vector<1x1x8xf32>
    %302 = vector.shape_cast %301 : vector<1x1x8xf32> to vector<1x8xf32>
    %303 = vector.broadcast %302 : vector<1x8xf32> to vector<16x8xf32>
    %304 = arith.addf %300, %303 : vector<16x8xf32>
    %cst_126 = arith.constant dense<0.000000e+00> : vector<16x16xf32>
    %305 = tpu.matmul %304, %296, %cst_126 {dimension_numbers = #tpu.dot_dimension_numbers<[1], [1], [0], [0], [0, 0, 1, 0], [], []>} : vector<16x8xf32>, vector<16x8xf32>, vector<16x16xf32> -> vector<16x16xf32>
    %c6_127 = arith.constant 6 : index
    %c0_128 = arith.constant 0 : index
    %c0_129 = arith.constant 0 : index
    %306 = vector.load %arg6[%c6_127, %c0_128, %c0_129] : memref<8x16x16xf32, #tpu.memory_space<vmem>>, vector<1x16x16xf32>
    %307 = vector.shape_cast %306 : vector<1x16x16xf32> to vector<16x16xf32>
    %308 = arith.addf %305, %307 : vector<16x16xf32>
    %cst_130 = arith.constant dense<0xFF800000> : vector<16xf32>
    %309 = vector.multi_reduction <maximumf>, %308, %cst_130 [1] : vector<16x16xf32> to vector<16xf32>
    %310 = vector.shape_cast %309 : vector<16xf32> to vector<16x1xf32>
    %311 = vector.broadcast %310 : vector<16x1xf32> to vector<16x16xf32>
    %312 = arith.subf %308, %311 : vector<16x16xf32>
    %313 = math.exp %312 : vector<16x16xf32>
    %cst_131 = arith.constant dense<0.000000e+00> : vector<16xf32>
    %314 = vector.multi_reduction <add>, %313, %cst_131 [1] : vector<16x16xf32> to vector<16xf32>
    %315 = vector.shape_cast %314 : vector<16xf32> to vector<16x1xf32>
    %316 = tpu.reciprocal %315 : vector<16x1xf32> -> vector<16x1xf32>
    %317 = vector.broadcast %316 : vector<16x1xf32> to vector<16x16xf32>
    %318 = arith.mulf %313, %317 : vector<16x16xf32>
    %cst_132 = arith.constant dense<0.000000e+00> : vector<16x8xf32>
    %319 = tpu.matmul %318, %280, %cst_132 {dimension_numbers = #tpu.dot_dimension_numbers<[1], [0], [0], [1], [0, 0, 1, 1], [], []>} : vector<16x16xf32>, vector<16x8xf32>, vector<16x8xf32> -> vector<16x8xf32>
    %c48 = arith.constant 48 : index
    %c0_133 = arith.constant 0 : index
    %320 = vector.load %arg7[%c48, %c0_133] : memref<64x64xf32, #tpu.memory_space<vmem>>, vector<8x64xf32>
    %cst_134 = arith.constant dense<0.000000e+00> : vector<16x64xf32>
    %321 = tpu.matmul %319, %320, %cst_134 {dimension_numbers = #tpu.dot_dimension_numbers<[1], [0], [0], [1], [0, 0, 1, 1], [], []>} : vector<16x8xf32>, vector<8x64xf32>, vector<16x64xf32> -> vector<16x64xf32>
    %322 = arith.addf %277, %321 : vector<16x64xf32>
    %323 = vector.extract_strided_slice %6 {offsets = [0, 56], sizes = [16, 8], strides = [1, 1]} : vector<16x192xf32> to vector<16x8xf32>
    %324 = vector.extract_strided_slice %6 {offsets = [0, 120], sizes = [16, 8], strides = [1, 1]} : vector<16x192xf32> to vector<16x8xf32>
    %325 = vector.extract_strided_slice %6 {offsets = [0, 184], sizes = [16, 8], strides = [1, 1]} : vector<16x192xf32> to vector<16x8xf32>
    %326 = arith.mulf %323, %323 : vector<16x8xf32>
    %cst_135 = arith.constant dense<0.000000e+00> : vector<16xf32>
    %327 = vector.multi_reduction <add>, %326, %cst_135 [1] : vector<16x8xf32> to vector<16xf32>
    %328 = vector.shape_cast %327 : vector<16xf32> to vector<16x1xf32>
    %cst_136 = arith.constant 1.000000e-24 : f32
    %329 = vector.broadcast %cst_136 : f32 to vector<16x1xf32>
    %330 = arith.maximumf %328, %329 : vector<16x1xf32>
    %331 = math.rsqrt %330 : vector<16x1xf32>
    %332 = vector.broadcast %331 : vector<16x1xf32> to vector<16x8xf32>
    %333 = arith.mulf %323, %332 : vector<16x8xf32>
    %334 = arith.mulf %324, %324 : vector<16x8xf32>
    %cst_137 = arith.constant dense<0.000000e+00> : vector<16xf32>
    %335 = vector.multi_reduction <add>, %334, %cst_137 [1] : vector<16x8xf32> to vector<16xf32>
    %336 = vector.shape_cast %335 : vector<16xf32> to vector<16x1xf32>
    %cst_138 = arith.constant 1.000000e-24 : f32
    %337 = vector.broadcast %cst_138 : f32 to vector<16x1xf32>
    %338 = arith.maximumf %336, %337 : vector<16x1xf32>
    %339 = math.rsqrt %338 : vector<16x1xf32>
    %340 = vector.broadcast %339 : vector<16x1xf32> to vector<16x8xf32>
    %341 = arith.mulf %324, %340 : vector<16x8xf32>
    %c7 = arith.constant 7 : index
    %c0_139 = arith.constant 0 : index
    %c0_140 = arith.constant 0 : index
    %342 = vector.load %arg4[%c7, %c0_139, %c0_140] : memref<8x1x8xf32, #tpu.memory_space<vmem>>, vector<1x1x8xf32>
    %343 = vector.shape_cast %342 : vector<1x1x8xf32> to vector<1x8xf32>
    %344 = vector.broadcast %343 : vector<1x8xf32> to vector<16x8xf32>
    %345 = arith.mulf %333, %344 : vector<16x8xf32>
    %c7_141 = arith.constant 7 : index
    %c0_142 = arith.constant 0 : index
    %c0_143 = arith.constant 0 : index
    %346 = vector.load %arg5[%c7_141, %c0_142, %c0_143] : memref<8x1x8xf32, #tpu.memory_space<vmem>>, vector<1x1x8xf32>
    %347 = vector.shape_cast %346 : vector<1x1x8xf32> to vector<1x8xf32>
    %348 = vector.broadcast %347 : vector<1x8xf32> to vector<16x8xf32>
    %349 = arith.addf %345, %348 : vector<16x8xf32>
    %cst_144 = arith.constant dense<0.000000e+00> : vector<16x16xf32>
    %350 = tpu.matmul %349, %341, %cst_144 {dimension_numbers = #tpu.dot_dimension_numbers<[1], [1], [0], [0], [0, 0, 1, 0], [], []>} : vector<16x8xf32>, vector<16x8xf32>, vector<16x16xf32> -> vector<16x16xf32>
    %c7_145 = arith.constant 7 : index
    %c0_146 = arith.constant 0 : index
    %c0_147 = arith.constant 0 : index
    %351 = vector.load %arg6[%c7_145, %c0_146, %c0_147] : memref<8x16x16xf32, #tpu.memory_space<vmem>>, vector<1x16x16xf32>
    %352 = vector.shape_cast %351 : vector<1x16x16xf32> to vector<16x16xf32>
    %353 = arith.addf %350, %352 : vector<16x16xf32>
    %cst_148 = arith.constant dense<0xFF800000> : vector<16xf32>
    %354 = vector.multi_reduction <maximumf>, %353, %cst_148 [1] : vector<16x16xf32> to vector<16xf32>
    %355 = vector.shape_cast %354 : vector<16xf32> to vector<16x1xf32>
    %356 = vector.broadcast %355 : vector<16x1xf32> to vector<16x16xf32>
    %357 = arith.subf %353, %356 : vector<16x16xf32>
    %358 = math.exp %357 : vector<16x16xf32>
    %cst_149 = arith.constant dense<0.000000e+00> : vector<16xf32>
    %359 = vector.multi_reduction <add>, %358, %cst_149 [1] : vector<16x16xf32> to vector<16xf32>
    %360 = vector.shape_cast %359 : vector<16xf32> to vector<16x1xf32>
    %361 = tpu.reciprocal %360 : vector<16x1xf32> -> vector<16x1xf32>
    %362 = vector.broadcast %361 : vector<16x1xf32> to vector<16x16xf32>
    %363 = arith.mulf %358, %362 : vector<16x16xf32>
    %cst_150 = arith.constant dense<0.000000e+00> : vector<16x8xf32>
    %364 = tpu.matmul %363, %325, %cst_150 {dimension_numbers = #tpu.dot_dimension_numbers<[1], [0], [0], [1], [0, 0, 1, 1], [], []>} : vector<16x16xf32>, vector<16x8xf32>, vector<16x8xf32> -> vector<16x8xf32>
    %c56 = arith.constant 56 : index
    %c0_151 = arith.constant 0 : index
    %365 = vector.load %arg7[%c56, %c0_151] : memref<64x64xf32, #tpu.memory_space<vmem>>, vector<8x64xf32>
    %cst_152 = arith.constant dense<0.000000e+00> : vector<16x64xf32>
    %366 = tpu.matmul %364, %365, %cst_152 {dimension_numbers = #tpu.dot_dimension_numbers<[1], [0], [0], [1], [0, 0, 1, 1], [], []>} : vector<16x8xf32>, vector<8x64xf32>, vector<16x64xf32> -> vector<16x64xf32>
    %367 = arith.addf %322, %366 : vector<16x64xf32>
    %c0_153 = arith.constant 0 : index
    %c0_154 = arith.constant 0 : index
    %368 = vector.load %arg8[%c0_153, %c0_154] : memref<1x64xf32, #tpu.memory_space<vmem>>, vector<1x64xf32>
    %369 = vector.broadcast %368 : vector<1x64xf32> to vector<16x64xf32>
    %370 = arith.addf %367, %369 : vector<16x64xf32>
    %c0_155 = arith.constant 0 : index
    %c0_156 = arith.constant 0 : index
    %c0_157 = arith.constant 0 : index
    %371 = vector.load %arg9[%c0_155, %c0_156, %c0_157] : memref<1x16x64xf32, #tpu.memory_space<vmem>>, vector<1x16x64xf32>
    %372 = vector.shape_cast %371 : vector<1x16x64xf32> to vector<16x64xf32>
    %373 = vector.shape_cast %370 : vector<16x64xf32> to vector<1x16x64xf32>
    tpu.vector_store %arg9[%c0_155, %c0_156, %c0_157], %373 {strides = array<i32>} : memref<1x16x64xf32, #tpu.memory_space<vmem>>, vector<1x16x64xf32>,
    return
  }
  func.func @transform_0(%arg0: i32) -> (i32, i32, i32) {
    %c0_i32 = arith.constant 0 : i32
    %c0_i32_0 = arith.constant 0 : i32
    %c0_i32_1 = arith.constant 0 : i32
    return %arg0, %c0_i32, %c0_i32_0 : i32, i32, i32
  }
  func.func @transform_1(%arg0: i32) -> (i32, i32) {
    %c0_i32 = arith.constant 0 : i32
    %c0_i32_0 = arith.constant 0 : i32
    %c0_i32_1 = arith.constant 0 : i32
    return %c0_i32, %c0_i32_0 : i32, i32
  }
  func.func @transform_2(%arg0: i32) -> (i32, i32) {
    %c0_i32 = arith.constant 0 : i32
    %c0_i32_0 = arith.constant 0 : i32
    %c0_i32_1 = arith.constant 0 : i32
    return %c0_i32, %c0_i32_0 : i32, i32
  }
  func.func @transform_3(%arg0: i32) -> (i32, i32, i32) {
    %c0_i32 = arith.constant 0 : i32
    %c0_i32_0 = arith.constant 0 : i32
    %c0_i32_1 = arith.constant 0 : i32
    %c0_i32_2 = arith.constant 0 : i32
    return %c0_i32, %c0_i32_0, %c0_i32_1 : i32, i32, i32
  }
  func.func @transform_4(%arg0: i32) -> (i32, i32, i32) {
    %c0_i32 = arith.constant 0 : i32
    %c0_i32_0 = arith.constant 0 : i32
    %c0_i32_1 = arith.constant 0 : i32
    %c0_i32_2 = arith.constant 0 : i32
    return %c0_i32, %c0_i32_0, %c0_i32_1 : i32, i32, i32
  }
  func.func @transform_5(%arg0: i32) -> (i32, i32, i32) {
    %c0_i32 = arith.constant 0 : i32
    %c0_i32_0 = arith.constant 0 : i32
    %c0_i32_1 = arith.constant 0 : i32
    %c0_i32_2 = arith.constant 0 : i32
    return %c0_i32, %c0_i32_0, %c0_i32_1 : i32, i32, i32
  }
  func.func @transform_6(%arg0: i32) -> (i32, i32) {
    %c0_i32 = arith.constant 0 : i32
    %c0_i32_0 = arith.constant 0 : i32
    %c0_i32_1 = arith.constant 0 : i32
    return %c0_i32, %c0_i32_0 : i32, i32
  }
  func.func @transform_7(%arg0: i32) -> (i32, i32) {
    %c0_i32 = arith.constant 0 : i32
    %c0_i32_0 = arith.constant 0 : i32
    %c0_i32_1 = arith.constant 0 : i32
    return %c0_i32, %c0_i32_0 : i32, i32
  }
  func.func @transform_8(%arg0: i32) -> (i32, i32, i32) {
    %c0_i32 = arith.constant 0 : i32
    %c0_i32_0 = arith.constant 0 : i32
    %c0_i32_1 = arith.constant 0 : i32
    return %arg0, %c0_i32, %c0_i32_0 : i32, i32, i32
  }
}

</mosaic_0001>

<llo_original>
// kernel: attention_forward.2
$region0: #{attention_forward.2}
  #allocation0 [shape = 'u32[]', space=smem, size = 0x4, offset = 0x4, fixed_abs, tag = 'smem constant byte address 0x4 - core index']
  #allocation1 [shape = 'u32[72,128]{1,0:T(1,128)}', space=vmem, size = 0x9000, scoped, tag = 'internal scratch']
  %s0 = inlined_call_operand.vmem [shape: f32[49,3], index: 0, kind: input, shape index: {}]
  %s1 = inlined_call_operand.vmem [shape: f32[3,512], index: 1, kind: input, shape index: {}]
  %s2 = inlined_call_operand.vmem [shape: f32[1,512], index: 2, kind: input, shape index: {}]
  %s3 = inlined_call_operand.vmem [shape: f32[512,8], index: 3, kind: input, shape index: {}]
  %s4 = inlined_call_operand.vmem [shape: f32[1,8], index: 4, kind: input, shape index: {}]
  %s5 = inlined_call_operand.vmem [shape: f32[49,8], index: 5, kind: output, shape index: {}]
  %s6 = sld [smem:[#allocation0]]
  $region30: #{attention_forward.2} parent=0
    _
  %s8 = ssub.s32 1, %s6
  %s9 = scalar_select 0, %s8, %s6
  // Predicated region
  $region2: #{attention_forward.2} parent=0 // pred_check
    _
  $region3: #{attention_forward.2} parent=0 // pred_check_branch
    %11 = sbr.rel (0) target = $region5
  $region4: #{attention_forward.2} parent=0 // pred_region
    _
  $region5: #{attention_forward.2} parent=0 // pred_fallthru
    _
  // Predicated region
  $region6: #{attention_forward.2} parent=0 // pred_check
    _
  $region7: #{attention_forward.2} parent=0 // pred_check_branch
    %13 = sbr.rel (0) target = $region9
  $region8: #{attention_forward.2} parent=0 // pred_region
    _
  $region9: #{attention_forward.2} parent=0 // pred_fallthru
    _
  // Predicated region
  $region10: #{attention_forward.2} parent=0 // pred_check
    _
  $region11: #{attention_forward.2} parent=0 // pred_check_branch
    %15 = sbr.rel (0) target = $region13
  $region12: #{attention_forward.2} parent=0 // pred_region
    _
  $region13: #{attention_forward.2} parent=0 // pred_fallthru
    _
  // Predicated region
  $region14: #{attention_forward.2} parent=0 // pred_check
    _
  $region15: #{attention_forward.2} parent=0 // pred_check_branch
    %17 = sbr.rel (0) target = $region17
  $region16: #{attention_forward.2} parent=0 // pred_region
    _
  $region17: #{attention_forward.2} parent=0 // pred_fallthru
    _
  // Predicated region
  $region18: #{attention_forward.2} parent=0 // pred_check
    _
  $region19: #{attention_forward.2} parent=0 // pred_check_branch
    %19 = sbr.rel (0) target = $region21
  $region20: #{attention_forward.2} parent=0 // pred_region
    _
  $region21: #{attention_forward.2} parent=0 // pred_fallthru
    _
  %v20 = vld [vmem:[%s0] sm:$0xff]
  %v21 = vld [vmem:[%s0 + $0x8] sm:$0xff]
  %v22 = vld [vmem:[%s0 + $0x10] sm:$0xff]
  %v23 = vld [vmem:[%s0 + $0x18] sm:$0xff]
  %v24 = vld [vmem:[%s0 + $0x20] sm:$0xff]
  %v25 = vld [vmem:[%s0 + $0x28] sm:$0xff]
  %v26 = vld [vmem:[%s0 + $0x30] sm:$0x1]
  %v27 = vld [vmem:[%s1] sm:$0x77]
  %v28 = vld [vmem:[%s1 + $0x8] sm:$0x77]
  %v29 = vld [vmem:[%s2] sm:$0xf]
  %v31 = vperm.slane %v29, 0
  %v32 = vperm.slane %v29, 1
  %v33 = vperm.slane %v29, 2
  %v34 = vperm.slane %v29, 3
  %41 = vst [vmem:[#allocation1] ss:$2 sm:$0xff] %v27
  %s42 = scalar_lea.vmem [#allocation1], 16
  %43 = vst [vmem:[%s42] ss:$2 sm:$0xff] %v28
  %v44 = vld.sshfl [vmem:[#allocation1] sm:$0xff pattern:$0x75316420]
  %v45 = vld.sshfl [vmem:[#allocation1 + $0x8] sm:$0xff pattern:$0x75316420]
  %v46 = vld.sshfl [vmem:[#allocation1 + $0x10] sm:$0xff pattern:$0x75316420]
  %v47 = vld.sshfl [vmem:[#allocation1 + $0x18] sm:$0xff pattern:$0x75316420]
  %vm48 = vcmask 23552
  %v50 = vsel %vm48, %v20, 0
  %v53 = vsel %vm48, %v21, 0
  %v56 = vsel %vm48, %v22, 0
  %v59 = vsel %vm48, %v23, 0
  %v62 = vsel %vm48, %v24, 0
  %v65 = vsel %vm48, %v25, 0
  %v68 = vsel %vm48, %v26, 0
  %vm70 = vcmask 1042432
  %v71 = vsel %vm70, %v44, 0
  %v73 = vsel %vm70, %v45, 0
  %v75 = vsel %vm70, %v46, 0
  %v77 = vsel %vm70, %v47, 0
  %79 = vmatpush.msra.mxu0 0.0
  %80 = vmatpush.msra.mxu0 0.0
  %81 = vmatpush.msra.mxu0 0.0
  %82 = vmatpush.msra.mxu0 0.0
  %83 = vmatpush.msra.mxu0 0.0
  %84 = vmatpush.msra.mxu0 0.0
  %85 = vmatpush.msra.mxu0 0.0
  %86 = vmatpush.msra.mxu0 0.0
  %87 = vmatpush.msra.mxu0 0.0
  %88 = vmatpush.msra.mxu0 0.0
  %89 = vmatpush.msra.mxu0 0.0
  %90 = vmatpush.msra.mxu0 0.0
  %91 = vmatpush.msra.mxu0 0.0
  %92 = vmatpush.msra.mxu0 0.0
  %93 = vmatpush.msra.mxu0 0.0
  %94 = vmatpush.msra.mxu0 %v71
  %95 = vmatmul.f32.gmra.mxu0 %v50
  %v96 = vpop.f32.mrf.mxu0
  %v97 = vadd.f32 %v31, %v96
  %98 = vmatmul.f32.gmra.mxu0 %v53
  %v99 = vpop.f32.mrf.mxu0
  %v100 = vadd.f32 %v31, %v99
  %101 = vmatmul.f32.gmra.mxu0 %v56
  %v102 = vpop.f32.mrf.mxu0
  %v103 = vadd.f32 %v31, %v102
  %104 = vmatmul.f32.gmra.mxu0 %v59
  %v105 = vpop.f32.mrf.mxu0
  %v106 = vadd.f32 %v31, %v105
  %107 = vmatmul.f32.gmra.mxu0 %v62
  %v108 = vpop.f32.mrf.mxu0
  %v109 = vadd.f32 %v31, %v108
  %110 = vmatmul.f32.gmra.mxu0 %v65
  %v111 = vpop.f32.mrf.mxu0
  %v112 = vadd.f32 %v31, %v111
  %113 = vmatmul.f32.gmra.mxu0 %v68
  %v114 = vpop.f32.mrf.mxu0
  %v115 = vadd.f32 %v31, %v114
  %116 = vdwg.mxu0
  %117 = vmatpush.msra.mxu0 0.0
  %118 = vmatpush.msra.mxu0 0.0
  %119 = vmatpush.msra.mxu0 0.0
  %120 = vmatpush.msra.mxu0 0.0
  %121 = vmatpush.msra.mxu0 0.0
  %122 = vmatpush.msra.mxu0 0.0
  %123 = vmatpush.msra.mxu0 0.0
  %124 = vmatpush.msra.mxu0 0.0
  %125 = vmatpush.msra.mxu0 0.0
  %126 = vmatpush.msra.mxu0 0.0
  %127 = vmatpush.msra.mxu0 0.0
  %128 = vmatpush.msra.mxu0 0.0
  %129 = vmatpush.msra.mxu0 0.0
  %130 = vmatpush.msra.mxu0 0.0
  %131 = vmatpush.msra.mxu0 0.0
  %132 = vmatpush.msra.mxu0 %v73
  %133 = vmatmul.f32.gmra.mxu0 %v50
  %v134 = vpop.f32.mrf.mxu0
  %v135 = vadd.f32 %v32, %v134
  %136 = vmatmul.f32.gmra.mxu0 %v53
  %v137 = vpop.f32.mrf.mxu0
  %v138 = vadd.f32 %v32, %v137
  %139 = vmatmul.f32.gmra.mxu0 %v56
  %v140 = vpop.f32.mrf.mxu0
  %v141 = vadd.f32 %v32, %v140
  %142 = vmatmul.f32.gmra.mxu0 %v59
  %v143 = vpop.f32.mrf.mxu0
  %v144 = vadd.f32 %v32, %v143
  %145 = vmatmul.f32.gmra.mxu0 %v62
  %v146 = vpop.f32.mrf.mxu0
  %v147 = vadd.f32 %v32, %v146
  %148 = vmatmul.f32.gmra.mxu0 %v65
  %v149 = vpop.f32.mrf.mxu0
  %v150 = vadd.f32 %v32, %v149
  %151 = vmatmul.f32.gmra.mxu0 %v68
  %v152 = vpop.f32.mrf.mxu0
  %v153 = vadd.f32 %v32, %v152
  %154 = vdwg.mxu0
  %155 = vmatpush.msra.mxu0 0.0
  %156 = vmatpush.msra.mxu0 0.0
  %157 = vmatpush.msra.mxu0 0.0
  %158 = vmatpush.msra.mxu0 0.0
  %159 = vmatpush.msra.mxu0 0.0
  %160 = vmatpush.msra.mxu0 0.0
  %161 = vmatpush.msra.mxu0 0.0
  %162 = vmatpush.msra.mxu0 0.0
  %163 = vmatpush.msra.mxu0 0.0
  %164 = vmatpush.msra.mxu0 0.0
  %165 = vmatpush.msra.mxu0 0.0
  %166 = vmatpush.msra.mxu0 0.0
  %167 = vmatpush.msra.mxu0 0.0
  %168 = vmatpush.msra.mxu0 0.0
  %169 = vmatpush.msra.mxu0 0.0
  %170 = vmatpush.msra.mxu0 %v75
  %171 = vmatmul.f32.gmra.mxu0 %v50
  %v172 = vpop.f32.mrf.mxu0
  %v173 = vadd.f32 %v33, %v172
  %174 = vmatmul.f32.gmra.mxu0 %v53
  %v175 = vpop.f32.mrf.mxu0
  %v176 = vadd.f32 %v33, %v175
  %177 = vmatmul.f32.gmra.mxu0 %v56
  %v178 = vpop.f32.mrf.mxu0
  %v179 = vadd.f32 %v33, %v178
  %180 = vmatmul.f32.gmra.mxu0 %v59
  %v181 = vpop.f32.mrf.mxu0
  %v182 = vadd.f32 %v33, %v181
  %183 = vmatmul.f32.gmra.mxu0 %v62
  %v184 = vpop.f32.mrf.mxu0
  %v185 = vadd.f32 %v33, %v184
  %186 = vmatmul.f32.gmra.mxu0 %v65
  %v187 = vpop.f32.mrf.mxu0
  %v188 = vadd.f32 %v33, %v187
  %189 = vmatmul.f32.gmra.mxu0 %v68
  %v190 = vpop.f32.mrf.mxu0
  %v191 = vadd.f32 %v33, %v190
  %192 = vdwg.mxu0
  %193 = vmatpush.msra.mxu0 0.0
  %194 = vmatpush.msra.mxu0 0.0
  %195 = vmatpush.msra.mxu0 0.0
  %196 = vmatpush.msra.mxu0 0.0
  %197 = vmatpush.msra.mxu0 0.0
  %198 = vmatpush.msra.mxu0 0.0
  %199 = vmatpush.msra.mxu0 0.0
  %200 = vmatpush.msra.mxu0 0.0
  %201 = vmatpush.msra.mxu0 0.0
  %202 = vmatpush.msra.mxu0 0.0
  %203 = vmatpush.msra.mxu0 0.0
  %204 = vmatpush.msra.mxu0 0.0
  %205 = vmatpush.msra.mxu0 0.0
  %206 = vmatpush.msra.mxu0 0.0
  %207 = vmatpush.msra.mxu0 0.0
  %208 = vmatpush.msra.mxu0 %v77
  %209 = vmatmul.f32.gmra.mxu0 %v50
  %v210 = vpop.f32.mrf.mxu0
  %v211 = vadd.f32 %v34, %v210
  %212 = vmatmul.f32.gmra.mxu0 %v53
  %v213 = vpop.f32.mrf.mxu0
  %v214 = vadd.f32 %v34, %v213
  %215 = vmatmul.f32.gmra.mxu0 %v56
  %v216 = vpop.f32.mrf.mxu0
  %v217 = vadd.f32 %v34, %v216
  %218 = vmatmul.f32.gmra.mxu0 %v59
  %v219 = vpop.f32.mrf.mxu0
  %v220 = vadd.f32 %v34, %v219
  %221 = vmatmul.f32.gmra.mxu0 %v62
  %v222 = vpop.f32.mrf.mxu0
  %v223 = vadd.f32 %v34, %v222
  %224 = vmatmul.f32.gmra.mxu0 %v65
  %v225 = vpop.f32.mrf.mxu0
  %v226 = vadd.f32 %v34, %v225
  %227 = vmatmul.f32.gmra.mxu0 %v68
  %v228 = vpop.f32.mrf.mxu0
  %v229 = vadd.f32 %v34, %v228
  %230 = vdwg.mxu0
  %v231 = vmax.f32 %v97, 0.0
  %v232 = vmax.f32 %v135, 0.0
  %v233 = vmax.f32 %v173, 0.0
  %v234 = vmax.f32 %v211, 0.0
  %v235 = vmax.f32 %v100, 0.0
  %v236 = vmax.f32 %v138, 0.0
  %v237 = vmax.f32 %v176, 0.0
  %v238 = vmax.f32 %v214, 0.0
  %v239 = vmax.f32 %v103, 0.0
  %v240 = vmax.f32 %v141, 0.0
  %v241 = vmax.f32 %v179, 0.0
  %v242 = vmax.f32 %v217, 0.0
  %v243 = vmax.f32 %v106, 0.0
  %v244 = vmax.f32 %v144, 0.0
  %v245 = vmax.f32 %v182, 0.0
  %v246 = vmax.f32 %v220, 0.0
  %v247 = vmax.f32 %v109, 0.0
  %v248 = vmax.f32 %v147, 0.0
  %v249 = vmax.f32 %v185, 0.0
  %v250 = vmax.f32 %v223, 0.0
  %v251 = vmax.f32 %v112, 0.0
  %v252 = vmax.f32 %v150, 0.0
  %v253 = vmax.f32 %v188, 0.0
  %v254 = vmax.f32 %v226, 0.0
  %v255 = vmax.f32 %v115, 0.0
  %v256 = vmax.f32 %v153, 0.0
  %v257 = vmax.f32 %v191, 0.0
  %v258 = vmax.f32 %v229, 0.0
  %v259 = vld [vmem:[%s3] sm:$0xff]
  %v260 = vld [vmem:[%s3 + $0x8] sm:$0xff]
  %v261 = vld [vmem:[%s3 + $0x10] sm:$0xff]
  %v262 = vld [vmem:[%s3 + $0x18] sm:$0xff]
  %v263 = vld [vmem:[%s3 + $0x20] sm:$0xff]
  %v264 = vld [vmem:[%s3 + $0x28] sm:$0xff]
  %v265 = vld [vmem:[%s3 + $0x30] sm:$0xff]
  %v266 = vld [vmem:[%s3 + $0x38] sm:$0xff]
  %v267 = vld [vmem:[%s3 + $0x40] sm:$0xff]
  %v268 = vld [vmem:[%s3 + $0x48] sm:$0xff]
  %v269 = vld [vmem:[%s3 + $0x50] sm:$0xff]
  %v270 = vld [vmem:[%s3 + $0x58] sm:$0xff]
  %v271 = vld [vmem:[%s3 + $0x60] sm:$0xff]
  %v272 = vld [vmem:[%s3 + $0x68] sm:$0xff]
  %v273 = vld [vmem:[%s3 + $0x70] sm:$0xff]
  %v274 = vld [vmem:[%s3 + $0x78] sm:$0xff]
  %v275 = vld [vmem:[%s3 + $0x80] sm:$0xff]
  %v276 = vld [vmem:[%s3 + $0x88] sm:$0xff]
  %v277 = vld [vmem:[%s3 + $0x90] sm:$0xff]
  %v278 = vld [vmem:[%s3 + $0x98] sm:$0xff]
  %v279 = vld [vmem:[%s3 + $0xa0] sm:$0xff]
  %v280 = vld [vmem:[%s3 + $0xa8] sm:$0xff]
  %v281 = vld [vmem:[%s3 + $0xb0] sm:$0xff]
  %v282 = vld [vmem:[%s3 + $0xb8] sm:$0xff]
  %v283 = vld [vmem:[%s3 + $0xc0] sm:$0xff]
  %v284 = vld [vmem:[%s3 + $0xc8] sm:$0xff]
  %v285 = vld [vmem:[%s3 + $0xd0] sm:$0xff]
  %v286 = vld [vmem:[%s3 + $0xd8] sm:$0xff]
  %v287 = vld [vmem:[%s3 + $0xe0] sm:$0xff]
  %v288 = vld [vmem:[%s3 + $0xe8] sm:$0xff]
  %v289 = vld [vmem:[%s3 + $0xf0] sm:$0xff]
  %v290 = vld [vmem:[%s3 + $0xf8] sm:$0xff]
  %v291 = vld [vmem:[%s3 + $0x100] sm:$0xff]
  %v292 = vld [vmem:[%s3 + $0x108] sm:$0xff]
  %v293 = vld [vmem:[%s3 + $0x110] sm:$0xff]
  %v294 = vld [vmem:[%s3 + $0x118] sm:$0xff]
  %v295 = vld [vmem:[%s3 + $0x120] sm:$0xff]
  %v296 = vld [vmem:[%s3 + $0x128] sm:$0xff]
  %v297 = vld [vmem:[%s3 + $0x130] sm:$0xff]
  %v298 = vld [vmem:[%s3 + $0x138] sm:$0xff]
  %v299 = vld [vmem:[%s3 + $0x140] sm:$0xff]
  %v300 = vld [vmem:[%s3 + $0x148] sm:$0xff]
  %v301 = vld [vmem:[%s3 + $0x150] sm:$0xff]
  %v302 = vld [vmem:[%s3 + $0x158] sm:$0xff]
  %v303 = vld [vmem:[%s3 + $0x160] sm:$0xff]
  %v304 = vld [vmem:[%s3 + $0x168] sm:$0xff]
  %v305 = vld [vmem:[%s3 + $0x170] sm:$0xff]
  %v306 = vld [vmem:[%s3 + $0x178] sm:$0xff]
  %v307 = vld [vmem:[%s3 + $0x180] sm:$0xff]
  %v308 = vld [vmem:[%s3 + $0x188] sm:$0xff]
  %v309 = vld [vmem:[%s3 + $0x190] sm:$0xff]
  %v310 = vld [vmem:[%s3 + $0x198] sm:$0xff]
  %v311 = vld [vmem:[%s3 + $0x1a0] sm:$0xff]
  %v312 = vld [vmem:[%s3 + $0x1a8] sm:$0xff]
  %v313 = vld [vmem:[%s3 + $0x1b0] sm:$0xff]
  %v314 = vld [vmem:[%s3 + $0x1b8] sm:$0xff]
  %v315 = vld [vmem:[%s3 + $0x1c0] sm:$0xff]
  %v316 = vld [vmem:[%s3 + $0x1c8] sm:$0xff]
  %v317 = vld [vmem:[%s3 + $0x1d0] sm:$0xff]
  %v318 = vld [vmem:[%s3 + $0x1d8] sm:$0xff]
  %v319 = vld [vmem:[%s3 + $0x1e0] sm:$0xff]
  %v320 = vld [vmem:[%s3 + $0x1e8] sm:$0xff]
  %v321 = vld [vmem:[%s3 + $0x1f0] sm:$0xff]
  %v322 = vld [vmem:[%s3 + $0x1f8] sm:$0xff]
  %v323 = vld [vmem:[%s4] sm:$0x1]
  %v325 = vperm.slane %v323, 0
  %327 = vmatpush.msra.mxu0 %v274
  %328 = vmatpush.msra.mxu0 %v273
  %329 = vmatpush.msra.mxu0 %v272
  %330 = vmatpush.msra.mxu0 %v271
  %331 = vmatpush.msra.mxu0 %v270
  %332 = vmatpush.msra.mxu0 %v269
  %333 = vmatpush.msra.mxu0 %v268
  %334 = vmatpush.msra.mxu0 %v267
  %335 = vmatpush.msra.mxu0 %v266
  %336 = vmatpush.msra.mxu0 %v265
  %337 = vmatpush.msra.mxu0 %v264
  %338 = vmatpush.msra.mxu0 %v263
  %339 = vmatpush.msra.mxu0 %v262
  %340 = vmatpush.msra.mxu0 %v261
  %341 = vmatpush.msra.mxu0 %v260
  %342 = vmatpush.msra.mxu0 %v259
  %343 = vmatmul.f32.gmra.mxu0 %v231
  %v344 = vpop.f32.mrf.mxu0
  %v345 = vadd.f32 %v325, %v344
  %346 = vmatmul.f32.gmra.mxu0 %v235
  %v347 = vpop.f32.mrf.mxu0
  %v348 = vadd.f32 %v325, %v347
  %349 = vmatmul.f32.gmra.mxu0 %v239
  %v350 = vpop.f32.mrf.mxu0
  %v351 = vadd.f32 %v325, %v350
  %352 = vmatmul.f32.gmra.mxu0 %v243
  %v353 = vpop.f32.mrf.mxu0
  %v354 = vadd.f32 %v325, %v353
  %355 = vmatmul.f32.gmra.mxu0 %v247
  %v356 = vpop.f32.mrf.mxu0
  %v357 = vadd.f32 %v325, %v356
  %358 = vmatmul.f32.gmra.mxu0 %v251
  %v359 = vpop.f32.mrf.mxu0
  %v360 = vadd.f32 %v325, %v359
  %361 = vmatmul.f32.gmra.mxu0 %v255
  %v362 = vpop.f32.mrf.mxu0
  %v363 = vadd.f32 %v325, %v362
  %364 = vdwg.mxu0
  %365 = vmatpush.msra.mxu0 %v290
  %366 = vmatpush.msra.mxu0 %v289
  %367 = vmatpush.msra.mxu0 %v288
  %368 = vmatpush.msra.mxu0 %v287
  %369 = vmatpush.msra.mxu0 %v286
  %370 = vmatpush.msra.mxu0 %v285
  %371 = vmatpush.msra.mxu0 %v284
  %372 = vmatpush.msra.mxu0 %v283
  %373 = vmatpush.msra.mxu0 %v282
  %374 = vmatpush.msra.mxu0 %v281
  %375 = vmatpush.msra.mxu0 %v280
  %376 = vmatpush.msra.mxu0 %v279
  %377 = vmatpush.msra.mxu0 %v278
  %378 = vmatpush.msra.mxu0 %v277
  %379 = vmatpush.msra.mxu0 %v276
  %380 = vmatpush.msra.mxu0 %v275
  %381 = vmatmul.f32.gmra.mxu0 %v232
  %v382 = vpop.f32.mrf.mxu0
  %v383 = vadd.f32 %v345, %v382
  %384 = vmatmul.f32.gmra.mxu0 %v236
  %v385 = vpop.f32.mrf.mxu0
  %v386 = vadd.f32 %v348, %v385
  %387 = vmatmul.f32.gmra.mxu0 %v240
  %v388 = vpop.f32.mrf.mxu0
  %v389 = vadd.f32 %v351, %v388
  %390 = vmatmul.f32.gmra.mxu0 %v244
  %v391 = vpop.f32.mrf.mxu0
  %v392 = vadd.f32 %v354, %v391
  %393 = vmatmul.f32.gmra.mxu0 %v248
  %v394 = vpop.f32.mrf.mxu0
  %v395 = vadd.f32 %v357, %v394
  %396 = vmatmul.f32.gmra.mxu0 %v252
  %v397 = vpop.f32.mrf.mxu0
  %v398 = vadd.f32 %v360, %v397
  %399 = vmatmul.f32.gmra.mxu0 %v256
  %v400 = vpop.f32.mrf.mxu0
  %v401 = vadd.f32 %v363, %v400
  %402 = vdwg.mxu0
  %403 = vmatpush.msra.mxu0 %v306
  %404 = vmatpush.msra.mxu0 %v305
  %405 = vmatpush.msra.mxu0 %v304
  %406 = vmatpush.msra.mxu0 %v303
  %407 = vmatpush.msra.mxu0 %v302
  %408 = vmatpush.msra.mxu0 %v301
  %409 = vmatpush.msra.mxu0 %v300
  %410 = vmatpush.msra.mxu0 %v299
  %411 = vmatpush.msra.mxu0 %v298
  %412 = vmatpush.msra.mxu0 %v297
  %413 = vmatpush.msra.mxu0 %v296
  %414 = vmatpush.msra.mxu0 %v295
  %415 = vmatpush.msra.mxu0 %v294
  %416 = vmatpush.msra.mxu0 %v293
  %417 = vmatpush.msra.mxu0 %v292
  %418 = vmatpush.msra.mxu0 %v291
  %419 = vmatmul.f32.gmra.mxu0 %v233
  %v420 = vpop.f32.mrf.mxu0
  %v421 = vadd.f32 %v383, %v420
  %422 = vmatmul.f32.gmra.mxu0 %v237
  %v423 = vpop.f32.mrf.mxu0
  %v424 = vadd.f32 %v386, %v423
  %425 = vmatmul.f32.gmra.mxu0 %v241
  %v426 = vpop.f32.mrf.mxu0
  %v427 = vadd.f32 %v389, %v426
  %428 = vmatmul.f32.gmra.mxu0 %v245
  %v429 = vpop.f32.mrf.mxu0
  %v430 = vadd.f32 %v392, %v429
  %431 = vmatmul.f32.gmra.mxu0 %v249
  %v432 = vpop.f32.mrf.mxu0
  %v433 = vadd.f32 %v395, %v432
  %434 = vmatmul.f32.gmra.mxu0 %v253
  %v435 = vpop.f32.mrf.mxu0
  %v436 = vadd.f32 %v398, %v435
  %437 = vmatmul.f32.gmra.mxu0 %v257
  %v438 = vpop.f32.mrf.mxu0
  %v439 = vadd.f32 %v401, %v438
  %440 = vdwg.mxu0
  %441 = vmatpush.msra.mxu0 %v322
  %442 = vmatpush.msra.mxu0 %v321
  %443 = vmatpush.msra.mxu0 %v320
  %444 = vmatpush.msra.mxu0 %v319
  %445 = vmatpush.msra.mxu0 %v318
  %446 = vmatpush.msra.mxu0 %v317
  %447 = vmatpush.msra.mxu0 %v316
  %448 = vmatpush.msra.mxu0 %v315
  %449 = vmatpush.msra.mxu0 %v314
  %450 = vmatpush.msra.mxu0 %v313
  %451 = vmatpush.msra.mxu0 %v312
  %452 = vmatpush.msra.mxu0 %v311
  %453 = vmatpush.msra.mxu0 %v310
  %454 = vmatpush.msra.mxu0 %v309
  %455 = vmatpush.msra.mxu0 %v308
  %456 = vmatpush.msra.mxu0 %v307
  %457 = vmatmul.f32.gmra.mxu0 %v234
  %v458 = vpop.f32.mrf.mxu0
  %v459 = vadd.f32 %v421, %v458
  %460 = vmatmul.f32.gmra.mxu0 %v238
  %v461 = vpop.f32.mrf.mxu0
  %v462 = vadd.f32 %v424, %v461
  %463 = vmatmul.f32.gmra.mxu0 %v242
  %v464 = vpop.f32.mrf.mxu0
  %v465 = vadd.f32 %v427, %v464
  %466 = vmatmul.f32.gmra.mxu0 %v246
  %v467 = vpop.f32.mrf.mxu0
  %v468 = vadd.f32 %v430, %v467
  %469 = vmatmul.f32.gmra.mxu0 %v250
  %v470 = vpop.f32.mrf.mxu0
  %v471 = vadd.f32 %v433, %v470
  %472 = vmatmul.f32.gmra.mxu0 %v254
  %v473 = vpop.f32.mrf.mxu0
  %v474 = vadd.f32 %v436, %v473
  %475 = vmatmul.f32.gmra.mxu0 %v258
  %v476 = vpop.f32.mrf.mxu0
  %v477 = vadd.f32 %v439, %v476
  %478 = vdwg.mxu0
  %vm479 = vcmask 64512
  %480 = vst.msk [vmem:[%s5] sm:$0xff] %vm479, %v459
  %481 = vst.msk [vmem:[%s5 + $0x8] sm:$0xff] %vm479, %v462
  %482 = vst.msk [vmem:[%s5 + $0x10] sm:$0xff] %vm479, %v465
  %483 = vst.msk [vmem:[%s5 + $0x18] sm:$0xff] %vm479, %v468
  %484 = vst.msk [vmem:[%s5 + $0x20] sm:$0xff] %vm479, %v471
  %485 = vst.msk [vmem:[%s5 + $0x28] sm:$0xff] %vm479, %v474
  %vm486 = vcmask 57344
  %487 = vst.msk [vmem:[%s5 + $0x30] sm:$0x1] %vm486, %v477
  // Predicated region
  $region22: #{attention_forward.2} parent=0 // pred_check
    _
  $region23: #{attention_forward.2} parent=0 // pred_check_branch
    %489 = sbr.rel (0) target = $region25
  $region24: #{attention_forward.2} parent=0 // pred_region
    _
  $region25: #{attention_forward.2} parent=0 // pred_fallthru
    _
  // Predicated region
  $region26: #{attention_forward.2} parent=0 // pred_check
    _
  $region27: #{attention_forward.2} parent=0 // pred_check_branch
    %491 = sbr.rel (0) target = $region29
  $region28: #{attention_forward.2} parent=0 // pred_region
    _
  $region29: #{attention_forward.2} parent=0 // pred_fallthru
    _

// kernel: attention_forward.3
$region0: #{attention_forward.3}
  #allocation0 [shape = 'u32[]', space=smem, size = 0x4, offset = 0x4, fixed_abs, tag = 'smem constant byte address 0x4 - core index']
  #allocation1 [shape = 'u32[72,128]{1,0:T(1,128)}', space=vmem, size = 0x9000, scoped, tag = 'internal scratch']
  %s0 = inlined_call_operand.vmem [shape: f32[2,16,64], index: 0, kind: input, shape index: {}]
  %s1 = inlined_call_operand.vmem [shape: f32[64,192], index: 1, kind: input, shape index: {}]
  %s2 = inlined_call_operand.vmem [shape: f32[1,192], index: 2, kind: input, shape index: {}]
  %s3 = inlined_call_operand.vmem [shape: f32[8,1,8], index: 3, kind: input, shape index: {}]
  %s4 = inlined_call_operand.vmem [shape: f32[8,1,8], index: 4, kind: input, shape index: {}]
  %s5 = inlined_call_operand.vmem [shape: f32[8,16,16], index: 5, kind: input, shape index: {}]
  %s6 = inlined_call_operand.vmem [shape: f32[64,64], index: 6, kind: input, shape index: {}]
  %s7 = inlined_call_operand.vmem [shape: f32[1,64], index: 7, kind: input, shape index: {}]
  %s8 = inlined_call_operand.hbm [shape: f32[2,16,64], index: 8, kind: output, shape index: {}]
  %s9 = sld [smem:[#allocation0]]
  $region65: #{attention_forward.3} parent=0
    _
  %s11 = ssub.s32 1, %s9
  %s12 = scalar_select 0, %s11, %s9
  $region1: #{attention_forward.3} parent=0
    #allocation2 [shape = 'u8[16384]{0}', space=vmem, size = 0x4000, scoped, tag = 'output window, operand 0']
    #allocation3 [shape = 's32[2]{0}', space=sflag, size = 0x8, scoped, tag = 'scoped memory for attention_forward.3']
    %13 = vsyncpa [#allocation3], 0
    %s14 = scalar_lea.sflag [#allocation3], 1
    %15 = vsyncpa %s14, 0
    loop: start=0, step=1, limit=4
    $region2: #{attention_forward.3} parent=1 // loop_pre_header
      _
    $region3: #{attention_forward.3} parent=1 // loop_header
      %s17 = sphi 0, %s21
      %p18 = scmp.ge.s32.totalorder %s17, 4
      %s27 = sphi 0, %s29
      %s30 = sphi 0, %s27
      %s31 = sphi 0, %s30
      %s47 = sphi 0, %s31
      %s51 = sphi 0, %s51
      %s53 = sphi 0, %s51
      %s54 = sphi 0, %s53
      %s68 = sphi 0, %s54
      %s72 = sphi 0, %s72
      %s74 = sphi 0, %s72
      %s75 = sphi 0, %s74
      %s89 = sphi 0, %s75
      %s93 = sphi 0, %s93
      %s95 = sphi 0, %s93
      %s96 = sphi 0, %s95
      %s110 = sphi 0, %s96
      %s114 = sphi 0, %s114
      %s116 = sphi 0, %s114
      %s117 = sphi 0, %s116
      %s131 = sphi 0, %s117
      %s135 = sphi 0, %s135
      %s137 = sphi 0, %s135
      %s138 = sphi 0, %s137
      %s152 = sphi 0, %s138
      %s156 = sphi 0, %s156
      %s158 = sphi 0, %s156
      %s159 = sphi 0, %s158
      %s173 = sphi 0, %s159
      %s177 = sphi 0, %s177
      %s179 = sphi 0, %s177
      %s180 = sphi 0, %s179
      %s194 = sphi 0, %s180
      %s200 = sphi 0, %s202
      %s203 = sphi 0, %s200
      %s204 = sphi 0, %s203
      %s220 = sphi 0, %s204
    $region4: #{attention_forward.3} parent=1 // loop_header_branch
      %20 = sbr.rel (%p18) target = $region8
    $region5: #{attention_forward.3} parent=1 // loop_body
      %s22 = ssub.s32 %s17, 1
      %s23 = ssub.s32 %s17, 2
      %s24 = sadd.s32 %s17, 1
      %s25 = ssub.s32 %s17, %s24
      %p26 = scmp.eq.s32.totalorder %s25, 0
      %s28 = sadd.s32 %s27, 1
      %s29 = scalar_select %p26, %s27, %s28
      %p32 = pneg %p26
      %p33 = scmp.eq.s32.totalorder %s17, 1
      %p34 = por %p32, %p33
      %p35 = scmp.ne.s32.totalorder %s27, %s30
      %p36 = scmp.eq.s32.totalorder %s17, 0
      %p37 = por %p35, %p36
      %p38 = scmp.ne.s32.totalorder %s27, %s30
      %p39 = scmp.eq.s32.totalorder %s22, 1
      %p40 = por %p38, %p39
      %p41 = scmp.ne.s32.totalorder %s30, %s31
      %p42 = scmp.eq.s32.totalorder %s22, 0
      %p43 = por %p41, %p42
      %p44 = scmp.ne.s32.totalorder %s30, %s31
      %p45 = scmp.eq.s32.totalorder %s23, 1
      %p46 = por %p44, %p45
      %p48 = scmp.ne.s32.totalorder %s31, %s47
      %p49 = scmp.eq.s32.totalorder %s23, 0
      %p50 = por %p48, %p49
      %s52 = sadd.s32 %s51, 1
      %p55 = scmp.eq.s32.totalorder %s17, 1
      %p56 = scmp.ne.s32.totalorder %s51, %s53
      %p57 = scmp.eq.s32.totalorder %s17, 0
      %p58 = por %p56, %p57
      %p59 = scmp.ne.s32.totalorder %s51, %s53
      %p60 = scmp.eq.s32.totalorder %s22, 1
      %p61 = por %p59, %p60
      %p62 = scmp.ne.s32.totalorder %s53, %s54
      %p63 = scmp.eq.s32.totalorder %s22, 0
      %p64 = por %p62, %p63
      %p65 = scmp.ne.s32.totalorder %s53, %s54
      %p66 = scmp.eq.s32.totalorder %s23, 1
      %p67 = por %p65, %p66
      %p69 = scmp.ne.s32.totalorder %s54, %s68
      %p70 = scmp.eq.s32.totalorder %s23, 0
      %p71 = por %p69, %p70
      %s73 = sadd.s32 %s72, 1
      %p76 = scmp.eq.s32.totalorder %s17, 1
      %p77 = scmp.ne.s32.totalorder %s72, %s74
      %p78 = scmp.eq.s32.totalorder %s17, 0
      %p79 = por %p77, %p78
      %p80 = scmp.ne.s32.totalorder %s72, %s74
      %p81 = scmp.eq.s32.totalorder %s22, 1
      %p82 = por %p80, %p81
      %p83 = scmp.ne.s32.totalorder %s74, %s75
      %p84 = scmp.eq.s32.totalorder %s22, 0
      %p85 = por %p83, %p84
      %p86 = scmp.ne.s32.totalorder %s74, %s75
      %p87 = scmp.eq.s32.totalorder %s23, 1
      %p88 = por %p86, %p87
      %p90 = scmp.ne.s32.totalorder %s75, %s89
      %p91 = scmp.eq.s32.totalorder %s23, 0
      %p92 = por %p90, %p91
      %s94 = sadd.s32 %s93, 1
      %p97 = scmp.eq.s32.totalorder %s17, 1
      %p98 = scmp.ne.s32.totalorder %s93, %s95
      %p99 = scmp.eq.s32.totalorder %s17, 0
      %p100 = por %p98, %p99
      %p101 = scmp.ne.s32.totalorder %s93, %s95
      %p102 = scmp.eq.s32.totalorder %s22, 1
      %p103 = por %p101, %p102
      %p104 = scmp.ne.s32.totalorder %s95, %s96
      %p105 = scmp.eq.s32.totalorder %s22, 0
      %p106 = por %p104, %p105
      %p107 = scmp.ne.s32.totalorder %s95, %s96
      %p108 = scmp.eq.s32.totalorder %s23, 1
      %p109 = por %p107, %p108
      %p111 = scmp.ne.s32.totalorder %s96, %s110
      %p112 = scmp.eq.s32.totalorder %s23, 0
      %p113 = por %p111, %p112
      %s115 = sadd.s32 %s114, 1
      %p118 = scmp.eq.s32.totalorder %s17, 1
      %p119 = scmp.ne.s32.totalorder %s114, %s116
      %p120 = scmp.eq.s32.totalorder %s17, 0
      %p121 = por %p119, %p120
      %p122 = scmp.ne.s32.totalorder %s114, %s116
      %p123 = scmp.eq.s32.totalorder %s22, 1
      %p124 = por %p122, %p123
      %p125 = scmp.ne.s32.totalorder %s116, %s117
      %p126 = scmp.eq.s32.totalorder %s22, 0
      %p127 = por %p125, %p126
      %p128 = scmp.ne.s32.totalorder %s116, %s117
      %p129 = scmp.eq.s32.totalorder %s23, 1
      %p130 = por %p128, %p129
      %p132 = scmp.ne.s32.totalorder %s117, %s131
      %p133 = scmp.eq.s32.totalorder %s23, 0
      %p134 = por %p132, %p133
      %s136 = sadd.s32 %s135, 1
      %p139 = scmp.eq.s32.totalorder %s17, 1
      %p140 = scmp.ne.s32.totalorder %s135, %s137
      %p141 = scmp.eq.s32.totalorder %s17, 0
      %p142 = por %p140, %p141
      %p143 = scmp.ne.s32.totalorder %s135, %s137
      %p144 = scmp.eq.s32.totalorder %s22, 1
      %p145 = por %p143, %p144
      %p146 = scmp.ne.s32.totalorder %s137, %s138
      %p147 = scmp.eq.s32.totalorder %s22, 0
      %p148 = por %p146, %p147
      %p149 = scmp.ne.s32.totalorder %s137, %s138
      %p150 = scmp.eq.s32.totalorder %s23, 1
      %p151 = por %p149, %p150
      %p153 = scmp.ne.s32.totalorder %s138, %s152
      %p154 = scmp.eq.s32.totalorder %s23, 0
      %p155 = por %p153, %p154
      %s157 = sadd.s32 %s156, 1
      %p160 = scmp.eq.s32.totalorder %s17, 1
      %p161 = scmp.ne.s32.totalorder %s156, %s158
      %p162 = scmp.eq.s32.totalorder %s17, 0
      %p163 = por %p161, %p162
      %p164 = scmp.ne.s32.totalorder %s156, %s158
      %p165 = scmp.eq.s32.totalorder %s22, 1
      %p166 = por %p164, %p165
      %p167 = scmp.ne.s32.totalorder %s158, %s159
      %p168 = scmp.eq.s32.totalorder %s22, 0
      %p169 = por %p167, %p168
      %p170 = scmp.ne.s32.totalorder %s158, %s159
      %p171 = scmp.eq.s32.totalorder %s23, 1
      %p172 = por %p170, %p171
      %p174 = scmp.ne.s32.totalorder %s159, %s173
      %p175 = scmp.eq.s32.totalorder %s23, 0
      %p176 = por %p174, %p175
      %s178 = sadd.s32 %s177, 1
      %p181 = scmp.eq.s32.totalorder %s17, 1
      %p182 = scmp.ne.s32.totalorder %s177, %s179
      %p183 = scmp.eq.s32.totalorder %s17, 0
      %p184 = por %p182, %p183
      %p185 = scmp.ne.s32.totalorder %s177, %s179
      %p186 = scmp.eq.s32.totalorder %s22, 1
      %p187 = por %p185, %p186
      %p188 = scmp.ne.s32.totalorder %s179, %s180
      %p189 = scmp.eq.s32.totalorder %s22, 0
      %p190 = por %p188, %p189
      %p191 = scmp.ne.s32.totalorder %s179, %s180
      %p192 = scmp.eq.s32.totalorder %s23, 1
      %p193 = por %p191, %p192
      %p195 = scmp.ne.s32.totalorder %s180, %s194
      %p196 = scmp.eq.s32.totalorder %s23, 0
      %p197 = por %p195, %p196
      %s198 = ssub.s32 %s17, %s24
      %p199 = scmp.eq.s32.totalorder %s198, 0
      %s201 = sadd.s32 %s200, 1
      %s202 = scalar_select %p199, %s200, %s201
      %p205 = pneg %p199
      %p206 = scmp.eq.s32.totalorder %s17, 1
      %p207 = por %p205, %p206
      %p208 = scmp.ne.s32.totalorder %s200, %s203
      %p209 = scmp.eq.s32.totalorder %s17, 0
      %p210 = por %p208, %p209
      %p211 = scmp.ne.s32.totalorder %s200, %s203
      %p212 = scmp.eq.s32.totalorder %s22, 1
      %p213 = por %p211, %p212
      %p214 = scmp.ne.s32.totalorder %s203, %s204
      %p215 = scmp.eq.s32.totalorder %s22, 0
      %p216 = por %p214, %p215
      %p217 = scmp.ne.s32.totalorder %s203, %s204
      %p218 = scmp.eq.s32.totalorder %s23, 1
      %p219 = por %p217, %p218
      %p221 = scmp.ne.s32.totalorder %s204, %s220
      %p222 = scmp.eq.s32.totalorder %s23, 0
      %p223 = por %p221, %p222
      %p224 = scmp.le.s32.totalorder 1, %s17
      %p225 = scmp.lt.s32.totalorder %s17, 3
      %p226 = pnand %p224, %p225
      %p227 = pneg %p226
      // Predicated region
      $region9: #{attention_forward.3} parent=5 // pred_check
        _
      $region10: #{attention_forward.3} parent=5 // pred_check_branch
        %229 = sbr.rel (%p226) target = $region12
      $region11: #{attention_forward.3} parent=5 // pred_region
        %s230 = ssub.s32 %s17, 1
        // Predicated region
        $region13: #{attention_forward.3} parent=11 // pred_check
          %p231 = pneg %p64
        $region14: #{attention_forward.3} parent=11 // pred_check_branch
          %233 = sbr.rel (%p231) target = $region16
        $region15: #{attention_forward.3} parent=11 // pred_region
          _
        $region16: #{attention_forward.3} parent=11 // pred_fallthru
          _
        // Predicated region
        $region17: #{attention_forward.3} parent=11 // pred_check
          %p234 = pneg %p85
        $region18: #{attention_forward.3} parent=11 // pred_check_branch
          %236 = sbr.rel (%p234) target = $region20
        $region19: #{attention_forward.3} parent=11 // pred_region
          _
        $region20: #{attention_forward.3} parent=11 // pred_fallthru
          _
        // Predicated region
        $region21: #{attention_forward.3} parent=11 // pred_check
          %p237 = pneg %p106
        $region22: #{attention_forward.3} parent=11 // pred_check_branch
          %239 = sbr.rel (%p237) target = $region24
        $region23: #{attention_forward.3} parent=11 // pred_region
          _
        $region24: #{attention_forward.3} parent=11 // pred_fallthru
          _
        // Predicated region
        $region25: #{attention_forward.3} parent=11 // pred_check
          %p240 = pneg %p127
        $region26: #{attention_forward.3} parent=11 // pred_check_branch
          %242 = sbr.rel (%p240) target = $region28
        $region27: #{attention_forward.3} parent=11 // pred_region
          _
        $region28: #{attention_forward.3} parent=11 // pred_fallthru
          _
        // Predicated region
        $region29: #{attention_forward.3} parent=11 // pred_check
          %p243 = pneg %p148
        $region30: #{attention_forward.3} parent=11 // pred_check_branch
          %245 = sbr.rel (%p243) target = $region32
        $region31: #{attention_forward.3} parent=11 // pred_region
          _
        $region32: #{attention_forward.3} parent=11 // pred_fallthru
          _
        // Predicated region
        $region33: #{attention_forward.3} parent=11 // pred_check
          %p246 = pneg %p169
        $region34: #{attention_forward.3} parent=11 // pred_check_branch
          %248 = sbr.rel (%p246) target = $region36
        $region35: #{attention_forward.3} parent=11 // pred_region
          _
        $region36: #{attention_forward.3} parent=11 // pred_fallthru
          _
        // Predicated region
        $region37: #{attention_forward.3} parent=11 // pred_check
          %p249 = pneg %p190
        $region38: #{attention_forward.3} parent=11 // pred_check_branch
          %251 = sbr.rel (%p249) target = $region40
        $region39: #{attention_forward.3} parent=11 // pred_region
          _
        $region40: #{attention_forward.3} parent=11 // pred_fallthru
          _
      $region12: #{attention_forward.3} parent=5 // pred_fallthru
        _
      %p252 = scmp.lt.s32.totalorder %s17, 2
      // Predicated region
      $region41: #{attention_forward.3} parent=5 // pred_check
        %p253 = pneg %p252
      $region42: #{attention_forward.3} parent=5 // pred_check_branch
        %255 = sbr.rel (%p253) target = $region44
      $region43: #{attention_forward.3} parent=5 // pred_region
        // Predicated region
        $region45: #{attention_forward.3} parent=43 // pred_check
          %p256 = pneg %p37
        $region46: #{attention_forward.3} parent=43 // pred_check_branch
          %258 = sbr.rel (%p256) target = $region48
        $region47: #{attention_forward.3} parent=43 // pred_region
          %p259 = scmp.lt.s32.totalorder %s17, 1
          %s260 = scalar_select %p259, %s17, 1
          %s261 = smul.addr %s260, 2
          %s262 = smul.addr %s261, 8
          %s263 = scalar_lea.vmem %s0, %s262
        $region48: #{attention_forward.3} parent=43 // pred_fallthru
          _
      $region44: #{attention_forward.3} parent=5 // pred_fallthru
        _
      %p264 = scmp.le.s32.totalorder 1, %s17
      %p265 = scmp.lt.s32.totalorder %s17, 3
      %p266 = pnand %p264, %p265
      %p267 = pneg %p266
      // Predicated region
      $region49: #{attention_forward.3} parent=5 // pred_check
        _
      $region50: #{attention_forward.3} parent=5 // pred_check_branch
        %269 = sbr.rel (%p266) target = $region52
      $region51: #{attention_forward.3} parent=5 // pred_region
        %s270 = ssub.s32 %s17, 1
        %p271 = scmp.lt.s32.totalorder %s22, 1
        %s272 = scalar_select %p271, %s22, 1
        %s273 = smul.addr %s272, 2
        %s274 = smul.addr %s273, 8
        %s275 = scalar_lea.vmem %s0, %s274
        %p276 = pneg %p43
        %p277 = pneg %p40
        %p278 = pneg %p64
        %p279 = pneg %p61
        %p280 = pneg %p85
        %p281 = pneg %p82
        %p282 = pneg %p106
        %p283 = pneg %p103
        %p284 = pneg %p127
        %p285 = pneg %p124
        %p286 = pneg %p148
        %p287 = pneg %p145
        %p288 = pneg %p169
        %p289 = pneg %p166
        %p290 = pneg %p190
        %p291 = pneg %p187
        %p292 = pneg %p216
        %p293 = pneg %p213
        %s294 = sand.u32 %s203, 1
        %s295 = scalar_lea.sflag [#allocation3], %s294
        %s296 = sand.u32 %s203, 1
        %s297 = smul.addr %s296, 16
        %s298 = scalar_lea.vmem [#allocation2], %s297
        %p299 = scmp.lt.s32.totalorder %s22, 1
        %s300 = scalar_select %p299, %s22, 1
        %s301 = smul.addr %s300, 2
        %s302 = smul.addr %s301, 8
        %s303 = scalar_lea.vmem %s0, %s302
        %v304 = vld [vmem:[%s303] sm:$0xff]
        %v305 = vld [vmem:[%s303 + $0x8] sm:$0xff]
        %v306 = vld [vmem:[%s1] sm:$0xff]
        %v307 = vld [vmem:[%s1 + $0x8] sm:$0xff]
        %v308 = vld [vmem:[%s1 + $0x10] sm:$0xff]
        %v309 = vld [vmem:[%s1 + $0x18] sm:$0xff]
        %v310 = vld [vmem:[%s1 + $0x20] sm:$0xff]
        %v311 = vld [vmem:[%s1 + $0x28] sm:$0xff]
        %v312 = vld [vmem:[%s1 + $0x30] sm:$0xff]
        %v313 = vld [vmem:[%s1 + $0x38] sm:$0xff]
        %v314 = vld [vmem:[%s1 + $0x40] sm:$0xff]
        %v315 = vld [vmem:[%s1 + $0x48] sm:$0xff]
        %v316 = vld [vmem:[%s1 + $0x50] sm:$0xff]
        %v317 = vld [vmem:[%s1 + $0x58] sm:$0xff]
        %v318 = vld [vmem:[%s1 + $0x60] sm:$0xff]
        %v319 = vld [vmem:[%s1 + $0x68] sm:$0xff]
        %v320 = vld [vmem:[%s1 + $0x70] sm:$0xff]
        %v321 = vld [vmem:[%s1 + $0x78] sm:$0xff]
        %v322 = vld [vmem:[%s2] sm:$0x3]
        %v324 = vperm.slane %v322, 0
        %v325 = vperm.slane %v322, 1
        %vm328 = vcmask 523264
        %v330 = vsel %vm328, %v304, 0
        %v333 = vsel %vm328, %v305, 0
        %335 = vmatpush.msra.mxu0 0.0
        %336 = vmatpush.msra.mxu0 0.0
        %337 = vmatpush.msra.mxu0 0.0
        %338 = vmatpush.msra.mxu0 0.0
        %339 = vmatpush.msra.mxu0 0.0
        %340 = vmatpush.msra.mxu0 0.0
        %341 = vmatpush.msra.mxu0 0.0
        %342 = vmatpush.msra.mxu0 0.0
        %343 = vmatpush.msra.mxu0 %v320
        %344 = vmatpush.msra.mxu0 %v318
        %345 = vmatpush.msra.mxu0 %v316
        %346 = vmatpush.msra.mxu0 %v314
        %347 = vmatpush.msra.mxu0 %v312
        %348 = vmatpush.msra.mxu0 %v310
        %349 = vmatpush.msra.mxu0 %v308
        %350 = vmatpush.msra.mxu0 %v306
        %351 = vmatmul.f32.gmra.mxu0 %v330
        %v352 = vpop.f32.mrf.mxu0
        %v353 = vadd.f32 %v324, %v352
        %354 = vmatmul.f32.gmra.mxu0 %v333
        %v355 = vpop.f32.mrf.mxu0
        %v356 = vadd.f32 %v324, %v355
        %357 = vdwg.mxu0
        %358 = vmatpush.msra.mxu0 0.0
        %359 = vmatpush.msra.mxu0 0.0
        %360 = vmatpush.msra.mxu0 0.0
        %361 = vmatpush.msra.mxu0 0.0
        %362 = vmatpush.msra.mxu0 0.0
        %363 = vmatpush.msra.mxu0 0.0
        %364 = vmatpush.msra.mxu0 0.0
        %365 = vmatpush.msra.mxu0 0.0
        %366 = vmatpush.msra.mxu0 %v321
        %367 = vmatpush.msra.mxu0 %v319
        %368 = vmatpush.msra.mxu0 %v317
        %369 = vmatpush.msra.mxu0 %v315
        %370 = vmatpush.msra.mxu0 %v313
        %371 = vmatpush.msra.mxu0 %v311
        %372 = vmatpush.msra.mxu0 %v309
        %373 = vmatpush.msra.mxu0 %v307
        %374 = vmatmul.f32.gmra.mxu0 %v330
        %v375 = vpop.f32.mrf.mxu0
        %v376 = vadd.f32 %v325, %v375
        %377 = vmatmul.f32.gmra.mxu0 %v333
        %v378 = vpop.f32.mrf.mxu0
        %v379 = vadd.f32 %v325, %v378
        %380 = vdwg.mxu0
        %v381 = vmul.f32 %v353, %v353
        %v382 = vmul.f32 %v356, %v356
        %vm383 = vcmask 64512
        %v384 = vsel %vm383, %v381, 0.0
        %385 = vadd.xlane.f32.xlu0 %v384
        %v386 = vpop.xlane.xlu0 %385
        %v387 = vsel %vm383, %v382, 0.0
        %388 = vadd.xlane.f32.xlu0 %v387
        %v389 = vpop.xlane.xlu0 %388
        %v390 = vmax.f32 %v386, 1e-24
        %v391 = vmax.f32 %v389, 1e-24
        %v392 = vrsqrt.pop %v390
        %v393 = vmul.f32 %v392, %v390
        %v394 = vmul.f32 %v393, %v392
        %v395 = vmul.f32 0.5, %v394
        %v396 = vsub.f32 1.5, %v395
        %v397 = vmul.f32 %v392, %v396
        %vm398 = vweird.f32 %v390
        %vm399 = vweird.f32 %v392
        %vm400 = vmor %vm398, %vm399
        %v401 = vsel %vm400, %v392, %v397
        %v402 = vrsqrt.pop %v391
        %v403 = vmul.f32 %v402, %v391
        %v404 = vmul.f32 %v403, %v402
        %v405 = vmul.f32 0.5, %v404
        %v406 = vsub.f32 1.5, %v405
        %v407 = vmul.f32 %v402, %v406
        %vm408 = vweird.f32 %v391
        %vm409 = vweird.f32 %v402
        %vm410 = vmor %vm408, %vm409
        %v411 = vsel %vm410, %v402, %v407
        %v412 = vmul.f32 %v353, %v401
        %v413 = vmul.f32 %v356, %v411
        %416 = vrot.lane.b32.xlu0 %v381, 64
        %v417 = vpop.permute.xlu0 %416
        %418 = vrot.lane.b32.xlu0 %v382, 64
        %v419 = vpop.permute.xlu0 %418
        %v422 = vsel %vm383, %v417, 0.0
        %423 = vadd.xlane.f32.xlu0 %v422
        %v424 = vpop.xlane.xlu0 %423
        %v425 = vsel %vm383, %v419, 0.0
        %426 = vadd.xlane.f32.xlu0 %v425
        %v427 = vpop.xlane.xlu0 %426
        %v428 = vmax.f32 %v424, 1e-24
        %v429 = vmax.f32 %v427, 1e-24
        %v430 = vrsqrt.pop %v428
        %v431 = vmul.f32 %v430, %v428
        %v432 = vmul.f32 %v431, %v430
        %v433 = vmul.f32 0.5, %v432
        %v434 = vsub.f32 1.5, %v433
        %v435 = vmul.f32 %v430, %v434
        %vm436 = vweird.f32 %v428
        %vm437 = vweird.f32 %v430
        %vm438 = vmor %vm436, %vm437
        %v439 = vsel %vm438, %v430, %v435
        %v440 = vrsqrt.pop %v429
        %v441 = vmul.f32 %v440, %v429
        %v442 = vmul.f32 %v441, %v440
        %v443 = vmul.f32 0.5, %v442
        %v444 = vsub.f32 1.5, %v443
        %v445 = vmul.f32 %v440, %v444
        %vm446 = vweird.f32 %v429
        %vm447 = vweird.f32 %v440
        %vm448 = vmor %vm446, %vm447
        %v449 = vsel %vm448, %v440, %v445
        %v450 = vmul.f32 %v353, %v439
        %v451 = vmul.f32 %v356, %v449
        %v452 = vld [vmem:[%s3] sm:$0x1]
        %v454 = vperm.slane %v452, 0
        %v456 = vmul.f32 %v412, %v454
        %v457 = vmul.f32 %v413, %v454
        %v458 = vld [vmem:[%s4] sm:$0x1]
        %v460 = vperm.slane %v458, 0
        %v462 = vadd.f32 %v456, %v460
        %v463 = vadd.f32 %v457, %v460
        %v464 = vld [vmem:[%s5] sm:$0xff]
        %v465 = vld [vmem:[%s5 + $0x8] sm:$0xff]
        %468 = vrot.lane.b32.xlu0 %v450, 64
        %v469 = vpop.permute.xlu0 %468
        %470 = vrot.lane.b32.xlu0 %v451, 64
        %v471 = vpop.permute.xlu0 %470
        %v473 = vsel %vm383, %v462, 0
        %v476 = vsel %vm383, %v463, 0
        %v478 = vsel %vm383, %v469, 0
        %v480 = vsel %vm383, %v471, 0
        %482 = vmatpush.xpose.msra.mxu0 0.0
        %483 = vmatpush.xpose.msra.mxu0 0.0
        %484 = vmatpush.xpose.msra.mxu0 0.0
        %485 = vmatpush.xpose.msra.mxu0 0.0
        %486 = vmatpush.xpose.msra.mxu0 0.0
        %487 = vmatpush.xpose.msra.mxu0 0.0
        %488 = vmatpush.xpose.msra.mxu0 0.0
        %489 = vmatpush.xpose.msra.mxu0 0.0
        %490 = vmatpush.xpose.msra.mxu0 0.0
        %491 = vmatpush.xpose.msra.mxu0 0.0
        %492 = vmatpush.xpose.msra.mxu0 0.0
        %493 = vmatpush.xpose.msra.mxu0 0.0
        %494 = vmatpush.xpose.msra.mxu0 0.0
        %495 = vmatpush.xpose.msra.mxu0 0.0
        %496 = vmatpush.xpose.msra.mxu0 %v480
        %497 = vmatpush.xpose.msra.mxu0 %v478
        %498 = vmatmul.f32.gmra.mxu0 %v473
        %v499 = vpop.f32.mrf.mxu0
        %v500 = vadd.f32 %v464, %v499
        %501 = vmatmul.f32.gmra.mxu0 %v476
        %v502 = vpop.f32.mrf.mxu0
        %v503 = vadd.f32 %v465, %v502
        %504 = vdwg.mxu0
        %vm505 = vcmask 130048
        %v506 = vsel %vm505, %v500, -inf
        %507 = vmax.xlane.f32.xlu0 %v506
        %v508 = vpop.xlane.xlu0 %507
        %v509 = vsel %vm505, %v503, -inf
        %510 = vmax.xlane.f32.xlu0 %v509
        %v511 = vpop.xlane.xlu0 %510
        %v512 = vsub.f32 %v500, %v508
        %v513 = vsub.f32 %v503, %v511
        %v514 = vmul.f32 %v512, 1.442695
        %v515 = vpow.pop %v514
        %v516 = vmul.f32 %v513, 1.442695
        %v517 = vpow.pop %v516
        %v518 = vsel %vm505, %v515, 0.0
        %519 = vadd.xlane.f32.xlu0 %v518
        %v520 = vpop.xlane.xlu0 %519
        %v521 = vsel %vm505, %v517, 0.0
        %522 = vadd.xlane.f32.xlu0 %v521
        %v523 = vpop.xlane.xlu0 %522
        %v524 = vrcp.pop %v520
        %v525 = vmul.f32 %v520, %v524
        %v526 = vsub.f32 1.0, %v525
        %v527 = vmul.f32 %v524, %v526
        %v528 = vadd.f32 %v524, %v527
        %vm529 = vweird.f32 %v520
        %vm530 = vweird.f32 %v524
        %vm531 = vmor %vm529, %vm530
        %v532 = vsel %vm531, %v524, %v528
        %v533 = vand.u32 2147483647, %v520
        %vm534 = vcmp.eq.f32.partialorder %v533, 8.507059e+37
        %v535 = vand.u32 %v520, 2147483648
        %v536 = vor.u32 1.1754944e-38, %v535
        %v537 = vsel %vm534, %v536, %v532
        %v538 = vrcp.pop %v523
        %v539 = vmul.f32 %v523, %v538
        %v540 = vsub.f32 1.0, %v539
        %v541 = vmul.f32 %v538, %v540
        %v542 = vadd.f32 %v538, %v541
        %vm543 = vweird.f32 %v523
        %vm544 = vweird.f32 %v538
        %vm545 = vmor %vm543, %vm544
        %v546 = vsel %vm545, %v538, %v542
        %v547 = vand.u32 2147483647, %v523
        %vm548 = vcmp.eq.f32.partialorder %v547, 8.507059e+37
        %v549 = vand.u32 %v523, 2147483648
        %v550 = vor.u32 1.1754944e-38, %v549
        %v551 = vsel %vm548, %v550, %v546
        %v552 = vmul.f32 %v515, %v537
        %v553 = vmul.f32 %v517, %v551
        %v555 = vsel %vm505, %v552, 0
        %v558 = vsel %vm505, %v553, 0
        %560 = vmatpush.msra.mxu0 0.0
        %561 = vmatpush.msra.mxu0 0.0
        %562 = vmatpush.msra.mxu0 0.0
        %563 = vmatpush.msra.mxu0 0.0
        %564 = vmatpush.msra.mxu0 0.0
        %565 = vmatpush.msra.mxu0 0.0
        %566 = vmatpush.msra.mxu0 0.0
        %567 = vmatpush.msra.mxu0 0.0
        %568 = vmatpush.msra.mxu0 0.0
        %569 = vmatpush.msra.mxu0 0.0
        %570 = vmatpush.msra.mxu0 0.0
        %571 = vmatpush.msra.mxu0 0.0
        %572 = vmatpush.msra.mxu0 0.0
        %573 = vmatpush.msra.mxu0 0.0
        %574 = vmatpush.msra.mxu0 %v379
        %575 = vmatpush.msra.mxu0 %v376
        %576 = vmatmul.f32.gmra.mxu0 %v555
        %v577 = vpop.f32.mrf.mxu0
        %v578 = vadd.f32 0.0, %v577
        %579 = vmatmul.f32.gmra.mxu0 %v558
        %v580 = vpop.f32.mrf.mxu0
        %v581 = vadd.f32 0.0, %v580
        %582 = vdwg.mxu0
        %v583 = vld [vmem:[%s6] sm:$0xff]
        %584 = vrot.lane.b32.xlu0 %v381, 120
        %v585 = vpop.permute.xlu0 %584
        %586 = vrot.lane.b32.xlu0 %v382, 120
        %v587 = vpop.permute.xlu0 %586
        %v590 = vsel %vm383, %v585, 0.0
        %591 = vadd.xlane.f32.xlu0 %v590
        %v592 = vpop.xlane.xlu0 %591
        %v593 = vsel %vm383, %v587, 0.0
        %594 = vadd.xlane.f32.xlu0 %v593
        %v595 = vpop.xlane.xlu0 %594
        %v596 = vmax.f32 %v592, 1e-24
        %v597 = vmax.f32 %v595, 1e-24
        %v598 = vrsqrt.pop %v596
        %v599 = vmul.f32 %v598, %v596
        %v600 = vmul.f32 %v599, %v598
        %v601 = vmul.f32 0.5, %v600
        %v602 = vsub.f32 1.5, %v601
        %v603 = vmul.f32 %v598, %v602
        %vm604 = vweird.f32 %v596
        %vm605 = vweird.f32 %v598
        %vm606 = vmor %vm604, %vm605
        %v607 = vsel %vm606, %v598, %v603
        %v608 = vrsqrt.pop %v597
        %v609 = vmul.f32 %v608, %v597
        %v610 = vmul.f32 %v609, %v608
        %v611 = vmul.f32 0.5, %v610
        %v612 = vsub.f32 1.5, %v611
        %v613 = vmul.f32 %v608, %v612
        %vm614 = vweird.f32 %v597
        %vm615 = vweird.f32 %v608
        %vm616 = vmor %vm614, %vm615
        %v617 = vsel %vm616, %v608, %v613
        %v618 = vmul.f32 %v353, %v607
        %v619 = vmul.f32 %v356, %v617
        %620 = vrot.lane.b32.xlu0 %v381, 56
        %v621 = vpop.permute.xlu0 %620
        %622 = vrot.lane.b32.xlu0 %v382, 56
        %v623 = vpop.permute.xlu0 %622
        %v626 = vsel %vm383, %v621, 0.0
        %627 = vadd.xlane.f32.xlu0 %v626
        %v628 = vpop.xlane.xlu0 %627
        %v629 = vsel %vm383, %v623, 0.0
        %630 = vadd.xlane.f32.xlu0 %v629
        %v631 = vpop.xlane.xlu0 %630
        %v632 = vmax.f32 %v628, 1e-24
        %v633 = vmax.f32 %v631, 1e-24
        %v634 = vrsqrt.pop %v632
        %v635 = vmul.f32 %v634, %v632
        %v636 = vmul.f32 %v635, %v634
        %v637 = vmul.f32 0.5, %v636
        %v638 = vsub.f32 1.5, %v637
        %v639 = vmul.f32 %v634, %v638
        %vm640 = vweird.f32 %v632
        %vm641 = vweird.f32 %v634
        %vm642 = vmor %vm640, %vm641
        %v643 = vsel %vm642, %v634, %v639
        %v644 = vrsqrt.pop %v633
        %v645 = vmul.f32 %v644, %v633
        %v646 = vmul.f32 %v645, %v644
        %v647 = vmul.f32 0.5, %v646
        %v648 = vsub.f32 1.5, %v647
        %v649 = vmul.f32 %v644, %v648
        %vm650 = vweird.f32 %v633
        %vm651 = vweird.f32 %v644
        %vm652 = vmor %vm650, %vm651
        %v653 = vsel %vm652, %v644, %v649
        %v654 = vmul.f32 %v353, %v643
        %v655 = vmul.f32 %v356, %v653
        %s656 = scalar_lea.vmem %s3, 1
        %v657 = vld [vmem:[%s656] sm:$0x1]
        %v659 = vperm.slane %v657, 0
        %660 = vrot.lane.b32.xlu0 %v659, 8
        %v661 = vpop.permute.xlu0 %660
        %v663 = vmul.f32 %v618, %v661
        %v664 = vmul.f32 %v619, %v661
        %s665 = scalar_lea.vmem %s4, 1
        %v666 = vld [vmem:[%s665] sm:$0x1]
        %v668 = vperm.slane %v666, 0
        %669 = vrot.lane.b32.xlu0 %v668, 8
        %v670 = vpop.permute.xlu0 %669
        %v672 = vadd.f32 %v663, %v670
        %v673 = vadd.f32 %v664, %v670
        %s674 = scalar_lea.vmem %s5, 16
        %v675 = vld [vmem:[%s674] sm:$0xff]
        %v676 = vld [vmem:[%s674 + $0x8] sm:$0xff]
        %679 = vrot.lane.b32.xlu0 %v672, 120
        %v680 = vpop.permute.xlu0 %679
        %681 = vrot.lane.b32.xlu0 %v673, 120
        %v682 = vpop.permute.xlu0 %681
        %685 = vrot.lane.b32.xlu0 %v654, 56
        %v686 = vpop.permute.xlu0 %685
        %687 = vrot.lane.b32.xlu0 %v655, 56
        %v688 = vpop.permute.xlu0 %687
        %v689 = vsel %vm383, %v680, 0
        %v691 = vsel %vm383, %v682, 0
        %v693 = vsel %vm383, %v686, 0
        %v695 = vsel %vm383, %v688, 0
        %697 = vmatpush.xpose.msra.mxu0 0.0
        %698 = vmatpush.xpose.msra.mxu0 0.0
        %699 = vmatpush.xpose.msra.mxu0 0.0
        %700 = vmatpush.xpose.msra.mxu0 0.0
        %701 = vmatpush.xpose.msra.mxu0 0.0
        %702 = vmatpush.xpose.msra.mxu0 0.0
        %703 = vmatpush.xpose.msra.mxu0 0.0
        %704 = vmatpush.xpose.msra.mxu0 0.0
        %705 = vmatpush.xpose.msra.mxu0 0.0
        %706 = vmatpush.xpose.msra.mxu0 0.0
        %707 = vmatpush.xpose.msra.mxu0 0.0
        %708 = vmatpush.xpose.msra.mxu0 0.0
        %709 = vmatpush.xpose.msra.mxu0 0.0
        %710 = vmatpush.xpose.msra.mxu0 0.0
        %711 = vmatpush.xpose.msra.mxu0 %v695
        %712 = vmatpush.xpose.msra.mxu0 %v693
        %713 = vmatmul.f32.gmra.mxu0 %v689
        %v714 = vpop.f32.mrf.mxu0
        %v715 = vadd.f32 %v675, %v714
        %716 = vmatmul.f32.gmra.mxu0 %v691
        %v717 = vpop.f32.mrf.mxu0
        %v718 = vadd.f32 %v676, %v717
        %719 = vdwg.mxu0
        %v720 = vsel %vm505, %v715, -inf
        %721 = vmax.xlane.f32.xlu0 %v720
        %v722 = vpop.xlane.xlu0 %721
        %v723 = vsel %vm505, %v718, -inf
        %724 = vmax.xlane.f32.xlu0 %v723
        %v725 = vpop.xlane.xlu0 %724
        %v726 = vsub.f32 %v715, %v722
        %v727 = vsub.f32 %v718, %v725
        %v728 = vmul.f32 %v726, 1.442695
        %v729 = vpow.pop %v728
        %v730 = vmul.f32 %v727, 1.442695
        %v731 = vpow.pop %v730
        %v732 = vsel %vm505, %v729, 0.0
        %733 = vadd.xlane.f32.xlu0 %v732
        %v734 = vpop.xlane.xlu0 %733
        %v735 = vsel %vm505, %v731, 0.0
        %736 = vadd.xlane.f32.xlu0 %v735
        %v737 = vpop.xlane.xlu0 %736
        %v738 = vrcp.pop %v734
        %v739 = vmul.f32 %v734, %v738
        %v740 = vsub.f32 1.0, %v739
        %v741 = vmul.f32 %v738, %v740
        %v742 = vadd.f32 %v738, %v741
        %vm743 = vweird.f32 %v734
        %vm744 = vweird.f32 %v738
        %vm745 = vmor %vm743, %vm744
        %v746 = vsel %vm745, %v738, %v742
        %v747 = vand.u32 2147483647, %v734
        %vm748 = vcmp.eq.f32.partialorder %v747, 8.507059e+37
        %v749 = vand.u32 %v734, 2147483648
        %v750 = vor.u32 1.1754944e-38, %v749
        %v751 = vsel %vm748, %v750, %v746
        %v752 = vrcp.pop %v737
        %v753 = vmul.f32 %v737, %v752
        %v754 = vsub.f32 1.0, %v753
        %v755 = vmul.f32 %v752, %v754
        %v756 = vadd.f32 %v752, %v755
        %vm757 = vweird.f32 %v737
        %vm758 = vweird.f32 %v752
        %vm759 = vmor %vm757, %vm758
        %v760 = vsel %vm759, %v752, %v756
        %v761 = vand.u32 2147483647, %v737
        %vm762 = vcmp.eq.f32.partialorder %v761, 8.507059e+37
        %v763 = vand.u32 %v737, 2147483648
        %v764 = vor.u32 1.1754944e-38, %v763
        %v765 = vsel %vm762, %v764, %v760
        %v766 = vmul.f32 %v729, %v751
        %v767 = vmul.f32 %v731, %v765
        %770 = vrot.lane.b32.xlu0 %v376, 120
        %v771 = vpop.permute.xlu0 %770
        %772 = vrot.lane.b32.xlu0 %v379, 120
        %v773 = vpop.permute.xlu0 %772
        %v777 = vsel %vm505, %v766, 0
        %v780 = vsel %vm505, %v767, 0
        %782 = vmatpush.msra.mxu0 0.0
        %783 = vmatpush.msra.mxu0 0.0
        %784 = vmatpush.msra.mxu0 0.0
        %785 = vmatpush.msra.mxu0 0.0
        %786 = vmatpush.msra.mxu0 0.0
        %787 = vmatpush.msra.mxu0 0.0
        %788 = vmatpush.msra.mxu0 0.0
        %789 = vmatpush.msra.mxu0 0.0
        %790 = vmatpush.msra.mxu0 0.0
        %791 = vmatpush.msra.mxu0 0.0
        %792 = vmatpush.msra.mxu0 0.0
        %793 = vmatpush.msra.mxu0 0.0
        %794 = vmatpush.msra.mxu0 0.0
        %795 = vmatpush.msra.mxu0 0.0
        %796 = vmatpush.msra.mxu0 %v773
        %797 = vmatpush.msra.mxu0 %v771
        %798 = vmatmul.f32.gmra.mxu0 %v777
        %v799 = vpop.f32.mrf.mxu0
        %v800 = vadd.f32 0.0, %v799
        %801 = vmatmul.f32.gmra.mxu0 %v780
        %v802 = vpop.f32.mrf.mxu0
        %v803 = vadd.f32 0.0, %v802
        %804 = vdwg.mxu0
        %v805 = vld [vmem:[%s6 + $0x8] sm:$0xff]
        %v807 = vsel %vm383, %v800, 0
        %v810 = vsel %vm383, %v803, 0
        %812 = vmatpush.msra.mxu0 0.0
        %813 = vmatpush.msra.mxu0 0.0
        %814 = vmatpush.msra.mxu0 0.0
        %815 = vmatpush.msra.mxu0 0.0
        %816 = vmatpush.msra.mxu0 0.0
        %817 = vmatpush.msra.mxu0 0.0
        %818 = vmatpush.msra.mxu0 0.0
        %819 = vmatpush.msra.mxu0 0.0
        %820 = vmatpush.msra.mxu0 0.0
        %821 = vmatpush.msra.mxu0 0.0
        %822 = vmatpush.msra.mxu0 0.0
        %823 = vmatpush.msra.mxu0 0.0
        %824 = vmatpush.msra.mxu0 0.0
        %825 = vmatpush.msra.mxu0 0.0
        %826 = vmatpush.msra.mxu0 0.0
        %827 = vmatpush.msra.mxu0 %v805
        %828 = vmatmul.f32.gmra.mxu0 %v807
        %v829 = vpop.f32.mrf.mxu0
        %v830 = vadd.f32 0.0, %v829
        %831 = vmatmul.f32.gmra.mxu0 %v810
        %v832 = vpop.f32.mrf.mxu0
        %v833 = vadd.f32 0.0, %v832
        %834 = vdwg.mxu0
        %v836 = vsel %vm383, %v578, 0
        %v839 = vsel %vm383, %v581, 0
        %841 = vmatpush.msra.mxu0 0.0
        %842 = vmatpush.msra.mxu0 0.0
        %843 = vmatpush.msra.mxu0 0.0
        %844 = vmatpush.msra.mxu0 0.0
        %845 = vmatpush.msra.mxu0 0.0
        %846 = vmatpush.msra.mxu0 0.0
        %847 = vmatpush.msra.mxu0 0.0
        %848 = vmatpush.msra.mxu0 0.0
        %849 = vmatpush.msra.mxu0 0.0
        %850 = vmatpush.msra.mxu0 0.0
        %851 = vmatpush.msra.mxu0 0.0
        %852 = vmatpush.msra.mxu0 0.0
        %853 = vmatpush.msra.mxu0 0.0
        %854 = vmatpush.msra.mxu0 0.0
        %855 = vmatpush.msra.mxu0 0.0
        %856 = vmatpush.msra.mxu0 %v583
        %857 = vmatmul.f32.gmra.mxu0 %v836
        %v858 = vpop.f32.mrf.mxu0
        %v859 = vadd.f32 %v830, %v858
        %860 = vmatmul.f32.gmra.mxu0 %v839
        %v861 = vpop.f32.mrf.mxu0
        %v862 = vadd.f32 %v833, %v861
        %863 = vdwg.mxu0
        %864 = vrot.lane.b32.xlu0 %v381, 112
        %v865 = vpop.permute.xlu0 %864
        %866 = vrot.lane.b32.xlu0 %v382, 112
        %v867 = vpop.permute.xlu0 %866
        %v870 = vsel %vm383, %v865, 0.0
        %871 = vadd.xlane.f32.xlu0 %v870
        %v872 = vpop.xlane.xlu0 %871
        %v873 = vsel %vm383, %v867, 0.0
        %874 = vadd.xlane.f32.xlu0 %v873
        %v875 = vpop.xlane.xlu0 %874
        %v876 = vmax.f32 %v872, 1e-24
        %v877 = vmax.f32 %v875, 1e-24
        %v878 = vrsqrt.pop %v876
        %v879 = vmul.f32 %v878, %v876
        %v880 = vmul.f32 %v879, %v878
        %v881 = vmul.f32 0.5, %v880
        %v882 = vsub.f32 1.5, %v881
        %v883 = vmul.f32 %v878, %v882
        %vm884 = vweird.f32 %v876
        %vm885 = vweird.f32 %v878
        %vm886 = vmor %vm884, %vm885
        %v887 = vsel %vm886, %v878, %v883
        %v888 = vrsqrt.pop %v877
        %v889 = vmul.f32 %v888, %v877
        %v890 = vmul.f32 %v889, %v888
        %v891 = vmul.f32 0.5, %v890
        %v892 = vsub.f32 1.5, %v891
        %v893 = vmul.f32 %v888, %v892
        %vm894 = vweird.f32 %v877
        %vm895 = vweird.f32 %v888
        %vm896 = vmor %vm894, %vm895
        %v897 = vsel %vm896, %v888, %v893
        %v898 = vmul.f32 %v353, %v887
        %v899 = vmul.f32 %v356, %v897
        %900 = vrot.lane.b32.xlu0 %v381, 48
        %v901 = vpop.permute.xlu0 %900
        %902 = vrot.lane.b32.xlu0 %v382, 48
        %v903 = vpop.permute.xlu0 %902
        %v906 = vsel %vm383, %v901, 0.0
        %907 = vadd.xlane.f32.xlu0 %v906
        %v908 = vpop.xlane.xlu0 %907
        %v909 = vsel %vm383, %v903, 0.0
        %910 = vadd.xlane.f32.xlu0 %v909
        %v911 = vpop.xlane.xlu0 %910
        %v912 = vmax.f32 %v908, 1e-24
        %v913 = vmax.f32 %v911, 1e-24
        %v914 = vrsqrt.pop %v912
        %v915 = vmul.f32 %v914, %v912
        %v916 = vmul.f32 %v915, %v914
        %v917 = vmul.f32 0.5, %v916
        %v918 = vsub.f32 1.5, %v917
        %v919 = vmul.f32 %v914, %v918
        %vm920 = vweird.f32 %v912
        %vm921 = vweird.f32 %v914
        %vm922 = vmor %vm920, %vm921
        %v923 = vsel %vm922, %v914, %v919
        %v924 = vrsqrt.pop %v913
        %v925 = vmul.f32 %v924, %v913
        %v926 = vmul.f32 %v925, %v924
        %v927 = vmul.f32 0.5, %v926
        %v928 = vsub.f32 1.5, %v927
        %v929 = vmul.f32 %v924, %v928
        %vm930 = vweird.f32 %v913
        %vm931 = vweird.f32 %v924
        %vm932 = vmor %vm930, %vm931
        %v933 = vsel %vm932, %v924, %v929
        %v934 = vmul.f32 %v353, %v923
        %v935 = vmul.f32 %v356, %v933
        %s936 = scalar_lea.vmem %s3, 2
        %v937 = vld [vmem:[%s936] sm:$0x1]
        %v939 = vperm.slane %v937, 0
        %940 = vrot.lane.b32.xlu0 %v939, 16
        %v941 = vpop.permute.xlu0 %940
        %v943 = vmul.f32 %v898, %v941
        %v944 = vmul.f32 %v899, %v941
        %s945 = scalar_lea.vmem %s4, 2
        %v946 = vld [vmem:[%s945] sm:$0x1]
        %v948 = vperm.slane %v946, 0
        %949 = vrot.lane.b32.xlu0 %v948, 16
        %v950 = vpop.permute.xlu0 %949
        %v952 = vadd.f32 %v943, %v950
        %v953 = vadd.f32 %v944, %v950
        %s954 = scalar_lea.vmem %s5, 32
        %v955 = vld [vmem:[%s954] sm:$0xff]
        %v956 = vld [vmem:[%s954 + $0x8] sm:$0xff]
        %959 = vrot.lane.b32.xlu0 %v952, 112
        %v960 = vpop.permute.xlu0 %959
        %961 = vrot.lane.b32.xlu0 %v953, 112
        %v962 = vpop.permute.xlu0 %961
        %965 = vrot.lane.b32.xlu0 %v934, 48
        %v966 = vpop.permute.xlu0 %965
        %967 = vrot.lane.b32.xlu0 %v935, 48
        %v968 = vpop.permute.xlu0 %967
        %v969 = vsel %vm383, %v960, 0
        %v971 = vsel %vm383, %v962, 0
        %v973 = vsel %vm383, %v966, 0
        %v975 = vsel %vm383, %v968, 0
        %977 = vmatpush.xpose.msra.mxu0 0.0
        %978 = vmatpush.xpose.msra.mxu0 0.0
        %979 = vmatpush.xpose.msra.mxu0 0.0
        %980 = vmatpush.xpose.msra.mxu0 0.0
        %981 = vmatpush.xpose.msra.mxu0 0.0
        %982 = vmatpush.xpose.msra.mxu0 0.0
        %983 = vmatpush.xpose.msra.mxu0 0.0
        %984 = vmatpush.xpose.msra.mxu0 0.0
        %985 = vmatpush.xpose.msra.mxu0 0.0
        %986 = vmatpush.xpose.msra.mxu0 0.0
        %987 = vmatpush.xpose.msra.mxu0 0.0
        %988 = vmatpush.xpose.msra.mxu0 0.0
        %989 = vmatpush.xpose.msra.mxu0 0.0
        %990 = vmatpush.xpose.msra.mxu0 0.0
        %991 = vmatpush.xpose.msra.mxu0 %v975
        %992 = vmatpush.xpose.msra.mxu0 %v973
        %993 = vmatmul.f32.gmra.mxu0 %v969
        %v994 = vpop.f32.mrf.mxu0
        %v995 = vadd.f32 %v955, %v994
        %996 = vmatmul.f32.gmra.mxu0 %v971
        %v997 = vpop.f32.mrf.mxu0
        %v998 = vadd.f32 %v956, %v997
        %999 = vdwg.mxu0
        %v1000 = vsel %vm505, %v995, -inf
        %1001 = vmax.xlane.f32.xlu0 %v1000
        %v1002 = vpop.xlane.xlu0 %1001
        %v1003 = vsel %vm505, %v998, -inf
        %1004 = vmax.xlane.f32.xlu0 %v1003
        %v1005 = vpop.xlane.xlu0 %1004
        %v1006 = vsub.f32 %v995, %v1002
        %v1007 = vsub.f32 %v998, %v1005
        %v1008 = vmul.f32 %v1006, 1.442695
        %v1009 = vpow.pop %v1008
        %v1010 = vmul.f32 %v1007, 1.442695
        %v1011 = vpow.pop %v1010
        %v1012 = vsel %vm505, %v1009, 0.0
        %1013 = vadd.xlane.f32.xlu0 %v1012
        %v1014 = vpop.xlane.xlu0 %1013
        %v1015 = vsel %vm505, %v1011, 0.0
        %1016 = vadd.xlane.f32.xlu0 %v1015
        %v1017 = vpop.xlane.xlu0 %1016
        %v1018 = vrcp.pop %v1014
        %v1019 = vmul.f32 %v1014, %v1018
        %v1020 = vsub.f32 1.0, %v1019
        %v1021 = vmul.f32 %v1018, %v1020
        %v1022 = vadd.f32 %v1018, %v1021
        %vm1023 = vweird.f32 %v1014
        %vm1024 = vweird.f32 %v1018
        %vm1025 = vmor %vm1023, %vm1024
        %v1026 = vsel %vm1025, %v1018, %v1022
        %v1027 = vand.u32 2147483647, %v1014
        %vm1028 = vcmp.eq.f32.partialorder %v1027, 8.507059e+37
        %v1029 = vand.u32 %v1014, 2147483648
        %v1030 = vor.u32 1.1754944e-38, %v1029
        %v1031 = vsel %vm1028, %v1030, %v1026
        %v1032 = vrcp.pop %v1017
        %v1033 = vmul.f32 %v1017, %v1032
        %v1034 = vsub.f32 1.0, %v1033
        %v1035 = vmul.f32 %v1032, %v1034
        %v1036 = vadd.f32 %v1032, %v1035
        %vm1037 = vweird.f32 %v1017
        %vm1038 = vweird.f32 %v1032
        %vm1039 = vmor %vm1037, %vm1038
        %v1040 = vsel %vm1039, %v1032, %v1036
        %v1041 = vand.u32 2147483647, %v1017
        %vm1042 = vcmp.eq.f32.partialorder %v1041, 8.507059e+37
        %v1043 = vand.u32 %v1017, 2147483648
        %v1044 = vor.u32 1.1754944e-38, %v1043
        %v1045 = vsel %vm1042, %v1044, %v1040
        %v1046 = vmul.f32 %v1009, %v1031
        %v1047 = vmul.f32 %v1011, %v1045
        %1048 = vrot.lane.b32.xlu0 %v376, 112
        %v1049 = vpop.permute.xlu0 %1048
        %1050 = vrot.lane.b32.xlu0 %v379, 112
        %v1051 = vpop.permute.xlu0 %1050
        %v1055 = vsel %vm505, %v1046, 0
        %v1058 = vsel %vm505, %v1047, 0
        %1060 = vmatpush.msra.mxu0 0.0
        %1061 = vmatpush.msra.mxu0 0.0
        %1062 = vmatpush.msra.mxu0 0.0
        %1063 = vmatpush.msra.mxu0 0.0
        %1064 = vmatpush.msra.mxu0 0.0
        %1065 = vmatpush.msra.mxu0 0.0
        %1066 = vmatpush.msra.mxu0 0.0
        %1067 = vmatpush.msra.mxu0 0.0
        %1068 = vmatpush.msra.mxu0 0.0
        %1069 = vmatpush.msra.mxu0 0.0
        %1070 = vmatpush.msra.mxu0 0.0
        %1071 = vmatpush.msra.mxu0 0.0
        %1072 = vmatpush.msra.mxu0 0.0
        %1073 = vmatpush.msra.mxu0 0.0
        %1074 = vmatpush.msra.mxu0 %v1051
        %1075 = vmatpush.msra.mxu0 %v1049
        %1076 = vmatmul.f32.gmra.mxu0 %v1055
        %v1077 = vpop.f32.mrf.mxu0
        %v1078 = vadd.f32 0.0, %v1077
        %1079 = vmatmul.f32.gmra.mxu0 %v1058
        %v1080 = vpop.f32.mrf.mxu0
        %v1081 = vadd.f32 0.0, %v1080
        %1082 = vdwg.mxu0
        %v1083 = vld [vmem:[%s6 + $0x10] sm:$0xff]
        %v1085 = vsel %vm383, %v1078, 0
        %v1088 = vsel %vm383, %v1081, 0
        %1090 = vmatpush.msra.mxu0 0.0
        %1091 = vmatpush.msra.mxu0 0.0
        %1092 = vmatpush.msra.mxu0 0.0
        %1093 = vmatpush.msra.mxu0 0.0
        %1094 = vmatpush.msra.mxu0 0.0
        %1095 = vmatpush.msra.mxu0 0.0
        %1096 = vmatpush.msra.mxu0 0.0
        %1097 = vmatpush.msra.mxu0 0.0
        %1098 = vmatpush.msra.mxu0 0.0
        %1099 = vmatpush.msra.mxu0 0.0
        %1100 = vmatpush.msra.mxu0 0.0
        %1101 = vmatpush.msra.mxu0 0.0
        %1102 = vmatpush.msra.mxu0 0.0
        %1103 = vmatpush.msra.mxu0 0.0
        %1104 = vmatpush.msra.mxu0 0.0
        %1105 = vmatpush.msra.mxu0 %v1083
        %1106 = vmatmul.f32.gmra.mxu0 %v1085
        %v1107 = vpop.f32.mrf.mxu0
        %v1108 = vadd.f32 0.0, %v1107
        %1109 = vmatmul.f32.gmra.mxu0 %v1088
        %v1110 = vpop.f32.mrf.mxu0
        %v1111 = vadd.f32 0.0, %v1110
        %1112 = vdwg.mxu0
        %v1113 = vadd.f32 %v859, %v1108
        %v1114 = vadd.f32 %v862, %v1111
        %1115 = vrot.lane.b32.xlu0 %v381, 104
        %v1116 = vpop.permute.xlu0 %1115
        %1117 = vrot.lane.b32.xlu0 %v382, 104
        %v1118 = vpop.permute.xlu0 %1117
        %v1121 = vsel %vm383, %v1116, 0.0
        %1122 = vadd.xlane.f32.xlu0 %v1121
        %v1123 = vpop.xlane.xlu0 %1122
        %v1124 = vsel %vm383, %v1118, 0.0
        %1125 = vadd.xlane.f32.xlu0 %v1124
        %v1126 = vpop.xlane.xlu0 %1125
        %v1127 = vmax.f32 %v1123, 1e-24
        %v1128 = vmax.f32 %v1126, 1e-24
        %v1129 = vrsqrt.pop %v1127
        %v1130 = vmul.f32 %v1129, %v1127
        %v1131 = vmul.f32 %v1130, %v1129
        %v1132 = vmul.f32 0.5, %v1131
        %v1133 = vsub.f32 1.5, %v1132
        %v1134 = vmul.f32 %v1129, %v1133
        %vm1135 = vweird.f32 %v1127
        %vm1136 = vweird.f32 %v1129
        %vm1137 = vmor %vm1135, %vm1136
        %v1138 = vsel %vm1137, %v1129, %v1134
        %v1139 = vrsqrt.pop %v1128
        %v1140 = vmul.f32 %v1139, %v1128
        %v1141 = vmul.f32 %v1140, %v1139
        %v1142 = vmul.f32 0.5, %v1141
        %v1143 = vsub.f32 1.5, %v1142
        %v1144 = vmul.f32 %v1139, %v1143
        %vm1145 = vweird.f32 %v1128
        %vm1146 = vweird.f32 %v1139
        %vm1147 = vmor %vm1145, %vm1146
        %v1148 = vsel %vm1147, %v1139, %v1144
        %v1149 = vmul.f32 %v353, %v1138
        %v1150 = vmul.f32 %v356, %v1148
        %1151 = vrot.lane.b32.xlu0 %v381, 40
        %v1152 = vpop.permute.xlu0 %1151
        %1153 = vrot.lane.b32.xlu0 %v382, 40
        %v1154 = vpop.permute.xlu0 %1153
        %v1157 = vsel %vm383, %v1152, 0.0
        %1158 = vadd.xlane.f32.xlu0 %v1157
        %v1159 = vpop.xlane.xlu0 %1158
        %v1160 = vsel %vm383, %v1154, 0.0
        %1161 = vadd.xlane.f32.xlu0 %v1160
        %v1162 = vpop.xlane.xlu0 %1161
        %v1163 = vmax.f32 %v1159, 1e-24
        %v1164 = vmax.f32 %v1162, 1e-24
        %v1165 = vrsqrt.pop %v1163
        %v1166 = vmul.f32 %v1165, %v1163
        %v1167 = vmul.f32 %v1166, %v1165
        %v1168 = vmul.f32 0.5, %v1167
        %v1169 = vsub.f32 1.5, %v1168
        %v1170 = vmul.f32 %v1165, %v1169
        %vm1171 = vweird.f32 %v1163
        %vm1172 = vweird.f32 %v1165
        %vm1173 = vmor %vm1171, %vm1172
        %v1174 = vsel %vm1173, %v1165, %v1170
        %v1175 = vrsqrt.pop %v1164
        %v1176 = vmul.f32 %v1175, %v1164
        %v1177 = vmul.f32 %v1176, %v1175
        %v1178 = vmul.f32 0.5, %v1177
        %v1179 = vsub.f32 1.5, %v1178
        %v1180 = vmul.f32 %v1175, %v1179
        %vm1181 = vweird.f32 %v1164
        %vm1182 = vweird.f32 %v1175
        %vm1183 = vmor %vm1181, %vm1182
        %v1184 = vsel %vm1183, %v1175, %v1180
        %v1185 = vmul.f32 %v353, %v1174
        %v1186 = vmul.f32 %v356, %v1184
        %s1187 = scalar_lea.vmem %s3, 3
        %v1188 = vld [vmem:[%s1187] sm:$0x1]
        %v1190 = vperm.slane %v1188, 0
        %1191 = vrot.lane.b32.xlu0 %v1190, 24
        %v1192 = vpop.permute.xlu0 %1191
        %v1194 = vmul.f32 %v1149, %v1192
        %v1195 = vmul.f32 %v1150, %v1192
        %s1196 = scalar_lea.vmem %s4, 3
        %v1197 = vld [vmem:[%s1196] sm:$0x1]
        %v1199 = vperm.slane %v1197, 0
        %1200 = vrot.lane.b32.xlu0 %v1199, 24
        %v1201 = vpop.permute.xlu0 %1200
        %v1203 = vadd.f32 %v1194, %v1201
        %v1204 = vadd.f32 %v1195, %v1201
        %s1205 = scalar_lea.vmem %s5, 48
        %v1206 = vld [vmem:[%s1205] sm:$0xff]
        %v1207 = vld [vmem:[%s1205 + $0x8] sm:$0xff]
        %1210 = vrot.lane.b32.xlu0 %v1203, 104
        %v1211 = vpop.permute.xlu0 %1210
        %1212 = vrot.lane.b32.xlu0 %v1204, 104
        %v1213 = vpop.permute.xlu0 %1212
        %1216 = vrot.lane.b32.xlu0 %v1185, 40
        %v1217 = vpop.permute.xlu0 %1216
        %1218 = vrot.lane.b32.xlu0 %v1186, 40
        %v1219 = vpop.permute.xlu0 %1218
        %v1220 = vsel %vm383, %v1211, 0
        %v1222 = vsel %vm383, %v1213, 0
        %v1224 = vsel %vm383, %v1217, 0
        %v1226 = vsel %vm383, %v1219, 0
        %1228 = vmatpush.xpose.msra.mxu0 0.0
        %1229 = vmatpush.xpose.msra.mxu0 0.0
        %1230 = vmatpush.xpose.msra.mxu0 0.0
        %1231 = vmatpush.xpose.msra.mxu0 0.0
        %1232 = vmatpush.xpose.msra.mxu0 0.0
        %1233 = vmatpush.xpose.msra.mxu0 0.0
        %1234 = vmatpush.xpose.msra.mxu0 0.0
        %1235 = vmatpush.xpose.msra.mxu0 0.0
        %1236 = vmatpush.xpose.msra.mxu0 0.0
        %1237 = vmatpush.xpose.msra.mxu0 0.0
        %1238 = vmatpush.xpose.msra.mxu0 0.0
        %1239 = vmatpush.xpose.msra.mxu0 0.0
        %1240 = vmatpush.xpose.msra.mxu0 0.0
        %1241 = vmatpush.xpose.msra.mxu0 0.0
        %1242 = vmatpush.xpose.msra.mxu0 %v1226
        %1243 = vmatpush.xpose.msra.mxu0 %v1224
        %1244 = vmatmul.f32.gmra.mxu0 %v1220
        %v1245 = vpop.f32.mrf.mxu0
        %v1246 = vadd.f32 %v1206, %v1245
        %1247 = vmatmul.f32.gmra.mxu0 %v1222
        %v1248 = vpop.f32.mrf.mxu0
        %v1249 = vadd.f32 %v1207, %v1248
        %1250 = vdwg.mxu0
        %v1251 = vsel %vm505, %v1246, -inf
        %1252 = vmax.xlane.f32.xlu0 %v1251
        %v1253 = vpop.xlane.xlu0 %1252
        %v1254 = vsel %vm505, %v1249, -inf
        %1255 = vmax.xlane.f32.xlu0 %v1254
        %v1256 = vpop.xlane.xlu0 %1255
        %v1257 = vsub.f32 %v1246, %v1253
        %v1258 = vsub.f32 %v1249, %v1256
        %v1259 = vmul.f32 %v1257, 1.442695
        %v1260 = vpow.pop %v1259
        %v1261 = vmul.f32 %v1258, 1.442695
        %v1262 = vpow.pop %v1261
        %v1263 = vsel %vm505, %v1260, 0.0
        %1264 = vadd.xlane.f32.xlu0 %v1263
        %v1265 = vpop.xlane.xlu0 %1264
        %v1266 = vsel %vm505, %v1262, 0.0
        %1267 = vadd.xlane.f32.xlu0 %v1266
        %v1268 = vpop.xlane.xlu0 %1267
        %v1269 = vrcp.pop %v1265
        %v1270 = vmul.f32 %v1265, %v1269
        %v1271 = vsub.f32 1.0, %v1270
        %v1272 = vmul.f32 %v1269, %v1271
        %v1273 = vadd.f32 %v1269, %v1272
        %vm1274 = vweird.f32 %v1265
        %vm1275 = vweird.f32 %v1269
        %vm1276 = vmor %vm1274, %vm1275
        %v1277 = vsel %vm1276, %v1269, %v1273
        %v1278 = vand.u32 2147483647, %v1265
        %vm1279 = vcmp.eq.f32.partialorder %v1278, 8.507059e+37
        %v1280 = vand.u32 %v1265, 2147483648
        %v1281 = vor.u32 1.1754944e-38, %v1280
        %v1282 = vsel %vm1279, %v1281, %v1277
        %v1283 = vrcp.pop %v1268
        %v1284 = vmul.f32 %v1268, %v1283
        %v1285 = vsub.f32 1.0, %v1284
        %v1286 = vmul.f32 %v1283, %v1285
        %v1287 = vadd.f32 %v1283, %v1286
        %vm1288 = vweird.f32 %v1268
        %vm1289 = vweird.f32 %v1283
        %vm1290 = vmor %vm1288, %vm1289
        %v1291 = vsel %vm1290, %v1283, %v1287
        %v1292 = vand.u32 2147483647, %v1268
        %vm1293 = vcmp.eq.f32.partialorder %v1292, 8.507059e+37
        %v1294 = vand.u32 %v1268, 2147483648
        %v1295 = vor.u32 1.1754944e-38, %v1294
        %v1296 = vsel %vm1293, %v1295, %v1291
        %v1297 = vmul.f32 %v1260, %v1282
        %v1298 = vmul.f32 %v1262, %v1296
        %1299 = vrot.lane.b32.xlu0 %v376, 104
        %v1300 = vpop.permute.xlu0 %1299
        %1301 = vrot.lane.b32.xlu0 %v379, 104
        %v1302 = vpop.permute.xlu0 %1301
        %v1306 = vsel %vm505, %v1297, 0
        %v1309 = vsel %vm505, %v1298, 0
        %1311 = vmatpush.msra.mxu0 0.0
        %1312 = vmatpush.msra.mxu0 0.0
        %1313 = vmatpush.msra.mxu0 0.0
        %1314 = vmatpush.msra.mxu0 0.0
        %1315 = vmatpush.msra.mxu0 0.0
        %1316 = vmatpush.msra.mxu0 0.0
        %1317 = vmatpush.msra.mxu0 0.0
        %1318 = vmatpush.msra.mxu0 0.0
        %1319 = vmatpush.msra.mxu0 0.0
        %1320 = vmatpush.msra.mxu0 0.0
        %1321 = vmatpush.msra.mxu0 0.0
        %1322 = vmatpush.msra.mxu0 0.0
        %1323 = vmatpush.msra.mxu0 0.0
        %1324 = vmatpush.msra.mxu0 0.0
        %1325 = vmatpush.msra.mxu0 %v1302
        %1326 = vmatpush.msra.mxu0 %v1300
        %1327 = vmatmul.f32.gmra.mxu0 %v1306
        %v1328 = vpop.f32.mrf.mxu0
        %v1329 = vadd.f32 0.0, %v1328
        %1330 = vmatmul.f32.gmra.mxu0 %v1309
        %v1331 = vpop.f32.mrf.mxu0
        %v1332 = vadd.f32 0.0, %v1331
        %1333 = vdwg.mxu0
        %v1334 = vld [vmem:[%s6 + $0x18] sm:$0xff]
        %v1336 = vsel %vm383, %v1329, 0
        %v1339 = vsel %vm383, %v1332, 0
        %1341 = vmatpush.msra.mxu0 0.0
        %1342 = vmatpush.msra.mxu0 0.0
        %1343 = vmatpush.msra.mxu0 0.0
        %1344 = vmatpush.msra.mxu0 0.0
        %1345 = vmatpush.msra.mxu0 0.0
        %1346 = vmatpush.msra.mxu0 0.0
        %1347 = vmatpush.msra.mxu0 0.0
        %1348 = vmatpush.msra.mxu0 0.0
        %1349 = vmatpush.msra.mxu0 0.0
        %1350 = vmatpush.msra.mxu0 0.0
        %1351 = vmatpush.msra.mxu0 0.0
        %1352 = vmatpush.msra.mxu0 0.0
        %1353 = vmatpush.msra.mxu0 0.0
        %1354 = vmatpush.msra.mxu0 0.0
        %1355 = vmatpush.msra.mxu0 0.0
        %1356 = vmatpush.msra.mxu0 %v1334
        %1357 = vmatmul.f32.gmra.mxu0 %v1336
        %v1358 = vpop.f32.mrf.mxu0
        %v1359 = vadd.f32 0.0, %v1358
        %1360 = vmatmul.f32.gmra.mxu0 %v1339
        %v1361 = vpop.f32.mrf.mxu0
        %v1362 = vadd.f32 0.0, %v1361
        %1363 = vdwg.mxu0
        %v1364 = vadd.f32 %v1113, %v1359
        %v1365 = vadd.f32 %v1114, %v1362
        %1366 = vrot.lane.b32.xlu0 %v381, 96
        %v1367 = vpop.permute.xlu0 %1366
        %1368 = vrot.lane.b32.xlu0 %v382, 96
        %v1369 = vpop.permute.xlu0 %1368
        %v1372 = vsel %vm383, %v1367, 0.0
        %1373 = vadd.xlane.f32.xlu0 %v1372
        %v1374 = vpop.xlane.xlu0 %1373
        %v1375 = vsel %vm383, %v1369, 0.0
        %1376 = vadd.xlane.f32.xlu0 %v1375
        %v1377 = vpop.xlane.xlu0 %1376
        %v1378 = vmax.f32 %v1374, 1e-24
        %v1379 = vmax.f32 %v1377, 1e-24
        %v1380 = vrsqrt.pop %v1378
        %v1381 = vmul.f32 %v1380, %v1378
        %v1382 = vmul.f32 %v1381, %v1380
        %v1383 = vmul.f32 0.5, %v1382
        %v1384 = vsub.f32 1.5, %v1383
        %v1385 = vmul.f32 %v1380, %v1384
        %vm1386 = vweird.f32 %v1378
        %vm1387 = vweird.f32 %v1380
        %vm1388 = vmor %vm1386, %vm1387
        %v1389 = vsel %vm1388, %v1380, %v1385
        %v1390 = vrsqrt.pop %v1379
        %v1391 = vmul.f32 %v1390, %v1379
        %v1392 = vmul.f32 %v1391, %v1390
        %v1393 = vmul.f32 0.5, %v1392
        %v1394 = vsub.f32 1.5, %v1393
        %v1395 = vmul.f32 %v1390, %v1394
        %vm1396 = vweird.f32 %v1379
        %vm1397 = vweird.f32 %v1390
        %vm1398 = vmor %vm1396, %vm1397
        %v1399 = vsel %vm1398, %v1390, %v1395
        %v1400 = vmul.f32 %v353, %v1389
        %v1401 = vmul.f32 %v356, %v1399
        %1402 = vrot.lane.b32.xlu0 %v381, 32
        %v1403 = vpop.permute.xlu0 %1402
        %1404 = vrot.lane.b32.xlu0 %v382, 32
        %v1405 = vpop.permute.xlu0 %1404
        %v1408 = vsel %vm383, %v1403, 0.0
        %1409 = vadd.xlane.f32.xlu0 %v1408
        %v1410 = vpop.xlane.xlu0 %1409
        %v1411 = vsel %vm383, %v1405, 0.0
        %1412 = vadd.xlane.f32.xlu0 %v1411
        %v1413 = vpop.xlane.xlu0 %1412
        %v1414 = vmax.f32 %v1410, 1e-24
        %v1415 = vmax.f32 %v1413, 1e-24
        %v1416 = vrsqrt.pop %v1414
        %v1417 = vmul.f32 %v1416, %v1414
        %v1418 = vmul.f32 %v1417, %v1416
        %v1419 = vmul.f32 0.5, %v1418
        %v1420 = vsub.f32 1.5, %v1419
        %v1421 = vmul.f32 %v1416, %v1420
        %vm1422 = vweird.f32 %v1414
        %vm1423 = vweird.f32 %v1416
        %vm1424 = vmor %vm1422, %vm1423
        %v1425 = vsel %vm1424, %v1416, %v1421
        %v1426 = vrsqrt.pop %v1415
        %v1427 = vmul.f32 %v1426, %v1415
        %v1428 = vmul.f32 %v1427, %v1426
        %v1429 = vmul.f32 0.5, %v1428
        %v1430 = vsub.f32 1.5, %v1429
        %v1431 = vmul.f32 %v1426, %v1430
        %vm1432 = vweird.f32 %v1415
        %vm1433 = vweird.f32 %v1426
        %vm1434 = vmor %vm1432, %vm1433
        %v1435 = vsel %vm1434, %v1426, %v1431
        %v1436 = vmul.f32 %v353, %v1425
        %v1437 = vmul.f32 %v356, %v1435
        %s1438 = scalar_lea.vmem %s3, 4
        %v1439 = vld [vmem:[%s1438] sm:$0x1]
        %v1441 = vperm.slane %v1439, 0
        %1442 = vrot.lane.b32.xlu0 %v1441, 32
        %v1443 = vpop.permute.xlu0 %1442
        %v1445 = vmul.f32 %v1400, %v1443
        %v1446 = vmul.f32 %v1401, %v1443
        %s1447 = scalar_lea.vmem %s4, 4
        %v1448 = vld [vmem:[%s1447] sm:$0x1]
        %v1450 = vperm.slane %v1448, 0
        %1451 = vrot.lane.b32.xlu0 %v1450, 32
        %v1452 = vpop.permute.xlu0 %1451
        %v1454 = vadd.f32 %v1445, %v1452
        %v1455 = vadd.f32 %v1446, %v1452
        %s1456 = scalar_lea.vmem %s5, 64
        %v1457 = vld [vmem:[%s1456] sm:$0xff]
        %v1458 = vld [vmem:[%s1456 + $0x8] sm:$0xff]
        %1461 = vrot.lane.b32.xlu0 %v1454, 96
        %v1462 = vpop.permute.xlu0 %1461
        %1463 = vrot.lane.b32.xlu0 %v1455, 96
        %v1464 = vpop.permute.xlu0 %1463
        %1467 = vrot.lane.b32.xlu0 %v1436, 32
        %v1468 = vpop.permute.xlu0 %1467
        %1469 = vrot.lane.b32.xlu0 %v1437, 32
        %v1470 = vpop.permute.xlu0 %1469
        %v1471 = vsel %vm383, %v1462, 0
        %v1473 = vsel %vm383, %v1464, 0
        %v1475 = vsel %vm383, %v1468, 0
        %v1477 = vsel %vm383, %v1470, 0
        %1479 = vmatpush.xpose.msra.mxu0 0.0
        %1480 = vmatpush.xpose.msra.mxu0 0.0
        %1481 = vmatpush.xpose.msra.mxu0 0.0
        %1482 = vmatpush.xpose.msra.mxu0 0.0
        %1483 = vmatpush.xpose.msra.mxu0 0.0
        %1484 = vmatpush.xpose.msra.mxu0 0.0
        %1485 = vmatpush.xpose.msra.mxu0 0.0
        %1486 = vmatpush.xpose.msra.mxu0 0.0
        %1487 = vmatpush.xpose.msra.mxu0 0.0
        %1488 = vmatpush.xpose.msra.mxu0 0.0
        %1489 = vmatpush.xpose.msra.mxu0 0.0
        %1490 = vmatpush.xpose.msra.mxu0 0.0
        %1491 = vmatpush.xpose.msra.mxu0 0.0
        %1492 = vmatpush.xpose.msra.mxu0 0.0
        %1493 = vmatpush.xpose.msra.mxu0 %v1477
        %1494 = vmatpush.xpose.msra.mxu0 %v1475
        %1495 = vmatmul.f32.gmra.mxu0 %v1471
        %v1496 = vpop.f32.mrf.mxu0
        %v1497 = vadd.f32 %v1457, %v1496
        %1498 = vmatmul.f32.gmra.mxu0 %v1473
        %v1499 = vpop.f32.mrf.mxu0
        %v1500 = vadd.f32 %v1458, %v1499
        %1501 = vdwg.mxu0
        %v1502 = vsel %vm505, %v1497, -inf
        %1503 = vmax.xlane.f32.xlu0 %v1502
        %v1504 = vpop.xlane.xlu0 %1503
        %v1505 = vsel %vm505, %v1500, -inf
        %1506 = vmax.xlane.f32.xlu0 %v1505
        %v1507 = vpop.xlane.xlu0 %1506
        %v1508 = vsub.f32 %v1497, %v1504
        %v1509 = vsub.f32 %v1500, %v1507
        %v1510 = vmul.f32 %v1508, 1.442695
        %v1511 = vpow.pop %v1510
        %v1512 = vmul.f32 %v1509, 1.442695
        %v1513 = vpow.pop %v1512
        %v1514 = vsel %vm505, %v1511, 0.0
        %1515 = vadd.xlane.f32.xlu0 %v1514
        %v1516 = vpop.xlane.xlu0 %1515
        %v1517 = vsel %vm505, %v1513, 0.0
        %1518 = vadd.xlane.f32.xlu0 %v1517
        %v1519 = vpop.xlane.xlu0 %1518
        %v1520 = vrcp.pop %v1516
        %v1521 = vmul.f32 %v1516, %v1520
        %v1522 = vsub.f32 1.0, %v1521
        %v1523 = vmul.f32 %v1520, %v1522
        %v1524 = vadd.f32 %v1520, %v1523
        %vm1525 = vweird.f32 %v1516
        %vm1526 = vweird.f32 %v1520
        %vm1527 = vmor %vm1525, %vm1526
        %v1528 = vsel %vm1527, %v1520, %v1524
        %v1529 = vand.u32 2147483647, %v1516
        %vm1530 = vcmp.eq.f32.partialorder %v1529, 8.507059e+37
        %v1531 = vand.u32 %v1516, 2147483648
        %v1532 = vor.u32 1.1754944e-38, %v1531
        %v1533 = vsel %vm1530, %v1532, %v1528
        %v1534 = vrcp.pop %v1519
        %v1535 = vmul.f32 %v1519, %v1534
        %v1536 = vsub.f32 1.0, %v1535
        %v1537 = vmul.f32 %v1534, %v1536
        %v1538 = vadd.f32 %v1534, %v1537
        %vm1539 = vweird.f32 %v1519
        %vm1540 = vweird.f32 %v1534
        %vm1541 = vmor %vm1539, %vm1540
        %v1542 = vsel %vm1541, %v1534, %v1538
        %v1543 = vand.u32 2147483647, %v1519
        %vm1544 = vcmp.eq.f32.partialorder %v1543, 8.507059e+37
        %v1545 = vand.u32 %v1519, 2147483648
        %v1546 = vor.u32 1.1754944e-38, %v1545
        %v1547 = vsel %vm1544, %v1546, %v1542
        %v1548 = vmul.f32 %v1511, %v1533
        %v1549 = vmul.f32 %v1513, %v1547
        %1550 = vrot.lane.b32.xlu0 %v376, 96
        %v1551 = vpop.permute.xlu0 %1550
        %1552 = vrot.lane.b32.xlu0 %v379, 96
        %v1553 = vpop.permute.xlu0 %1552
        %v1557 = vsel %vm505, %v1548, 0
        %v1560 = vsel %vm505, %v1549, 0
        %1562 = vmatpush.msra.mxu0 0.0
        %1563 = vmatpush.msra.mxu0 0.0
        %1564 = vmatpush.msra.mxu0 0.0
        %1565 = vmatpush.msra.mxu0 0.0
        %1566 = vmatpush.msra.mxu0 0.0
        %1567 = vmatpush.msra.mxu0 0.0
        %1568 = vmatpush.msra.mxu0 0.0
        %1569 = vmatpush.msra.mxu0 0.0
        %1570 = vmatpush.msra.mxu0 0.0
        %1571 = vmatpush.msra.mxu0 0.0
        %1572 = vmatpush.msra.mxu0 0.0
        %1573 = vmatpush.msra.mxu0 0.0
        %1574 = vmatpush.msra.mxu0 0.0
        %1575 = vmatpush.msra.mxu0 0.0
        %1576 = vmatpush.msra.mxu0 %v1553
        %1577 = vmatpush.msra.mxu0 %v1551
        %1578 = vmatmul.f32.gmra.mxu0 %v1557
        %v1579 = vpop.f32.mrf.mxu0
        %v1580 = vadd.f32 0.0, %v1579
        %1581 = vmatmul.f32.gmra.mxu0 %v1560
        %v1582 = vpop.f32.mrf.mxu0
        %v1583 = vadd.f32 0.0, %v1582
        %1584 = vdwg.mxu0
        %v1585 = vld [vmem:[%s6 + $0x20] sm:$0xff]
        %v1587 = vsel %vm383, %v1580, 0
        %v1590 = vsel %vm383, %v1583, 0
        %1592 = vmatpush.msra.mxu0 0.0
        %1593 = vmatpush.msra.mxu0 0.0
        %1594 = vmatpush.msra.mxu0 0.0
        %1595 = vmatpush.msra.mxu0 0.0
        %1596 = vmatpush.msra.mxu0 0.0
        %1597 = vmatpush.msra.mxu0 0.0
        %1598 = vmatpush.msra.mxu0 0.0
        %1599 = vmatpush.msra.mxu0 0.0
        %1600 = vmatpush.msra.mxu0 0.0
        %1601 = vmatpush.msra.mxu0 0.0
        %1602 = vmatpush.msra.mxu0 0.0
        %1603 = vmatpush.msra.mxu0 0.0
        %1604 = vmatpush.msra.mxu0 0.0
        %1605 = vmatpush.msra.mxu0 0.0
        %1606 = vmatpush.msra.mxu0 0.0
        %1607 = vmatpush.msra.mxu0 %v1585
        %1608 = vmatmul.f32.gmra.mxu0 %v1587
        %v1609 = vpop.f32.mrf.mxu0
        %v1610 = vadd.f32 0.0, %v1609
        %1611 = vmatmul.f32.gmra.mxu0 %v1590
        %v1612 = vpop.f32.mrf.mxu0
        %v1613 = vadd.f32 0.0, %v1612
        %1614 = vdwg.mxu0
        %v1615 = vadd.f32 %v1364, %v1610
        %v1616 = vadd.f32 %v1365, %v1613
        %1617 = vrot.lane.b32.xlu0 %v381, 88
        %v1618 = vpop.permute.xlu0 %1617
        %1619 = vrot.lane.b32.xlu0 %v382, 88
        %v1620 = vpop.permute.xlu0 %1619
        %v1623 = vsel %vm383, %v1618, 0.0
        %1624 = vadd.xlane.f32.xlu0 %v1623
        %v1625 = vpop.xlane.xlu0 %1624
        %v1626 = vsel %vm383, %v1620, 0.0
        %1627 = vadd.xlane.f32.xlu0 %v1626
        %v1628 = vpop.xlane.xlu0 %1627
        %v1629 = vmax.f32 %v1625, 1e-24
        %v1630 = vmax.f32 %v1628, 1e-24
        %v1631 = vrsqrt.pop %v1629
        %v1632 = vmul.f32 %v1631, %v1629
        %v1633 = vmul.f32 %v1632, %v1631
        %v1634 = vmul.f32 0.5, %v1633
        %v1635 = vsub.f32 1.5, %v1634
        %v1636 = vmul.f32 %v1631, %v1635
        %vm1637 = vweird.f32 %v1629
        %vm1638 = vweird.f32 %v1631
        %vm1639 = vmor %vm1637, %vm1638
        %v1640 = vsel %vm1639, %v1631, %v1636
        %v1641 = vrsqrt.pop %v1630
        %v1642 = vmul.f32 %v1641, %v1630
        %v1643 = vmul.f32 %v1642, %v1641
        %v1644 = vmul.f32 0.5, %v1643
        %v1645 = vsub.f32 1.5, %v1644
        %v1646 = vmul.f32 %v1641, %v1645
        %vm1647 = vweird.f32 %v1630
        %vm1648 = vweird.f32 %v1641
        %vm1649 = vmor %vm1647, %vm1648
        %v1650 = vsel %vm1649, %v1641, %v1646
        %v1651 = vmul.f32 %v353, %v1640
        %v1652 = vmul.f32 %v356, %v1650
        %1653 = vrot.lane.b32.xlu0 %v381, 24
        %v1654 = vpop.permute.xlu0 %1653
        %1655 = vrot.lane.b32.xlu0 %v382, 24
        %v1656 = vpop.permute.xlu0 %1655
        %v1659 = vsel %vm383, %v1654, 0.0
        %1660 = vadd.xlane.f32.xlu0 %v1659
        %v1661 = vpop.xlane.xlu0 %1660
        %v1662 = vsel %vm383, %v1656, 0.0
        %1663 = vadd.xlane.f32.xlu0 %v1662
        %v1664 = vpop.xlane.xlu0 %1663
        %v1665 = vmax.f32 %v1661, 1e-24
        %v1666 = vmax.f32 %v1664, 1e-24
        %v1667 = vrsqrt.pop %v1665
        %v1668 = vmul.f32 %v1667, %v1665
        %v1669 = vmul.f32 %v1668, %v1667
        %v1670 = vmul.f32 0.5, %v1669
        %v1671 = vsub.f32 1.5, %v1670
        %v1672 = vmul.f32 %v1667, %v1671
        %vm1673 = vweird.f32 %v1665
        %vm1674 = vweird.f32 %v1667
        %vm1675 = vmor %vm1673, %vm1674
        %v1676 = vsel %vm1675, %v1667, %v1672
        %v1677 = vrsqrt.pop %v1666
        %v1678 = vmul.f32 %v1677, %v1666
        %v1679 = vmul.f32 %v1678, %v1677
        %v1680 = vmul.f32 0.5, %v1679
        %v1681 = vsub.f32 1.5, %v1680
        %v1682 = vmul.f32 %v1677, %v1681
        %vm1683 = vweird.f32 %v1666
        %vm1684 = vweird.f32 %v1677
        %vm1685 = vmor %vm1683, %vm1684
        %v1686 = vsel %vm1685, %v1677, %v1682
        %v1687 = vmul.f32 %v353, %v1676
        %v1688 = vmul.f32 %v356, %v1686
        %s1689 = scalar_lea.vmem %s3, 5
        %v1690 = vld [vmem:[%s1689] sm:$0x1]
        %v1692 = vperm.slane %v1690, 0
        %1693 = vrot.lane.b32.xlu0 %v1692, 40
        %v1694 = vpop.permute.xlu0 %1693
        %v1696 = vmul.f32 %v1651, %v1694
        %v1697 = vmul.f32 %v1652, %v1694
        %s1698 = scalar_lea.vmem %s4, 5
        %v1699 = vld [vmem:[%s1698] sm:$0x1]
        %v1701 = vperm.slane %v1699, 0
        %1702 = vrot.lane.b32.xlu0 %v1701, 40
        %v1703 = vpop.permute.xlu0 %1702
        %v1705 = vadd.f32 %v1696, %v1703
        %v1706 = vadd.f32 %v1697, %v1703
        %s1707 = scalar_lea.vmem %s5, 80
        %v1708 = vld [vmem:[%s1707] sm:$0xff]
        %v1709 = vld [vmem:[%s1707 + $0x8] sm:$0xff]
        %1712 = vrot.lane.b32.xlu0 %v1705, 88
        %v1713 = vpop.permute.xlu0 %1712
        %1714 = vrot.lane.b32.xlu0 %v1706, 88
        %v1715 = vpop.permute.xlu0 %1714
        %1718 = vrot.lane.b32.xlu0 %v1687, 24
        %v1719 = vpop.permute.xlu0 %1718
        %1720 = vrot.lane.b32.xlu0 %v1688, 24
        %v1721 = vpop.permute.xlu0 %1720
        %v1722 = vsel %vm383, %v1713, 0
        %v1724 = vsel %vm383, %v1715, 0
        %v1726 = vsel %vm383, %v1719, 0
        %v1728 = vsel %vm383, %v1721, 0
        %1730 = vmatpush.xpose.msra.mxu0 0.0
        %1731 = vmatpush.xpose.msra.mxu0 0.0
        %1732 = vmatpush.xpose.msra.mxu0 0.0
        %1733 = vmatpush.xpose.msra.mxu0 0.0
        %1734 = vmatpush.xpose.msra.mxu0 0.0
        %1735 = vmatpush.xpose.msra.mxu0 0.0
        %1736 = vmatpush.xpose.msra.mxu0 0.0
        %1737 = vmatpush.xpose.msra.mxu0 0.0
        %1738 = vmatpush.xpose.msra.mxu0 0.0
        %1739 = vmatpush.xpose.msra.mxu0 0.0
        %1740 = vmatpush.xpose.msra.mxu0 0.0
        %1741 = vmatpush.xpose.msra.mxu0 0.0
        %1742 = vmatpush.xpose.msra.mxu0 0.0
        %1743 = vmatpush.xpose.msra.mxu0 0.0
        %1744 = vmatpush.xpose.msra.mxu0 %v1728
        %1745 = vmatpush.xpose.msra.mxu0 %v1726
        %1746 = vmatmul.f32.gmra.mxu0 %v1722
        %v1747 = vpop.f32.mrf.mxu0
        %v1748 = vadd.f32 %v1708, %v1747
        %1749 = vmatmul.f32.gmra.mxu0 %v1724
        %v1750 = vpop.f32.mrf.mxu0
        %v1751 = vadd.f32 %v1709, %v1750
        %1752 = vdwg.mxu0
        %v1753 = vsel %vm505, %v1748, -inf
        %1754 = vmax.xlane.f32.xlu0 %v1753
        %v1755 = vpop.xlane.xlu0 %1754
        %v1756 = vsel %vm505, %v1751, -inf
        %1757 = vmax.xlane.f32.xlu0 %v1756
        %v1758 = vpop.xlane.xlu0 %1757
        %v1759 = vsub.f32 %v1748, %v1755
        %v1760 = vsub.f32 %v1751, %v1758
        %v1761 = vmul.f32 %v1759, 1.442695
        %v1762 = vpow.pop %v1761
        %v1763 = vmul.f32 %v1760, 1.442695
        %v1764 = vpow.pop %v1763
        %v1765 = vsel %vm505, %v1762, 0.0
        %1766 = vadd.xlane.f32.xlu0 %v1765
        %v1767 = vpop.xlane.xlu0 %1766
        %v1768 = vsel %vm505, %v1764, 0.0
        %1769 = vadd.xlane.f32.xlu0 %v1768
        %v1770 = vpop.xlane.xlu0 %1769
        %v1771 = vrcp.pop %v1767
        %v1772 = vmul.f32 %v1767, %v1771
        %v1773 = vsub.f32 1.0, %v1772
        %v1774 = vmul.f32 %v1771, %v1773
        %v1775 = vadd.f32 %v1771, %v1774
        %vm1776 = vweird.f32 %v1767
        %vm1777 = vweird.f32 %v1771
        %vm1778 = vmor %vm1776, %vm1777
        %v1779 = vsel %vm1778, %v1771, %v1775
        %v1780 = vand.u32 2147483647, %v1767
        %vm1781 = vcmp.eq.f32.partialorder %v1780, 8.507059e+37
        %v1782 = vand.u32 %v1767, 2147483648
        %v1783 = vor.u32 1.1754944e-38, %v1782
        %v1784 = vsel %vm1781, %v1783, %v1779
        %v1785 = vrcp.pop %v1770
        %v1786 = vmul.f32 %v1770, %v1785
        %v1787 = vsub.f32 1.0, %v1786
        %v1788 = vmul.f32 %v1785, %v1787
        %v1789 = vadd.f32 %v1785, %v1788
        %vm1790 = vweird.f32 %v1770
        %vm1791 = vweird.f32 %v1785
        %vm1792 = vmor %vm1790, %vm1791
        %v1793 = vsel %vm1792, %v1785, %v1789
        %v1794 = vand.u32 2147483647, %v1770
        %vm1795 = vcmp.eq.f32.partialorder %v1794, 8.507059e+37
        %v1796 = vand.u32 %v1770, 2147483648
        %v1797 = vor.u32 1.1754944e-38, %v1796
        %v1798 = vsel %vm1795, %v1797, %v1793
        %v1799 = vmul.f32 %v1762, %v1784
        %v1800 = vmul.f32 %v1764, %v1798
        %1801 = vrot.lane.b32.xlu0 %v376, 88
        %v1802 = vpop.permute.xlu0 %1801
        %1803 = vrot.lane.b32.xlu0 %v379, 88
        %v1804 = vpop.permute.xlu0 %1803
        %v1808 = vsel %vm505, %v1799, 0
        %v1811 = vsel %vm505, %v1800, 0
        %1813 = vmatpush.msra.mxu0 0.0
        %1814 = vmatpush.msra.mxu0 0.0
        %1815 = vmatpush.msra.mxu0 0.0
        %1816 = vmatpush.msra.mxu0 0.0
        %1817 = vmatpush.msra.mxu0 0.0
        %1818 = vmatpush.msra.mxu0 0.0
        %1819 = vmatpush.msra.mxu0 0.0
        %1820 = vmatpush.msra.mxu0 0.0
        %1821 = vmatpush.msra.mxu0 0.0
        %1822 = vmatpush.msra.mxu0 0.0
        %1823 = vmatpush.msra.mxu0 0.0
        %1824 = vmatpush.msra.mxu0 0.0
        %1825 = vmatpush.msra.mxu0 0.0
        %1826 = vmatpush.msra.mxu0 0.0
        %1827 = vmatpush.msra.mxu0 %v1804
        %1828 = vmatpush.msra.mxu0 %v1802
        %1829 = vmatmul.f32.gmra.mxu0 %v1808
        %v1830 = vpop.f32.mrf.mxu0
        %v1831 = vadd.f32 0.0, %v1830
        %1832 = vmatmul.f32.gmra.mxu0 %v1811
        %v1833 = vpop.f32.mrf.mxu0
        %v1834 = vadd.f32 0.0, %v1833
        %1835 = vdwg.mxu0
        %v1836 = vld [vmem:[%s6 + $0x28] sm:$0xff]
        %v1838 = vsel %vm383, %v1831, 0
        %v1841 = vsel %vm383, %v1834, 0
        %1843 = vmatpush.msra.mxu0 0.0
        %1844 = vmatpush.msra.mxu0 0.0
        %1845 = vmatpush.msra.mxu0 0.0
        %1846 = vmatpush.msra.mxu0 0.0
        %1847 = vmatpush.msra.mxu0 0.0
        %1848 = vmatpush.msra.mxu0 0.0
        %1849 = vmatpush.msra.mxu0 0.0
        %1850 = vmatpush.msra.mxu0 0.0
        %1851 = vmatpush.msra.mxu0 0.0
        %1852 = vmatpush.msra.mxu0 0.0
        %1853 = vmatpush.msra.mxu0 0.0
        %1854 = vmatpush.msra.mxu0 0.0
        %1855 = vmatpush.msra.mxu0 0.0
        %1856 = vmatpush.msra.mxu0 0.0
        %1857 = vmatpush.msra.mxu0 0.0
        %1858 = vmatpush.msra.mxu0 %v1836
        %1859 = vmatmul.f32.gmra.mxu0 %v1838
        %v1860 = vpop.f32.mrf.mxu0
        %v1861 = vadd.f32 0.0, %v1860
        %1862 = vmatmul.f32.gmra.mxu0 %v1841
        %v1863 = vpop.f32.mrf.mxu0
        %v1864 = vadd.f32 0.0, %v1863
        %1865 = vdwg.mxu0
        %v1866 = vadd.f32 %v1615, %v1861
        %v1867 = vadd.f32 %v1616, %v1864
        %1868 = vrot.lane.b32.xlu0 %v381, 80
        %v1869 = vpop.permute.xlu0 %1868
        %1870 = vrot.lane.b32.xlu0 %v382, 80
        %v1871 = vpop.permute.xlu0 %1870
        %v1874 = vsel %vm383, %v1869, 0.0
        %1875 = vadd.xlane.f32.xlu0 %v1874
        %v1876 = vpop.xlane.xlu0 %1875
        %v1877 = vsel %vm383, %v1871, 0.0
        %1878 = vadd.xlane.f32.xlu0 %v1877
        %v1879 = vpop.xlane.xlu0 %1878
        %v1880 = vmax.f32 %v1876, 1e-24
        %v1881 = vmax.f32 %v1879, 1e-24
        %v1882 = vrsqrt.pop %v1880
        %v1883 = vmul.f32 %v1882, %v1880
        %v1884 = vmul.f32 %v1883, %v1882
        %v1885 = vmul.f32 0.5, %v1884
        %v1886 = vsub.f32 1.5, %v1885
        %v1887 = vmul.f32 %v1882, %v1886
        %vm1888 = vweird.f32 %v1880
        %vm1889 = vweird.f32 %v1882
        %vm1890 = vmor %vm1888, %vm1889
        %v1891 = vsel %vm1890, %v1882, %v1887
        %v1892 = vrsqrt.pop %v1881
        %v1893 = vmul.f32 %v1892, %v1881
        %v1894 = vmul.f32 %v1893, %v1892
        %v1895 = vmul.f32 0.5, %v1894
        %v1896 = vsub.f32 1.5, %v1895
        %v1897 = vmul.f32 %v1892, %v1896
        %vm1898 = vweird.f32 %v1881
        %vm1899 = vweird.f32 %v1892
        %vm1900 = vmor %vm1898, %vm1899
        %v1901 = vsel %vm1900, %v1892, %v1897
        %v1902 = vmul.f32 %v353, %v1891
        %v1903 = vmul.f32 %v356, %v1901
        %1904 = vrot.lane.b32.xlu0 %v381, 16
        %v1905 = vpop.permute.xlu0 %1904
        %1906 = vrot.lane.b32.xlu0 %v382, 16
        %v1907 = vpop.permute.xlu0 %1906
        %v1910 = vsel %vm383, %v1905, 0.0
        %1911 = vadd.xlane.f32.xlu0 %v1910
        %v1912 = vpop.xlane.xlu0 %1911
        %v1913 = vsel %vm383, %v1907, 0.0
        %1914 = vadd.xlane.f32.xlu0 %v1913
        %v1915 = vpop.xlane.xlu0 %1914
        %v1916 = vmax.f32 %v1912, 1e-24
        %v1917 = vmax.f32 %v1915, 1e-24
        %v1918 = vrsqrt.pop %v1916
        %v1919 = vmul.f32 %v1918, %v1916
        %v1920 = vmul.f32 %v1919, %v1918
        %v1921 = vmul.f32 0.5, %v1920
        %v1922 = vsub.f32 1.5, %v1921
        %v1923 = vmul.f32 %v1918, %v1922
        %vm1924 = vweird.f32 %v1916
        %vm1925 = vweird.f32 %v1918
        %vm1926 = vmor %vm1924, %vm1925
        %v1927 = vsel %vm1926, %v1918, %v1923
        %v1928 = vrsqrt.pop %v1917
        %v1929 = vmul.f32 %v1928, %v1917
        %v1930 = vmul.f32 %v1929, %v1928
        %v1931 = vmul.f32 0.5, %v1930
        %v1932 = vsub.f32 1.5, %v1931
        %v1933 = vmul.f32 %v1928, %v1932
        %vm1934 = vweird.f32 %v1917
        %vm1935 = vweird.f32 %v1928
        %vm1936 = vmor %vm1934, %vm1935
        %v1937 = vsel %vm1936, %v1928, %v1933
        %v1938 = vmul.f32 %v353, %v1927
        %v1939 = vmul.f32 %v356, %v1937
        %s1940 = scalar_lea.vmem %s3, 6
        %v1941 = vld [vmem:[%s1940] sm:$0x1]
        %v1943 = vperm.slane %v1941, 0
        %1944 = vrot.lane.b32.xlu0 %v1943, 48
        %v1945 = vpop.permute.xlu0 %1944
        %v1947 = vmul.f32 %v1902, %v1945
        %v1948 = vmul.f32 %v1903, %v1945
        %s1949 = scalar_lea.vmem %s4, 6
        %v1950 = vld [vmem:[%s1949] sm:$0x1]
        %v1952 = vperm.slane %v1950, 0
        %1953 = vrot.lane.b32.xlu0 %v1952, 48
        %v1954 = vpop.permute.xlu0 %1953
        %v1956 = vadd.f32 %v1947, %v1954
        %v1957 = vadd.f32 %v1948, %v1954
        %s1958 = scalar_lea.vmem %s5, 96
        %v1959 = vld [vmem:[%s1958] sm:$0xff]
        %v1960 = vld [vmem:[%s1958 + $0x8] sm:$0xff]
        %1963 = vrot.lane.b32.xlu0 %v1956, 80
        %v1964 = vpop.permute.xlu0 %1963
        %1965 = vrot.lane.b32.xlu0 %v1957, 80
        %v1966 = vpop.permute.xlu0 %1965
        %1969 = vrot.lane.b32.xlu0 %v1938, 16
        %v1970 = vpop.permute.xlu0 %1969
        %1971 = vrot.lane.b32.xlu0 %v1939, 16
        %v1972 = vpop.permute.xlu0 %1971
        %v1973 = vsel %vm383, %v1964, 0
        %v1975 = vsel %vm383, %v1966, 0
        %v1977 = vsel %vm383, %v1970, 0
        %v1979 = vsel %vm383, %v1972, 0
        %1981 = vmatpush.xpose.msra.mxu0 0.0
        %1982 = vmatpush.xpose.msra.mxu0 0.0
        %1983 = vmatpush.xpose.msra.mxu0 0.0
        %1984 = vmatpush.xpose.msra.mxu0 0.0
        %1985 = vmatpush.xpose.msra.mxu0 0.0
        %1986 = vmatpush.xpose.msra.mxu0 0.0
        %1987 = vmatpush.xpose.msra.mxu0 0.0
        %1988 = vmatpush.xpose.msra.mxu0 0.0
        %1989 = vmatpush.xpose.msra.mxu0 0.0
        %1990 = vmatpush.xpose.msra.mxu0 0.0
        %1991 = vmatpush.xpose.msra.mxu0 0.0
        %1992 = vmatpush.xpose.msra.mxu0 0.0
        %1993 = vmatpush.xpose.msra.mxu0 0.0
        %1994 = vmatpush.xpose.msra.mxu0 0.0
        %1995 = vmatpush.xpose.msra.mxu0 %v1979
        %1996 = vmatpush.xpose.msra.mxu0 %v1977
        %1997 = vmatmul.f32.gmra.mxu0 %v1973
        %v1998 = vpop.f32.mrf.mxu0
        %v1999 = vadd.f32 %v1959, %v1998
        %2000 = vmatmul.f32.gmra.mxu0 %v1975
        %v2001 = vpop.f32.mrf.mxu0
        %v2002 = vadd.f32 %v1960, %v2001
        %2003 = vdwg.mxu0
        %v2004 = vsel %vm505, %v1999, -inf
        %2005 = vmax.xlane.f32.xlu0 %v2004
        %v2006 = vpop.xlane.xlu0 %2005
        %v2007 = vsel %vm505, %v2002, -inf
        %2008 = vmax.xlane.f32.xlu0 %v2007
        %v2009 = vpop.xlane.xlu0 %2008
        %v2010 = vsub.f32 %v1999, %v2006
        %v2011 = vsub.f32 %v2002, %v2009
        %v2012 = vmul.f32 %v2010, 1.442695
        %v2013 = vpow.pop %v2012
        %v2014 = vmul.f32 %v2011, 1.442695
        %v2015 = vpow.pop %v2014
        %v2016 = vsel %vm505, %v2013, 0.0
        %2017 = vadd.xlane.f32.xlu0 %v2016
        %v2018 = vpop.xlane.xlu0 %2017
        %v2019 = vsel %vm505, %v2015, 0.0
        %2020 = vadd.xlane.f32.xlu0 %v2019
        %v2021 = vpop.xlane.xlu0 %2020
        %v2022 = vrcp.pop %v2018
        %v2023 = vmul.f32 %v2018, %v2022
        %v2024 = vsub.f32 1.0, %v2023
        %v2025 = vmul.f32 %v2022, %v2024
        %v2026 = vadd.f32 %v2022, %v2025
        %vm2027 = vweird.f32 %v2018
        %vm2028 = vweird.f32 %v2022
        %vm2029 = vmor %vm2027, %vm2028
        %v2030 = vsel %vm2029, %v2022, %v2026
        %v2031 = vand.u32 2147483647, %v2018
        %vm2032 = vcmp.eq.f32.partialorder %v2031, 8.507059e+37
        %v2033 = vand.u32 %v2018, 2147483648
        %v2034 = vor.u32 1.1754944e-38, %v2033
        %v2035 = vsel %vm2032, %v2034, %v2030
        %v2036 = vrcp.pop %v2021
        %v2037 = vmul.f32 %v2021, %v2036
        %v2038 = vsub.f32 1.0, %v2037
        %v2039 = vmul.f32 %v2036, %v2038
        %v2040 = vadd.f32 %v2036, %v2039
        %vm2041 = vweird.f32 %v2021
        %vm2042 = vweird.f32 %v2036
        %vm2043 = vmor %vm2041, %vm2042
        %v2044 = vsel %vm2043, %v2036, %v2040
        %v2045 = vand.u32 2147483647, %v2021
        %vm2046 = vcmp.eq.f32.partialorder %v2045, 8.507059e+37
        %v2047 = vand.u32 %v2021, 2147483648
        %v2048 = vor.u32 1.1754944e-38, %v2047
        %v2049 = vsel %vm2046, %v2048, %v2044
        %v2050 = vmul.f32 %v2013, %v2035
        %v2051 = vmul.f32 %v2015, %v2049
        %2052 = vrot.lane.b32.xlu0 %v376, 80
        %v2053 = vpop.permute.xlu0 %2052
        %2054 = vrot.lane.b32.xlu0 %v379, 80
        %v2055 = vpop.permute.xlu0 %2054
        %v2059 = vsel %vm505, %v2050, 0
        %v2062 = vsel %vm505, %v2051, 0
        %2064 = vmatpush.msra.mxu0 0.0
        %2065 = vmatpush.msra.mxu0 0.0
        %2066 = vmatpush.msra.mxu0 0.0
        %2067 = vmatpush.msra.mxu0 0.0
        %2068 = vmatpush.msra.mxu0 0.0
        %2069 = vmatpush.msra.mxu0 0.0
        %2070 = vmatpush.msra.mxu0 0.0
        %2071 = vmatpush.msra.mxu0 0.0
        %2072 = vmatpush.msra.mxu0 0.0
        %2073 = vmatpush.msra.mxu0 0.0
        %2074 = vmatpush.msra.mxu0 0.0
        %2075 = vmatpush.msra.mxu0 0.0
        %2076 = vmatpush.msra.mxu0 0.0
        %2077 = vmatpush.msra.mxu0 0.0
        %2078 = vmatpush.msra.mxu0 %v2055
        %2079 = vmatpush.msra.mxu0 %v2053
        %2080 = vmatmul.f32.gmra.mxu0 %v2059
        %v2081 = vpop.f32.mrf.mxu0
        %v2082 = vadd.f32 0.0, %v2081
        %2083 = vmatmul.f32.gmra.mxu0 %v2062
        %v2084 = vpop.f32.mrf.mxu0
        %v2085 = vadd.f32 0.0, %v2084
        %2086 = vdwg.mxu0
        %v2087 = vld [vmem:[%s6 + $0x30] sm:$0xff]
        %v2089 = vsel %vm383, %v2082, 0
        %v2092 = vsel %vm383, %v2085, 0
        %2094 = vmatpush.msra.mxu0 0.0
        %2095 = vmatpush.msra.mxu0 0.0
        %2096 = vmatpush.msra.mxu0 0.0
        %2097 = vmatpush.msra.mxu0 0.0
        %2098 = vmatpush.msra.mxu0 0.0
        %2099 = vmatpush.msra.mxu0 0.0
        %2100 = vmatpush.msra.mxu0 0.0
        %2101 = vmatpush.msra.mxu0 0.0
        %2102 = vmatpush.msra.mxu0 0.0
        %2103 = vmatpush.msra.mxu0 0.0
        %2104 = vmatpush.msra.mxu0 0.0
        %2105 = vmatpush.msra.mxu0 0.0
        %2106 = vmatpush.msra.mxu0 0.0
        %2107 = vmatpush.msra.mxu0 0.0
        %2108 = vmatpush.msra.mxu0 0.0
        %2109 = vmatpush.msra.mxu0 %v2087
        %2110 = vmatmul.f32.gmra.mxu0 %v2089
        %v2111 = vpop.f32.mrf.mxu0
        %v2112 = vadd.f32 0.0, %v2111
        %2113 = vmatmul.f32.gmra.mxu0 %v2092
        %v2114 = vpop.f32.mrf.mxu0
        %v2115 = vadd.f32 0.0, %v2114
        %2116 = vdwg.mxu0
        %v2117 = vadd.f32 %v1866, %v2112
        %v2118 = vadd.f32 %v1867, %v2115
        %2119 = vrot.lane.b32.xlu0 %v381, 72
        %v2120 = vpop.permute.xlu0 %2119
        %2121 = vrot.lane.b32.xlu0 %v382, 72
        %v2122 = vpop.permute.xlu0 %2121
        %v2125 = vsel %vm383, %v2120, 0.0
        %2126 = vadd.xlane.f32.xlu0 %v2125
        %v2127 = vpop.xlane.xlu0 %2126
        %v2128 = vsel %vm383, %v2122, 0.0
        %2129 = vadd.xlane.f32.xlu0 %v2128
        %v2130 = vpop.xlane.xlu0 %2129
        %v2131 = vmax.f32 %v2127, 1e-24
        %v2132 = vmax.f32 %v2130, 1e-24
        %v2133 = vrsqrt.pop %v2131
        %v2134 = vmul.f32 %v2133, %v2131
        %v2135 = vmul.f32 %v2134, %v2133
        %v2136 = vmul.f32 0.5, %v2135
        %v2137 = vsub.f32 1.5, %v2136
        %v2138 = vmul.f32 %v2133, %v2137
        %vm2139 = vweird.f32 %v2131
        %vm2140 = vweird.f32 %v2133
        %vm2141 = vmor %vm2139, %vm2140
        %v2142 = vsel %vm2141, %v2133, %v2138
        %v2143 = vrsqrt.pop %v2132
        %v2144 = vmul.f32 %v2143, %v2132
        %v2145 = vmul.f32 %v2144, %v2143
        %v2146 = vmul.f32 0.5, %v2145
        %v2147 = vsub.f32 1.5, %v2146
        %v2148 = vmul.f32 %v2143, %v2147
        %vm2149 = vweird.f32 %v2132
        %vm2150 = vweird.f32 %v2143
        %vm2151 = vmor %vm2149, %vm2150
        %v2152 = vsel %vm2151, %v2143, %v2148
        %v2153 = vmul.f32 %v353, %v2142
        %v2154 = vmul.f32 %v356, %v2152
        %2155 = vrot.lane.b32.xlu0 %v381, 8
        %v2156 = vpop.permute.xlu0 %2155
        %2157 = vrot.lane.b32.xlu0 %v382, 8
        %v2158 = vpop.permute.xlu0 %2157
        %v2161 = vsel %vm383, %v2156, 0.0
        %2162 = vadd.xlane.f32.xlu0 %v2161
        %v2163 = vpop.xlane.xlu0 %2162
        %v2164 = vsel %vm383, %v2158, 0.0
        %2165 = vadd.xlane.f32.xlu0 %v2164
        %v2166 = vpop.xlane.xlu0 %2165
        %v2167 = vmax.f32 %v2163, 1e-24
        %v2168 = vmax.f32 %v2166, 1e-24
        %v2169 = vrsqrt.pop %v2167
        %v2170 = vmul.f32 %v2169, %v2167
        %v2171 = vmul.f32 %v2170, %v2169
        %v2172 = vmul.f32 0.5, %v2171
        %v2173 = vsub.f32 1.5, %v2172
        %v2174 = vmul.f32 %v2169, %v2173
        %vm2175 = vweird.f32 %v2167
        %vm2176 = vweird.f32 %v2169
        %vm2177 = vmor %vm2175, %vm2176
        %v2178 = vsel %vm2177, %v2169, %v2174
        %v2179 = vrsqrt.pop %v2168
        %v2180 = vmul.f32 %v2179, %v2168
        %v2181 = vmul.f32 %v2180, %v2179
        %v2182 = vmul.f32 0.5, %v2181
        %v2183 = vsub.f32 1.5, %v2182
        %v2184 = vmul.f32 %v2179, %v2183
        %vm2185 = vweird.f32 %v2168
        %vm2186 = vweird.f32 %v2179
        %vm2187 = vmor %vm2185, %vm2186
        %v2188 = vsel %vm2187, %v2179, %v2184
        %v2189 = vmul.f32 %v353, %v2178
        %v2190 = vmul.f32 %v356, %v2188
        %s2191 = scalar_lea.vmem %s3, 7
        %v2192 = vld [vmem:[%s2191] sm:$0x1]
        %v2194 = vperm.slane %v2192, 0
        %2195 = vrot.lane.b32.xlu0 %v2194, 56
        %v2196 = vpop.permute.xlu0 %2195
        %v2198 = vmul.f32 %v2153, %v2196
        %v2199 = vmul.f32 %v2154, %v2196
        %s2200 = scalar_lea.vmem %s4, 7
        %v2201 = vld [vmem:[%s2200] sm:$0x1]
        %v2203 = vperm.slane %v2201, 0
        %2204 = vrot.lane.b32.xlu0 %v2203, 56
        %v2205 = vpop.permute.xlu0 %2204
        %v2207 = vadd.f32 %v2198, %v2205
        %v2208 = vadd.f32 %v2199, %v2205
        %s2209 = scalar_lea.vmem %s5, 112
        %v2210 = vld [vmem:[%s2209] sm:$0xff]
        %v2211 = vld [vmem:[%s2209 + $0x8] sm:$0xff]
        %2214 = vrot.lane.b32.xlu0 %v2207, 72
        %v2215 = vpop.permute.xlu0 %2214
        %2216 = vrot.lane.b32.xlu0 %v2208, 72
        %v2217 = vpop.permute.xlu0 %2216
        %2220 = vrot.lane.b32.xlu0 %v2189, 8
        %v2221 = vpop.permute.xlu0 %2220
        %2222 = vrot.lane.b32.xlu0 %v2190, 8
        %v2223 = vpop.permute.xlu0 %2222
        %v2224 = vsel %vm383, %v2215, 0
        %v2226 = vsel %vm383, %v2217, 0
        %v2228 = vsel %vm383, %v2221, 0
        %v2230 = vsel %vm383, %v2223, 0
        %2232 = vmatpush.xpose.msra.mxu0 0.0
        %2233 = vmatpush.xpose.msra.mxu0 0.0
        %2234 = vmatpush.xpose.msra.mxu0 0.0
        %2235 = vmatpush.xpose.msra.mxu0 0.0
        %2236 = vmatpush.xpose.msra.mxu0 0.0
        %2237 = vmatpush.xpose.msra.mxu0 0.0
        %2238 = vmatpush.xpose.msra.mxu0 0.0
        %2239 = vmatpush.xpose.msra.mxu0 0.0
        %2240 = vmatpush.xpose.msra.mxu0 0.0
        %2241 = vmatpush.xpose.msra.mxu0 0.0
        %2242 = vmatpush.xpose.msra.mxu0 0.0
        %2243 = vmatpush.xpose.msra.mxu0 0.0
        %2244 = vmatpush.xpose.msra.mxu0 0.0
        %2245 = vmatpush.xpose.msra.mxu0 0.0
        %2246 = vmatpush.xpose.msra.mxu0 %v2230
        %2247 = vmatpush.xpose.msra.mxu0 %v2228
        %2248 = vmatmul.f32.gmra.mxu0 %v2224
        %v2249 = vpop.f32.mrf.mxu0
        %v2250 = vadd.f32 %v2210, %v2249
        %2251 = vmatmul.f32.gmra.mxu0 %v2226
        %v2252 = vpop.f32.mrf.mxu0
        %v2253 = vadd.f32 %v2211, %v2252
        %2254 = vdwg.mxu0
        %v2255 = vsel %vm505, %v2250, -inf
        %2256 = vmax.xlane.f32.xlu0 %v2255
        %v2257 = vpop.xlane.xlu0 %2256
        %v2258 = vsel %vm505, %v2253, -inf
        %2259 = vmax.xlane.f32.xlu0 %v2258
        %v2260 = vpop.xlane.xlu0 %2259
        %v2261 = vsub.f32 %v2250, %v2257
        %v2262 = vsub.f32 %v2253, %v2260
        %v2263 = vmul.f32 %v2261, 1.442695
        %v2264 = vpow.pop %v2263
        %v2265 = vmul.f32 %v2262, 1.442695
        %v2266 = vpow.pop %v2265
        %v2267 = vsel %vm505, %v2264, 0.0
        %2268 = vadd.xlane.f32.xlu0 %v2267
        %v2269 = vpop.xlane.xlu0 %2268
        %v2270 = vsel %vm505, %v2266, 0.0
        %2271 = vadd.xlane.f32.xlu0 %v2270
        %v2272 = vpop.xlane.xlu0 %2271
        %v2273 = vrcp.pop %v2269
        %v2274 = vmul.f32 %v2269, %v2273
        %v2275 = vsub.f32 1.0, %v2274
        %v2276 = vmul.f32 %v2273, %v2275
        %v2277 = vadd.f32 %v2273, %v2276
        %vm2278 = vweird.f32 %v2269
        %vm2279 = vweird.f32 %v2273
        %vm2280 = vmor %vm2278, %vm2279
        %v2281 = vsel %vm2280, %v2273, %v2277
        %v2282 = vand.u32 2147483647, %v2269
        %vm2283 = vcmp.eq.f32.partialorder %v2282, 8.507059e+37
        %v2284 = vand.u32 %v2269, 2147483648
        %v2285 = vor.u32 1.1754944e-38, %v2284
        %v2286 = vsel %vm2283, %v2285, %v2281
        %v2287 = vrcp.pop %v2272
        %v2288 = vmul.f32 %v2272, %v2287
        %v2289 = vsub.f32 1.0, %v2288
        %v2290 = vmul.f32 %v2287, %v2289
        %v2291 = vadd.f32 %v2287, %v2290
        %vm2292 = vweird.f32 %v2272
        %vm2293 = vweird.f32 %v2287
        %vm2294 = vmor %vm2292, %vm2293
        %v2295 = vsel %vm2294, %v2287, %v2291
        %v2296 = vand.u32 2147483647, %v2272
        %vm2297 = vcmp.eq.f32.partialorder %v2296, 8.507059e+37
        %v2298 = vand.u32 %v2272, 2147483648
        %v2299 = vor.u32 1.1754944e-38, %v2298
        %v2300 = vsel %vm2297, %v2299, %v2295
        %v2301 = vmul.f32 %v2264, %v2286
        %v2302 = vmul.f32 %v2266, %v2300
        %2303 = vrot.lane.b32.xlu0 %v376, 72
        %v2304 = vpop.permute.xlu0 %2303
        %2305 = vrot.lane.b32.xlu0 %v379, 72
        %v2306 = vpop.permute.xlu0 %2305
        %v2310 = vsel %vm505, %v2301, 0
        %v2313 = vsel %vm505, %v2302, 0
        %2315 = vmatpush.msra.mxu0 0.0
        %2316 = vmatpush.msra.mxu0 0.0
        %2317 = vmatpush.msra.mxu0 0.0
        %2318 = vmatpush.msra.mxu0 0.0
        %2319 = vmatpush.msra.mxu0 0.0
        %2320 = vmatpush.msra.mxu0 0.0
        %2321 = vmatpush.msra.mxu0 0.0
        %2322 = vmatpush.msra.mxu0 0.0
        %2323 = vmatpush.msra.mxu0 0.0
        %2324 = vmatpush.msra.mxu0 0.0
        %2325 = vmatpush.msra.mxu0 0.0
        %2326 = vmatpush.msra.mxu0 0.0
        %2327 = vmatpush.msra.mxu0 0.0
        %2328 = vmatpush.msra.mxu0 0.0
        %2329 = vmatpush.msra.mxu0 %v2306
        %2330 = vmatpush.msra.mxu0 %v2304
        %2331 = vmatmul.f32.gmra.mxu0 %v2310
        %v2332 = vpop.f32.mrf.mxu0
        %v2333 = vadd.f32 0.0, %v2332
        %2334 = vmatmul.f32.gmra.mxu0 %v2313
        %v2335 = vpop.f32.mrf.mxu0
        %v2336 = vadd.f32 0.0, %v2335
        %2337 = vdwg.mxu0
        %v2338 = vld [vmem:[%s6 + $0x38] sm:$0xff]
        %v2340 = vsel %vm383, %v2333, 0
        %v2343 = vsel %vm383, %v2336, 0
        %2345 = vmatpush.msra.mxu0 0.0
        %2346 = vmatpush.msra.mxu0 0.0
        %2347 = vmatpush.msra.mxu0 0.0
        %2348 = vmatpush.msra.mxu0 0.0
        %2349 = vmatpush.msra.mxu0 0.0
        %2350 = vmatpush.msra.mxu0 0.0
        %2351 = vmatpush.msra.mxu0 0.0
        %2352 = vmatpush.msra.mxu0 0.0
        %2353 = vmatpush.msra.mxu0 0.0
        %2354 = vmatpush.msra.mxu0 0.0
        %2355 = vmatpush.msra.mxu0 0.0
        %2356 = vmatpush.msra.mxu0 0.0
        %2357 = vmatpush.msra.mxu0 0.0
        %2358 = vmatpush.msra.mxu0 0.0
        %2359 = vmatpush.msra.mxu0 0.0
        %2360 = vmatpush.msra.mxu0 %v2338
        %2361 = vmatmul.f32.gmra.mxu0 %v2340
        %v2362 = vpop.f32.mrf.mxu0
        %v2363 = vadd.f32 0.0, %v2362
        %2364 = vmatmul.f32.gmra.mxu0 %v2343
        %v2365 = vpop.f32.mrf.mxu0
        %v2366 = vadd.f32 0.0, %v2365
        %2367 = vdwg.mxu0
        %v2368 = vadd.f32 %v2117, %v2363
        %v2369 = vadd.f32 %v2118, %v2366
        %v2370 = vld [vmem:[%s7] sm:$0x1]
        %v2372 = vperm.slane %v2370, 0
        %v2374 = vadd.f32 %v2368, %v2372
        %v2375 = vadd.f32 %v2369, %v2372
        %2376 = vst.msk [vmem:[%s298] sm:$0xff] %vm328, %v2374
        %2377 = vst.msk [vmem:[%s298 + $0x8] sm:$0xff] %vm328, %v2375
        %s2378 = sand.u32 %s203, 1
        %s2379 = scalar_lea.sflag [#allocation3], %s2378
        %s2380 = sand.u32 %s203, 1
        %s2381 = smul.addr %s2380, 16
        %s2382 = scalar_lea.vmem [#allocation2], %s2381
        // Predicated region
        $region53: #{attention_forward.3} parent=51 // pred_check
          %p2383 = pneg %p213
        $region54: #{attention_forward.3} parent=51 // pred_check_branch
          %2385 = sbr.rel (%p2383) target = $region56
        $region55: #{attention_forward.3} parent=51 // pred_region
          %2387 = vsyncadd %s2379, 0
          %s2388 = smul.addr %s22, 2
          %s2389 = smul.addr %s2388, 8
          %s2390 = scalar_lea.hbm %s8, %s2389
          %s2391 = sshll.u32 %s2382, 4
          %s2392 = int_to_ptr.vmem [resolvable:$true] %s2391
          %s2393 = sshll.u32 %s2390, 4
          %s2394 = int_to_ptr.hbm [resolvable:$true] %s2393
          %2399 = dma.vmem_to_hbm [thread:$0]  %s2392, 256, %s2394, %s2379, 128, 128, 8
        $region56: #{attention_forward.3} parent=51 // pred_fallthru
          _
      $region52: #{attention_forward.3} parent=5 // pred_fallthru
        _
      %p2400 = scmp.le.s32.totalorder 2, %s17
      // Predicated region
      $region57: #{attention_forward.3} parent=5 // pred_check
        %p2401 = pneg %p2400
      $region58: #{attention_forward.3} parent=5 // pred_check_branch
        %2403 = sbr.rel (%p2401) target = $region60
      $region59: #{attention_forward.3} parent=5 // pred_region
        %s2404 = ssub.s32 %s17, 2
        // Predicated region
        $region61: #{attention_forward.3} parent=59 // pred_check
          %p2405 = pneg %p219
        $region62: #{attention_forward.3} parent=59 // pred_check_branch
          %2407 = sbr.rel (%p2405) target = $region64
        $region63: #{attention_forward.3} parent=59 // pred_region
          %s2408 = sand.u32 %s204, 1
          %s2409 = scalar_lea.sflag [#allocation3], %s2408
          %s2410 = sand.u32 %s204, 1
          %s2411 = smul.addr %s2410, 16
          %s2412 = scalar_lea.vmem [#allocation2], %s2411
          %2414 = dma.done %s2409, 256
        $region64: #{attention_forward.3} parent=59 // pred_fallthru
          _
      $region60: #{attention_forward.3} parent=5 // pred_fallthru
        _
    $region6: #{attention_forward.3} parent=1 // loop_footer
      %s21 = sadd.s32 1, %s17
    $region7: #{attention_forward.3} parent=1 // loop_footer_branch
      %16 = sbr.rel target = $region3
    $region8: #{attention_forward.3} parent=1 // loop_exit
      _
    %2415 = vsyncpa [#allocation3], 1
    %s2416 = scalar_lea.sflag [#allocation3], 1
    %2417 = vsyncpa %s2416, 1

</llo_original>
